<compile_context>
chip_gen: v6e
topology: v6e:2x2x1
jax: 0.10.0
libtpu: 0.0.40
codegen_flags: <defaults>
</compile_context>

<pallas_src>
import math
from functools import partial

import jax
import jax.numpy as jnp
from jax import lax
from jax.experimental import pallas as pl
from jax.experimental.pallas import tpu as pltpu

EPS = 1e-5  # BatchNorm1d default eps


def _round_up(a, b):
    return (a + b - 1) // b * b


def _block_diag(w):
    """(heads, A, B) per-head weights -> (heads*A, heads*B) block-diagonal matrix."""
    h, a, b = w.shape
    eye = jnp.eye(h, dtype=w.dtype)
    return jnp.einsum('hab,hg->hagb', w, eye).reshape(h * a, h * b)


def _stats_kernel(x_ref, w1_ref, b1_ref, sel_ref, selt_ref, sum_ref, ss_ref, *,
                  tile_e, d0, n_edges):
    """Pass 1: layer-1 linear + relu, emit per-tile per-head BN partial stats.

    x_ref   : (tile_e, H*F)  f32  edge tile (head-major flattening of (E,H,F))
    w1_ref  : (H*F, H*D0)    f32  block-diagonal per-head weights (VMEM resident)
    b1_ref  : (1, H*D0)      f32
    sel_ref : (H*D0, H)      f32  0/1 column->head selector (constant input)
    selt_ref: (H, H*D0)      f32  its transpose (head->column broadcast)
    sum_ref : (1, 1, H)      f32  per-head tile sum
    ss_ref  : (1, 1, H)      f32  per-head tile centered sum-of-squares
    """
    i = pl.program_id(0)
    y = jnp.dot(x_ref[...], w1_ref[...],
                preferred_element_type=jnp.float32) + b1_ref[...]
    y = jnp.maximum(y, 0.0)                                     # relu

    # Mask rows past the true edge count (padded tail of the last tile).
    # jnp.where (not a multiply) so padded/garbage rows can never poison sums.
    row = lax.broadcasted_iota(jnp.int32, (tile_e, 1), 0) + i * tile_e
    valid = row < n_edges                                       # (tile_e, 1)
    n_valid = jnp.minimum(tile_e, n_edges - i * tile_e).astype(jnp.float32)
    cnt = n_valid * d0                                          # elements per head

    ym = jnp.where(valid, y, 0.0)
    tile_sum = jnp.sum(jnp.dot(ym, sel_ref[...],
                               preferred_element_type=jnp.float32),
                       axis=0, keepdims=True)                   # (1, H)
    tile_mean = tile_sum / cnt                                  # (1, H)
    # Broadcast per-head tile mean back to per-column (tiny MXU matmul in
    # otherwise-idle slots), then centered sum-of-squares.
    mean_cols = jnp.dot(tile_mean, selt_ref[...],
                        preferred_element_type=jnp.float32)     # (1, H*D0)
    yc = jnp.where(valid, y - mean_cols, 0.0)
    tile_ss = jnp.sum(jnp.dot(yc * yc, sel_ref[...],
                              preferred_element_type=jnp.float32),
                      axis=0, keepdims=True)                    # (1, H)

    sum_ref[...] = tile_sum[None]
    ss_ref[...] = tile_ss[None]


def _apply_kernel(x_ref, w1_ref, b1_ref, scale1_ref, shift1_ref,
                  w2_ref, b2_ref, o_ref):
    """Pass 2: recompute layer 1, apply BN-1 scale/shift rows, layer 2, write pre-BN z.

    scale1_ref/shift1_ref: (1, H*D0) rows with gamma*rsqrt(var+eps) and
    beta - mean*scale folded per column; row-broadcast is a free VPU FMA.
    o_ref: (tile_e, H*D1) pre-BN layer-2 activations (relu applied).
    """
    y = jnp.dot(x_ref[...], w1_ref[...],
                preferred_element_type=jnp.float32) + b1_ref[...]
    y = jnp.maximum(y, 0.0)                                     # relu
    y = y * scale1_ref[...] + shift1_ref[...]                   # BatchNorm layer 1
    # dropout p=0.0 -> no-op
    # TODO(synk): nonzero dropout_probs would need pltpu.prng_seed/prng_random_bits masking.
    z = jnp.dot(y, w2_ref[...],
                preferred_element_type=jnp.float32) + b2_ref[...]
    o_ref[...] = jnp.maximum(z, 0.0)                            # relu (pre-BN-2)


def attention_mlp_forward(x, w1, b1, w2, b2, bn, *, tile_edges=512):
    """AttentionMLP forward (layers=2, relu, batch_norm, dropout p=0), training-mode BN.

    x : (E, heads, in_features) f32
    w1: (heads, in_features, d0), b1: (heads, d0)
    w2: (heads, d0, d1),          b2: (heads, d1)
    bn: (4, heads) = [gamma1, beta1, gamma2, beta2]
    Returns (E, heads) when d1 == 1 (torch's trailing squeeze), else (E, heads, d1).
    tile_edges: edge tile size (multiple of 8; sweep 512-2048 on real workloads).
    """
    e, h, f = x.shape
    d0 = w1.shape[-1]
    d1 = w2.shape[-1]
    hf, hd0, hd1 = h * f, h * d0, h * d1

    # (E,H,F) -> (E,H*F) is a contiguous (free) reshape; everything stays f32.
    x2d = x.reshape(e, hf).astype(jnp.float32)
    w1_bd = _block_diag(w1.astype(jnp.float32))               # (H*F,  H*D0)
    w2_bd = _block_diag(w2.astype(jnp.float32))               # (H*D0, H*D1)
    b1_row = b1.reshape(1, hd0).astype(jnp.float32)
    b2_row = b2.reshape(1, hd1).astype(jnp.float32)
    bnf = bn.astype(jnp.float32)
    gamma1, beta1, gamma2, beta2 = bnf[0], bnf[1], bnf[2], bnf[3]

    # 0/1 head-selector matrices, built once here (not per grid step).
    sel = (jnp.arange(hd0)[:, None] // d0
           == jnp.arange(h)[None, :]).astype(jnp.float32)     # (H*D0, H)
    sel_t = sel.T                                              # (H, H*D0)

    tile_e = min(_round_up(tile_edges, 8), _round_up(e, 8))
    e_pad = _round_up(e, tile_e)
    n_tiles = e_pad // tile_e
    if e_pad != e:
        # Zero-pad so no block is ever ragged; padded rows are masked out of
        # the statistics and sliced off the output.  Choose tile_edges to
        # divide E in production to avoid this copy.
        x2d = jnp.pad(x2d, ((0, e_pad - e), (0, 0)))

    cparams = pltpu.CompilerParams(
        dimension_semantics=("parallel",),   # per-tile partials -> both v7x TCs stream
        vmem_limit_bytes=32 * 1024 * 1024,   # explicit; tiles + weights are only a few MiB
    )
    x_spec = pl.BlockSpec((tile_e, hf), lambda i: (i, 0))

    def _const(shape):
        return pl.BlockSpec(shape, lambda i: (0, 0))

    # ---------------- pass 1: per-tile per-head BN-1 partial statistics ----------------
    sums, sss = pl.pallas_call(
        partial(_stats_kernel, tile_e=tile_e, d0=d0, n_edges=e),
        grid=(n_tiles,),
        in_specs=[x_spec, _const((hf, hd0)), _const((1, hd0)),
                  _const((hd0, h)), _const((h, hd0))],
        out_specs=[pl.BlockSpec((1, 1, h), lambda i: (i, 0, 0)),
                   pl.BlockSpec((1, 1, h), lambda i: (i, 0, 0))],
        out_shape=[jax.ShapeDtypeStruct((n_tiles, 1, h), jnp.float32),
                   jax.ShapeDtypeStruct((n_tiles, 1, h), jnp.float32)],
        compiler_params=cparams,
        cost_estimate=pl.CostEstimate(
            flops=2 * e_pad * hf * hd0 + 6 * e_pad * hd0 * h,
            transcendentals=0,
            bytes_accessed=4 * (e_pad * hf + hf * hd0 + 3 * hd0 * h
                                + 2 * n_tiles * h)),
    )(x2d, w1_bd, b1_row, sel, sel_t)

    # ---- combine partials (Chan's parallel variance; biased, as torch training BN) ----
    counts = (jnp.clip(e - tile_e * jnp.arange(n_tiles), 1, tile_e)
              .astype(jnp.float32) * d0)                       # (n_tiles,) elems/head
    tile_sum = sums[:, 0, :]                                   # (n_tiles, H)
    tile_ss = sss[:, 0, :]                                     # (n_tiles, H)
    n_total = float(e * d0)
    mean1 = jnp.sum(tile_sum, axis=0) / n_total                # (H,)
    tile_mean = tile_sum / counts[:, None]
    m2 = (jnp.sum(tile_ss, axis=0)
          + jnp.sum(counts[:, None] * (tile_mean - mean1[None, :]) ** 2, axis=0))
    var1 = m2 / n_total                                        # biased variance
    scale1 = gamma1 * lax.rsqrt(var1 + EPS)
    shift1 = beta1 - mean1 * scale1
    scale1_row = jnp.repeat(scale1, d0)[None, :]               # (1, H*D0)
    shift1_row = jnp.repeat(shift1, d0)[None, :]

    # ---------------- pass 2: recompute layer 1, normalize, layer 2 ----------------
    z = pl.pallas_call(
        _apply_kernel,
        grid=(n_tiles,),
        in_specs=[x_spec, _const((hf, hd0)), _const((1, hd0)),
                  _const((1, hd0)), _const((1, hd0)),
                  _const((hd0, hd1)), _const((1, hd1))],
        out_specs=pl.BlockSpec((tile_e, hd1), lambda i: (i, 0)),
        out_shape=jax.ShapeDtypeStruct((e_pad, hd1), jnp.float32),
        compiler_params=cparams,
        cost_estimate=pl.CostEstimate(
            flops=2 * e_pad * hf * hd0 + 2 * e_pad * hd0 * hd1,
            transcendentals=0,
            bytes_accessed=4 * (e_pad * hf + e_pad * hd1 + hf * hd0 + hd0 * hd1)),
    )(x2d, w1_bd, b1_row, scale1_row, shift1_row, w2_bd, b2_row)

    # -------- layer-2 BatchNorm epilogue (z is only heads*d1 f32/edge -> trivial) --------
    z3 = z[:e].reshape(e, h, d1)
    mean2 = jnp.mean(z3, axis=(0, 2), keepdims=True)
    var2 = jnp.mean((z3 - mean2) ** 2, axis=(0, 2), keepdims=True)
    out = ((z3 - mean2) * lax.rsqrt(var2 + EPS) * gamma2[None, :, None]
           + beta2[None, :, None])
    return out[..., 0] if d1 == 1 else out


def reference_forward(x, w1, b1, w2, b2, bn):
    """Pure-JAX reference mirroring the PyTorch forward (training-mode BN), all f32."""
    hp = lax.Precision.HIGHEST
    y = jnp.einsum('ehf,hfd->ehd', x, w1, precision=hp) + b1[None]
    y = jnp.maximum(y, 0.0)
    m = jnp.mean(y, axis=(0, 2), keepdims=True)
    v = jnp.mean((y - m) ** 2, axis=(0, 2), keepdims=True)
    y = (y - m) * lax.rsqrt(v + EPS) * bn[0][None, :, None] + bn[1][None, :, None]

    z = jnp.einsum('ehd,hdk->ehk', y, w2, precision=hp) + b2[None]
    z = jnp.maximum(z, 0.0)
    m2 = jnp.mean(z, axis=(0, 2), keepdims=True)
    v2 = jnp.mean((z - m2) ** 2, axis=(0, 2), keepdims=True)
    z = (z - m2) * lax.rsqrt(v2 + EPS) * bn[2][None, :, None] + bn[3][None, :, None]
    return z[..., 0]


def _kaiming_uniform(key, shape, torch_shape):
    """kaiming_uniform_(nonlinearity='leaky_relu') with PyTorch fan-in rule (demo init)."""
    fan_in = torch_shape[1] * math.prod(torch_shape[2:])
    gain = math.sqrt(2.0 / (1.0 + 0.01 ** 2))
    bound = gain * math.sqrt(3.0 / fan_in)
    return jax.random.uniform(key, shape, jnp.float32, -bound, bound), fan_in


if __name__ == "__main__":
    # Module config: heads=4, in_features=32, layers=2, layer_dims=[16, 1],
    # bias=True, relu, batch_norm=True, dropout_probs=[0.0, 0.0].
    # E deliberately NOT a multiple of the edge tile (512) to exercise the
    # remainder-row masking of the streaming BatchNorm statistics.
    E, H, F = 1000, 4, 32
    D0, D1 = 16, 1

    key = jax.random.PRNGKey(0)
    kx, kw1, kb1, kw2, kb2, kbn = jax.random.split(key, 6)

    x = jax.random.normal(kx, (E, H, F), jnp.float32)

    # torch weight shapes are (1, H, F_in, F_out); stored here as (H, F_in, F_out).
    w1, fan1 = _kaiming_uniform(kw1, (H, F, D0), (1, H, F, D0))
    w2, fan2 = _kaiming_uniform(kw2, (H, D0, D1), (1, H, D0, D1))
    b1 = jax.random.uniform(kb1, (H, D0), jnp.float32,
                            -1.0 / math.sqrt(fan1), 1.0 / math.sqrt(fan1))
    b2 = jax.random.uniform(kb2, (H, D1), jnp.float32,
                            -1.0 / math.sqrt(fan2), 1.0 / math.sqrt(fan2))

    # BatchNorm1d(heads) affine params.  PyTorch default init is gamma=1,
    # beta=0; use non-trivial values so the affine path is exercised.
    bn = 0.1 * jax.random.normal(kbn, (4, H), jnp.float32)
    bn = bn.at[0].add(1.0).at[2].add(1.0)

    out = jax.jit(attention_mlp_forward)(x, w1, b1, w2, b2, bn)
    out = jax.block_until_ready(out)
    assert out.shape == (E, H), out.shape

    ref = reference_forward(x, w1, b1, w2, b2, bn)
    err = float(jnp.max(jnp.abs(out - ref)))
    assert jnp.allclose(out, ref, rtol=1e-2, atol=1e-2), f"max abs err {err}"

    print("KERNEL_OK")
</pallas_src>

<mosaic_0001>
module attributes {stable_mosaic.version = 11 : i64} {
  func.func @_stats_kernel(%arg0: i32, %arg1: memref<512x128xf32, #tpu.memory_space<vmem>>, %arg2: memref<128x64xf32, #tpu.memory_space<vmem>>, %arg3: memref<1x64xf32, #tpu.memory_space<vmem>>, %arg4: memref<64x4xf32, #tpu.memory_space<vmem>>, %arg5: memref<4x64xf32, #tpu.memory_space<vmem>>, %arg6: memref<1x1x4xf32, #tpu.memory_space<vmem>>, %arg7: memref<1x1x4xf32, #tpu.memory_space<vmem>>) attributes {dimension_semantics = [#tpu.dimension_semantics<parallel>], iteration_bounds = array<i64: 2>, scalar_prefetch = 0 : i64, scratch_operands = 0 : i64, tpu.core_type = #tpu.core_type<tc>, window_params = [{transform_indices = @transform_0, window_bounds = array<i64: 512, 128>}, {pipeline_mode = #tpu.pipeline_mode<synchronous>, transform_indices = @transform_1, window_bounds = array<i64: 128, 64>}, {pipeline_mode = #tpu.pipeline_mode<synchronous>, transform_indices = @transform_2, window_bounds = array<i64: 1, 64>}, {pipeline_mode = #tpu.pipeline_mode<synchronous>, transform_indices = @transform_3, window_bounds = array<i64: 64, 4>}, {pipeline_mode = #tpu.pipeline_mode<synchronous>, transform_indices = @transform_4, window_bounds = array<i64: 4, 64>}, {transform_indices = @transform_5, window_bounds = array<i64: 1, 1, 4>}, {transform_indices = @transform_6, window_bounds = array<i64: 1, 1, 4>}]} {
    %c0 = arith.constant 0 : index
    %c0_0 = arith.constant 0 : index
    %0 = vector.load %arg1[%c0, %c0_0] : memref<512x128xf32, #tpu.memory_space<vmem>>, vector<512x128xf32>
    %c0_1 = arith.constant 0 : index
    %c0_2 = arith.constant 0 : index
    %1 = vector.load %arg2[%c0_1, %c0_2] : memref<128x64xf32, #tpu.memory_space<vmem>>, vector<128x64xf32>
    %cst = arith.constant dense<0.000000e+00> : vector<512x64xf32>
    %2 = tpu.matmul %0, %1, %cst {dimension_numbers = #tpu.dot_dimension_numbers<[1], [0], [0], [1], [0, 0, 1, 1], [], []>} : vector<512x128xf32>, vector<128x64xf32>, vector<512x64xf32> -> vector<512x64xf32>
    %c0_3 = arith.constant 0 : index
    %c0_4 = arith.constant 0 : index
    %3 = vector.load %arg3[%c0_3, %c0_4] : memref<1x64xf32, #tpu.memory_space<vmem>>, vector<1x64xf32>
    %4 = vector.broadcast %3 : vector<1x64xf32> to vector<512x64xf32>
    %5 = arith.addf %2, %4 : vector<512x64xf32>
    %cst_5 = arith.constant 0.000000e+00 : f32
    %6 = vector.broadcast %cst_5 : f32 to vector<512x64xf32>
    %7 = arith.maximumf %5, %6 : vector<512x64xf32>
    %8 = tpu.iota {dimensions = array<i32: 0>} : vector<512x1xi32>
    %c512_i32 = arith.constant 512 : i32
    %9 = arith.muli %arg0, %c512_i32 : i32
    %10 = vector.broadcast %9 : i32 to vector<512x1xi32>
    %11 = arith.addi %8, %10 : vector<512x1xi32>
    %c1000_i32 = arith.constant 1000 : i32
    %12 = vector.broadcast %c1000_i32 : i32 to vector<512x1xi32>
    %13 = arith.cmpi slt, %11, %12 : vector<512x1xi32>
    %c512_i32_6 = arith.constant 512 : i32
    %14 = arith.muli %arg0, %c512_i32_6 : i32
    %c1000_i32_7 = arith.constant 1000 : i32
    %15 = arith.subi %c1000_i32_7, %14 : i32
    %c512_i32_8 = arith.constant 512 : i32
    %16 = arith.minsi %c512_i32_8, %15 : i32
    %17 = arith.sitofp %16 : i32 to f32
    %cst_9 = arith.constant 1.600000e+01 : f32
    %18 = arith.mulf %17, %cst_9 : f32
    %cst_10 = arith.constant 0.000000e+00 : f32
    %19 = vector.shape_cast %13 : vector<512x1xi1> to vector<512x1xi1>
    %20 = vector.broadcast %19 : vector<512x1xi1> to vector<512x64xi1>
    %21 = vector.broadcast %cst_10 : f32 to vector<512x64xf32>
    %22 = arith.select %20, %7, %21 : vector<512x64xi1>, vector<512x64xf32>
    %c0_11 = arith.constant 0 : index
    %c0_12 = arith.constant 0 : index
    %23 = vector.load %arg4[%c0_11, %c0_12] : memref<64x4xf32, #tpu.memory_space<vmem>>, vector<64x4xf32>
    %cst_13 = arith.constant dense<0.000000e+00> : vector<512x4xf32>
    %24 = tpu.matmul %22, %23, %cst_13 {dimension_numbers = #tpu.dot_dimension_numbers<[1], [0], [0], [1], [0, 0, 1, 1], [], []>} : vector<512x64xf32>, vector<64x4xf32>, vector<512x4xf32> -> vector<512x4xf32>
    %cst_14 = arith.constant dense<0.000000e+00> : vector<4xf32>
    %25 = vector.multi_reduction <add>, %24, %cst_14 [0] : vector<512x4xf32> to vector<4xf32>
    %26 = vector.shape_cast %25 : vector<4xf32> to vector<1x4xf32>
    %27 = vector.broadcast %18 : f32 to vector<1x4xf32>
    %28 = arith.divf %26, %27 : vector<1x4xf32>
    %c0_15 = arith.constant 0 : index
    %c0_16 = arith.constant 0 : index
    %29 = vector.load %arg5[%c0_15, %c0_16] : memref<4x64xf32, #tpu.memory_space<vmem>>, vector<4x64xf32>
    %cst_17 = arith.constant dense<0.000000e+00> : vector<1x64xf32>
    %30 = tpu.matmul %28, %29, %cst_17 {dimension_numbers = #tpu.dot_dimension_numbers<[1], [0], [0], [1], [0, 0, 1, 1], [], []>} : vector<1x4xf32>, vector<4x64xf32>, vector<1x64xf32> -> vector<1x64xf32>
    %31 = vector.broadcast %30 : vector<1x64xf32> to vector<512x64xf32>
    %32 = arith.subf %7, %31 : vector<512x64xf32>
    %cst_18 = arith.constant 0.000000e+00 : f32
    %33 = vector.shape_cast %13 : vector<512x1xi1> to vector<512x1xi1>
    %34 = vector.broadcast %33 : vector<512x1xi1> to vector<512x64xi1>
    %35 = vector.broadcast %cst_18 : f32 to vector<512x64xf32>
    %36 = arith.select %34, %32, %35 : vector<512x64xi1>, vector<512x64xf32>
    %37 = arith.mulf %36, %36 : vector<512x64xf32>
    %c0_19 = arith.constant 0 : index
    %c0_20 = arith.constant 0 : index
    %38 = vector.load %arg4[%c0_19, %c0_20] : memref<64x4xf32, #tpu.memory_space<vmem>>, vector<64x4xf32>
    %cst_21 = arith.constant dense<0.000000e+00> : vector<512x4xf32>
    %39 = tpu.matmul %37, %38, %cst_21 {dimension_numbers = #tpu.dot_dimension_numbers<[1], [0], [0], [1], [0, 0, 1, 1], [], []>} : vector<512x64xf32>, vector<64x4xf32>, vector<512x4xf32> -> vector<512x4xf32>
    %cst_22 = arith.constant dense<0.000000e+00> : vector<4xf32>
    %40 = vector.multi_reduction <add>, %39, %cst_22 [0] : vector<512x4xf32> to vector<4xf32>
    %41 = vector.shape_cast %40 : vector<4xf32> to vector<1x4xf32>
    %42 = vector.shape_cast %26 : vector<1x4xf32> to vector<1x1x4xf32>
    %c0_23 = arith.constant 0 : index
    %c0_24 = arith.constant 0 : index
    %c0_25 = arith.constant 0 : index
    %43 = vector.load %arg6[%c0_23, %c0_24, %c0_25] : memref<1x1x4xf32, #tpu.memory_space<vmem>>, vector<1x1x4xf32>
    tpu.vector_store %arg6[%c0_23, %c0_24, %c0_25], %42 {strides = array<i32>} : memref<1x1x4xf32, #tpu.memory_space<vmem>>, vector<1x1x4xf32>,
    %44 = vector.shape_cast %41 : vector<1x4xf32> to vector<1x1x4xf32>
    %c0_26 = arith.constant 0 : index
    %c0_27 = arith.constant 0 : index
    %c0_28 = arith.constant 0 : index
    %45 = vector.load %arg7[%c0_26, %c0_27, %c0_28] : memref<1x1x4xf32, #tpu.memory_space<vmem>>, vector<1x1x4xf32>
    tpu.vector_store %arg7[%c0_26, %c0_27, %c0_28], %44 {strides = array<i32>} : memref<1x1x4xf32, #tpu.memory_space<vmem>>, vector<1x1x4xf32>,
    return
  }
  func.func @transform_0(%arg0: i32) -> (i32, i32) {
    %c0_i32 = arith.constant 0 : i32
    %c0_i32_0 = arith.constant 0 : i32
    return %arg0, %c0_i32 : i32, i32
  }
  func.func @transform_1(%arg0: i32) -> (i32, i32) {
    %c0_i32 = arith.constant 0 : i32
    %c0_i32_0 = arith.constant 0 : i32
    %c0_i32_1 = arith.constant 0 : i32
    return %c0_i32, %c0_i32_0 : i32, i32
  }
  func.func @transform_2(%arg0: i32) -> (i32, i32) {
    %c0_i32 = arith.constant 0 : i32
    %c0_i32_0 = arith.constant 0 : i32
    %c0_i32_1 = arith.constant 0 : i32
    return %c0_i32, %c0_i32_0 : i32, i32
  }
  func.func @transform_3(%arg0: i32) -> (i32, i32) {
    %c0_i32 = arith.constant 0 : i32
    %c0_i32_0 = arith.constant 0 : i32
    %c0_i32_1 = arith.constant 0 : i32
    return %c0_i32, %c0_i32_0 : i32, i32
  }
  func.func @transform_4(%arg0: i32) -> (i32, i32) {
    %c0_i32 = arith.constant 0 : i32
    %c0_i32_0 = arith.constant 0 : i32
    %c0_i32_1 = arith.constant 0 : i32
    return %c0_i32, %c0_i32_0 : i32, i32
  }
  func.func @transform_5(%arg0: i32) -> (i32, i32, i32) {
    %c0_i32 = arith.constant 0 : i32
    %c0_i32_0 = arith.constant 0 : i32
    %c0_i32_1 = arith.constant 0 : i32
    return %arg0, %c0_i32, %c0_i32_0 : i32, i32, i32
  }
  func.func @transform_6(%arg0: i32) -> (i32, i32, i32) {
    %c0_i32 = arith.constant 0 : i32
    %c0_i32_0 = arith.constant 0 : i32
    %c0_i32_1 = arith.constant 0 : i32
    return %arg0, %c0_i32, %c0_i32_0 : i32, i32, i32
  }
}

module attributes {stable_mosaic.version = 11 : i64} {
  func.func @_apply_kernel(%arg0: i32, %arg1: memref<512x128xf32, #tpu.memory_space<vmem>>, %arg2: memref<128x64xf32, #tpu.memory_space<vmem>>, %arg3: memref<1x64xf32, #tpu.memory_space<vmem>>, %arg4: memref<1x64xf32, #tpu.memory_space<vmem>>, %arg5: memref<1x64xf32, #tpu.memory_space<vmem>>, %arg6: memref<64x4xf32, #tpu.memory_space<vmem>>, %arg7: memref<1x4xf32, #tpu.memory_space<vmem>>, %arg8: memref<512x4xf32, #tpu.memory_space<vmem>>) attributes {dimension_semantics = [#tpu.dimension_semantics<parallel>], iteration_bounds = array<i64: 2>, scalar_prefetch = 0 : i64, scratch_operands = 0 : i64, tpu.core_type = #tpu.core_type<tc>, window_params = [{transform_indices = @transform_0, window_bounds = array<i64: 512, 128>}, {pipeline_mode = #tpu.pipeline_mode<synchronous>, transform_indices = @transform_1, window_bounds = array<i64: 128, 64>}, {pipeline_mode = #tpu.pipeline_mode<synchronous>, transform_indices = @transform_2, window_bounds = array<i64: 1, 64>}, {pipeline_mode = #tpu.pipeline_mode<synchronous>, transform_indices = @transform_3, window_bounds = array<i64: 1, 64>}, {pipeline_mode = #tpu.pipeline_mode<synchronous>, transform_indices = @transform_4, window_bounds = array<i64: 1, 64>}, {pipeline_mode = #tpu.pipeline_mode<synchronous>, transform_indices = @transform_5, window_bounds = array<i64: 64, 4>}, {pipeline_mode = #tpu.pipeline_mode<synchronous>, transform_indices = @transform_6, window_bounds = array<i64: 1, 4>}, {transform_indices = @transform_7, window_bounds = array<i64: 512, 4>}]} {
    %c0 = arith.constant 0 : index
    %c0_0 = arith.constant 0 : index
    %0 = vector.load %arg1[%c0, %c0_0] : memref<512x128xf32, #tpu.memory_space<vmem>>, vector<512x128xf32>
    %c0_1 = arith.constant 0 : index
    %c0_2 = arith.constant 0 : index
    %1 = vector.load %arg2[%c0_1, %c0_2] : memref<128x64xf32, #tpu.memory_space<vmem>>, vector<128x64xf32>
    %cst = arith.constant dense<0.000000e+00> : vector<512x64xf32>
    %2 = tpu.matmul %0, %1, %cst {dimension_numbers = #tpu.dot_dimension_numbers<[1], [0], [0], [1], [0, 0, 1, 1], [], []>} : vector<512x128xf32>, vector<128x64xf32>, vector<512x64xf32> -> vector<512x64xf32>
    %c0_3 = arith.constant 0 : index
    %c0_4 = arith.constant 0 : index
    %3 = vector.load %arg3[%c0_3, %c0_4] : memref<1x64xf32, #tpu.memory_space<vmem>>, vector<1x64xf32>
    %4 = vector.broadcast %3 : vector<1x64xf32> to vector<512x64xf32>
    %5 = arith.addf %2, %4 : vector<512x64xf32>
    %cst_5 = arith.constant 0.000000e+00 : f32
    %6 = vector.broadcast %cst_5 : f32 to vector<512x64xf32>
    %7 = arith.maximumf %5, %6 : vector<512x64xf32>
    %c0_6 = arith.constant 0 : index
    %c0_7 = arith.constant 0 : index
    %8 = vector.load %arg4[%c0_6, %c0_7] : memref<1x64xf32, #tpu.memory_space<vmem>>, vector<1x64xf32>
    %9 = vector.broadcast %8 : vector<1x64xf32> to vector<512x64xf32>
    %10 = arith.mulf %7, %9 : vector<512x64xf32>
    %c0_8 = arith.constant 0 : index
    %c0_9 = arith.constant 0 : index
    %11 = vector.load %arg5[%c0_8, %c0_9] : memref<1x64xf32, #tpu.memory_space<vmem>>, vector<1x64xf32>
    %12 = vector.broadcast %11 : vector<1x64xf32> to vector<512x64xf32>
    %13 = arith.addf %10, %12 : vector<512x64xf32>
    %c0_10 = arith.constant 0 : index
    %c0_11 = arith.constant 0 : index
    %14 = vector.load %arg6[%c0_10, %c0_11] : memref<64x4xf32, #tpu.memory_space<vmem>>, vector<64x4xf32>
    %cst_12 = arith.constant dense<0.000000e+00> : vector<512x4xf32>
    %15 = tpu.matmul %13, %14, %cst_12 {dimension_numbers = #tpu.dot_dimension_numbers<[1], [0], [0], [1], [0, 0, 1, 1], [], []>} : vector<512x64xf32>, vector<64x4xf32>, vector<512x4xf32> -> vector<512x4xf32>
    %c0_13 = arith.constant 0 : index
    %c0_14 = arith.constant 0 : index
    %16 = vector.load %arg7[%c0_13, %c0_14] : memref<1x4xf32, #tpu.memory_space<vmem>>, vector<1x4xf32>
    %17 = vector.broadcast %16 : vector<1x4xf32> to vector<512x4xf32>
    %18 = arith.addf %15, %17 : vector<512x4xf32>
    %cst_15 = arith.constant 0.000000e+00 : f32
    %19 = vector.broadcast %cst_15 : f32 to vector<512x4xf32>
    %20 = arith.maximumf %18, %19 : vector<512x4xf32>
    %c0_16 = arith.constant 0 : index
    %c0_17 = arith.constant 0 : index
    %21 = vector.load %arg8[%c0_16, %c0_17] : memref<512x4xf32, #tpu.memory_space<vmem>>, vector<512x4xf32>
    tpu.vector_store %arg8[%c0_16, %c0_17], %20 {strides = array<i32>} : memref<512x4xf32, #tpu.memory_space<vmem>>, vector<512x4xf32>,
    return
  }
  func.func @transform_0(%arg0: i32) -> (i32, i32) {
    %c0_i32 = arith.constant 0 : i32
    %c0_i32_0 = arith.constant 0 : i32
    return %arg0, %c0_i32 : i32, i32
  }
  func.func @transform_1(%arg0: i32) -> (i32, i32) {
    %c0_i32 = arith.constant 0 : i32
    %c0_i32_0 = arith.constant 0 : i32
    %c0_i32_1 = arith.constant 0 : i32
    return %c0_i32, %c0_i32_0 : i32, i32
  }
  func.func @transform_2(%arg0: i32) -> (i32, i32) {
    %c0_i32 = arith.constant 0 : i32
    %c0_i32_0 = arith.constant 0 : i32
    %c0_i32_1 = arith.constant 0 : i32
    return %c0_i32, %c0_i32_0 : i32, i32
  }
  func.func @transform_3(%arg0: i32) -> (i32, i32) {
    %c0_i32 = arith.constant 0 : i32
    %c0_i32_0 = arith.constant 0 : i32
    %c0_i32_1 = arith.constant 0 : i32
    return %c0_i32, %c0_i32_0 : i32, i32
  }
  func.func @transform_4(%arg0: i32) -> (i32, i32) {
    %c0_i32 = arith.constant 0 : i32
    %c0_i32_0 = arith.constant 0 : i32
    %c0_i32_1 = arith.constant 0 : i32
    return %c0_i32, %c0_i32_0 : i32, i32
  }
  func.func @transform_5(%arg0: i32) -> (i32, i32) {
    %c0_i32 = arith.constant 0 : i32
    %c0_i32_0 = arith.constant 0 : i32
    %c0_i32_1 = arith.constant 0 : i32
    return %c0_i32, %c0_i32_0 : i32, i32
  }
  func.func @transform_6(%arg0: i32) -> (i32, i32) {
    %c0_i32 = arith.constant 0 : i32
    %c0_i32_0 = arith.constant 0 : i32
    %c0_i32_1 = arith.constant 0 : i32
    return %c0_i32, %c0_i32_0 : i32, i32
  }
  func.func @transform_7(%arg0: i32) -> (i32, i32) {
    %c0_i32 = arith.constant 0 : i32
    %c0_i32_0 = arith.constant 0 : i32
    return %arg0, %c0_i32 : i32, i32
  }
}

</mosaic_0001>

<llo_original>
// kernel: attention_mlp_forward.3
$region0: #{attention_mlp_forward.3}
  #allocation0 [shape = 'u32[]', space=smem, size = 0x4, offset = 0x4, fixed_abs, tag = 'smem constant byte address 0x4 - core index']
  #allocation1 [shape = 'u32[144,128]{1,0:T(1,128)}', space=vmem, size = 0x12000, scoped, tag = 'internal scratch']
  %s0 = inlined_call_operand.vmem [shape: f32[1024,128], index: 0, kind: input, shape index: {}]
  %s1 = inlined_call_operand.vmem [shape: f32[128,64], index: 1, kind: input, shape index: {}]
  %s2 = inlined_call_operand.vmem [shape: f32[1,64], index: 2, kind: input, shape index: {}]
  %s3 = inlined_call_operand.vmem [shape: f32[1,64], index: 3, kind: input, shape index: {}]
  %s4 = inlined_call_operand.vmem [shape: f32[1,64], index: 4, kind: input, shape index: {}]
  %s5 = inlined_call_operand.vmem [shape: f32[64,4], index: 5, kind: input, shape index: {}]
  %s6 = inlined_call_operand.vmem [shape: f32[1,4], index: 6, kind: input, shape index: {}]
  %s7 = inlined_call_operand.vmem [shape: f32[1024,4], index: 7, kind: output, shape index: {}]
  %s8 = sld [smem:[#allocation0]]
  $region61: #{attention_mlp_forward.3} parent=0
    _
  %s10 = ssub.s32 1, %s8
  %s11 = scalar_select 0, %s10, %s8
  loop: start=0, step=1, limit=4
  $region2: #{attention_mlp_forward.3} parent=0 // loop_pre_header
    _
  $region3: #{attention_mlp_forward.3} parent=0 // loop_header
    %s13 = sphi 0, %s17
    %p14 = scmp.ge.s32.totalorder %s13, 4
    %s23 = sphi 0, %s25
    %s26 = sphi 0, %s23
    %s27 = sphi 0, %s26
    %s43 = sphi 0, %s27
    %s47 = sphi 0, %s47
    %s49 = sphi 0, %s47
    %s50 = sphi 0, %s49
    %s64 = sphi 0, %s50
    %s68 = sphi 0, %s68
    %s70 = sphi 0, %s68
    %s71 = sphi 0, %s70
    %s85 = sphi 0, %s71
    %s89 = sphi 0, %s89
    %s91 = sphi 0, %s89
    %s92 = sphi 0, %s91
    %s106 = sphi 0, %s92
    %s110 = sphi 0, %s110
    %s112 = sphi 0, %s110
    %s113 = sphi 0, %s112
    %s127 = sphi 0, %s113
    %s131 = sphi 0, %s131
    %s133 = sphi 0, %s131
    %s134 = sphi 0, %s133
    %s148 = sphi 0, %s134
    %s152 = sphi 0, %s152
    %s154 = sphi 0, %s152
    %s155 = sphi 0, %s154
    %s169 = sphi 0, %s155
    %s175 = sphi 0, %s177
    %s178 = sphi 0, %s175
    %s179 = sphi 0, %s178
    %s195 = sphi 0, %s179
  $region4: #{attention_mlp_forward.3} parent=0 // loop_header_branch
    %16 = sbr.rel (%p14) target = $region8
  $region5: #{attention_mlp_forward.3} parent=0 // loop_body
    %s18 = ssub.s32 %s13, 1
    %s19 = ssub.s32 %s13, 2
    %s20 = sadd.s32 %s13, 1
    %s21 = ssub.s32 %s13, %s20
    %p22 = scmp.eq.s32.totalorder %s21, 0
    %s24 = sadd.s32 %s23, 1
    %s25 = scalar_select %p22, %s23, %s24
    %p28 = pneg %p22
    %p29 = scmp.eq.s32.totalorder %s13, 1
    %p30 = por %p28, %p29
    %p31 = scmp.ne.s32.totalorder %s23, %s26
    %p32 = scmp.eq.s32.totalorder %s13, 0
    %p33 = por %p31, %p32
    %p34 = scmp.ne.s32.totalorder %s23, %s26
    %p35 = scmp.eq.s32.totalorder %s18, 1
    %p36 = por %p34, %p35
    %p37 = scmp.ne.s32.totalorder %s26, %s27
    %p38 = scmp.eq.s32.totalorder %s18, 0
    %p39 = por %p37, %p38
    %p40 = scmp.ne.s32.totalorder %s26, %s27
    %p41 = scmp.eq.s32.totalorder %s19, 1
    %p42 = por %p40, %p41
    %p44 = scmp.ne.s32.totalorder %s27, %s43
    %p45 = scmp.eq.s32.totalorder %s19, 0
    %p46 = por %p44, %p45
    %s48 = sadd.s32 %s47, 1
    %p51 = scmp.eq.s32.totalorder %s13, 1
    %p52 = scmp.ne.s32.totalorder %s47, %s49
    %p53 = scmp.eq.s32.totalorder %s13, 0
    %p54 = por %p52, %p53
    %p55 = scmp.ne.s32.totalorder %s47, %s49
    %p56 = scmp.eq.s32.totalorder %s18, 1
    %p57 = por %p55, %p56
    %p58 = scmp.ne.s32.totalorder %s49, %s50
    %p59 = scmp.eq.s32.totalorder %s18, 0
    %p60 = por %p58, %p59
    %p61 = scmp.ne.s32.totalorder %s49, %s50
    %p62 = scmp.eq.s32.totalorder %s19, 1
    %p63 = por %p61, %p62
    %p65 = scmp.ne.s32.totalorder %s50, %s64
    %p66 = scmp.eq.s32.totalorder %s19, 0
    %p67 = por %p65, %p66
    %s69 = sadd.s32 %s68, 1
    %p72 = scmp.eq.s32.totalorder %s13, 1
    %p73 = scmp.ne.s32.totalorder %s68, %s70
    %p74 = scmp.eq.s32.totalorder %s13, 0
    %p75 = por %p73, %p74
    %p76 = scmp.ne.s32.totalorder %s68, %s70
    %p77 = scmp.eq.s32.totalorder %s18, 1
    %p78 = por %p76, %p77
    %p79 = scmp.ne.s32.totalorder %s70, %s71
    %p80 = scmp.eq.s32.totalorder %s18, 0
    %p81 = por %p79, %p80
    %p82 = scmp.ne.s32.totalorder %s70, %s71
    %p83 = scmp.eq.s32.totalorder %s19, 1
    %p84 = por %p82, %p83
    %p86 = scmp.ne.s32.totalorder %s71, %s85
    %p87 = scmp.eq.s32.totalorder %s19, 0
    %p88 = por %p86, %p87
    %s90 = sadd.s32 %s89, 1
    %p93 = scmp.eq.s32.totalorder %s13, 1
    %p94 = scmp.ne.s32.totalorder %s89, %s91
    %p95 = scmp.eq.s32.totalorder %s13, 0
    %p96 = por %p94, %p95
    %p97 = scmp.ne.s32.totalorder %s89, %s91
    %p98 = scmp.eq.s32.totalorder %s18, 1
    %p99 = por %p97, %p98
    %p100 = scmp.ne.s32.totalorder %s91, %s92
    %p101 = scmp.eq.s32.totalorder %s18, 0
    %p102 = por %p100, %p101
    %p103 = scmp.ne.s32.totalorder %s91, %s92
    %p104 = scmp.eq.s32.totalorder %s19, 1
    %p105 = por %p103, %p104
    %p107 = scmp.ne.s32.totalorder %s92, %s106
    %p108 = scmp.eq.s32.totalorder %s19, 0
    %p109 = por %p107, %p108
    %s111 = sadd.s32 %s110, 1
    %p114 = scmp.eq.s32.totalorder %s13, 1
    %p115 = scmp.ne.s32.totalorder %s110, %s112
    %p116 = scmp.eq.s32.totalorder %s13, 0
    %p117 = por %p115, %p116
    %p118 = scmp.ne.s32.totalorder %s110, %s112
    %p119 = scmp.eq.s32.totalorder %s18, 1
    %p120 = por %p118, %p119
    %p121 = scmp.ne.s32.totalorder %s112, %s113
    %p122 = scmp.eq.s32.totalorder %s18, 0
    %p123 = por %p121, %p122
    %p124 = scmp.ne.s32.totalorder %s112, %s113
    %p125 = scmp.eq.s32.totalorder %s19, 1
    %p126 = por %p124, %p125
    %p128 = scmp.ne.s32.totalorder %s113, %s127
    %p129 = scmp.eq.s32.totalorder %s19, 0
    %p130 = por %p128, %p129
    %s132 = sadd.s32 %s131, 1
    %p135 = scmp.eq.s32.totalorder %s13, 1
    %p136 = scmp.ne.s32.totalorder %s131, %s133
    %p137 = scmp.eq.s32.totalorder %s13, 0
    %p138 = por %p136, %p137
    %p139 = scmp.ne.s32.totalorder %s131, %s133
    %p140 = scmp.eq.s32.totalorder %s18, 1
    %p141 = por %p139, %p140
    %p142 = scmp.ne.s32.totalorder %s133, %s134
    %p143 = scmp.eq.s32.totalorder %s18, 0
    %p144 = por %p142, %p143
    %p145 = scmp.ne.s32.totalorder %s133, %s134
    %p146 = scmp.eq.s32.totalorder %s19, 1
    %p147 = por %p145, %p146
    %p149 = scmp.ne.s32.totalorder %s134, %s148
    %p150 = scmp.eq.s32.totalorder %s19, 0
    %p151 = por %p149, %p150
    %s153 = sadd.s32 %s152, 1
    %p156 = scmp.eq.s32.totalorder %s13, 1
    %p157 = scmp.ne.s32.totalorder %s152, %s154
    %p158 = scmp.eq.s32.totalorder %s13, 0
    %p159 = por %p157, %p158
    %p160 = scmp.ne.s32.totalorder %s152, %s154
    %p161 = scmp.eq.s32.totalorder %s18, 1
    %p162 = por %p160, %p161
    %p163 = scmp.ne.s32.totalorder %s154, %s155
    %p164 = scmp.eq.s32.totalorder %s18, 0
    %p165 = por %p163, %p164
    %p166 = scmp.ne.s32.totalorder %s154, %s155
    %p167 = scmp.eq.s32.totalorder %s19, 1
    %p168 = por %p166, %p167
    %p170 = scmp.ne.s32.totalorder %s155, %s169
    %p171 = scmp.eq.s32.totalorder %s19, 0
    %p172 = por %p170, %p171
    %s173 = ssub.s32 %s13, %s20
    %p174 = scmp.eq.s32.totalorder %s173, 0
    %s176 = sadd.s32 %s175, 1
    %s177 = scalar_select %p174, %s175, %s176
    %p180 = pneg %p174
    %p181 = scmp.eq.s32.totalorder %s13, 1
    %p182 = por %p180, %p181
    %p183 = scmp.ne.s32.totalorder %s175, %s178
    %p184 = scmp.eq.s32.totalorder %s13, 0
    %p185 = por %p183, %p184
    %p186 = scmp.ne.s32.totalorder %s175, %s178
    %p187 = scmp.eq.s32.totalorder %s18, 1
    %p188 = por %p186, %p187
    %p189 = scmp.ne.s32.totalorder %s178, %s179
    %p190 = scmp.eq.s32.totalorder %s18, 0
    %p191 = por %p189, %p190
    %p192 = scmp.ne.s32.totalorder %s178, %s179
    %p193 = scmp.eq.s32.totalorder %s19, 1
    %p194 = por %p192, %p193
    %p196 = scmp.ne.s32.totalorder %s179, %s195
    %p197 = scmp.eq.s32.totalorder %s19, 0
    %p198 = por %p196, %p197
    %p199 = scmp.le.s32.totalorder 1, %s13
    %p200 = scmp.lt.s32.totalorder %s13, 3
    %p201 = pnand %p199, %p200
    %p202 = pneg %p201
    // Predicated region
    $region9: #{attention_mlp_forward.3} parent=5 // pred_check
      _
    $region10: #{attention_mlp_forward.3} parent=5 // pred_check_branch
      %204 = sbr.rel (%p201) target = $region12
    $region11: #{attention_mlp_forward.3} parent=5 // pred_region
      %s205 = ssub.s32 %s13, 1
      // Predicated region
      $region13: #{attention_mlp_forward.3} parent=11 // pred_check
        %p206 = pneg %p60
      $region14: #{attention_mlp_forward.3} parent=11 // pred_check_branch
        %208 = sbr.rel (%p206) target = $region16
      $region15: #{attention_mlp_forward.3} parent=11 // pred_region
        _
      $region16: #{attention_mlp_forward.3} parent=11 // pred_fallthru
        _
      // Predicated region
      $region17: #{attention_mlp_forward.3} parent=11 // pred_check
        %p209 = pneg %p81
      $region18: #{attention_mlp_forward.3} parent=11 // pred_check_branch
        %211 = sbr.rel (%p209) target = $region20
      $region19: #{attention_mlp_forward.3} parent=11 // pred_region
        _
      $region20: #{attention_mlp_forward.3} parent=11 // pred_fallthru
        _
      // Predicated region
      $region21: #{attention_mlp_forward.3} parent=11 // pred_check
        %p212 = pneg %p102
      $region22: #{attention_mlp_forward.3} parent=11 // pred_check_branch
        %214 = sbr.rel (%p212) target = $region24
      $region23: #{attention_mlp_forward.3} parent=11 // pred_region
        _
      $region24: #{attention_mlp_forward.3} parent=11 // pred_fallthru
        _
      // Predicated region
      $region25: #{attention_mlp_forward.3} parent=11 // pred_check
        %p215 = pneg %p123
      $region26: #{attention_mlp_forward.3} parent=11 // pred_check_branch
        %217 = sbr.rel (%p215) target = $region28
      $region27: #{attention_mlp_forward.3} parent=11 // pred_region
        _
      $region28: #{attention_mlp_forward.3} parent=11 // pred_fallthru
        _
      // Predicated region
      $region29: #{attention_mlp_forward.3} parent=11 // pred_check
        %p218 = pneg %p144
      $region30: #{attention_mlp_forward.3} parent=11 // pred_check_branch
        %220 = sbr.rel (%p218) target = $region32
      $region31: #{attention_mlp_forward.3} parent=11 // pred_region
        _
      $region32: #{attention_mlp_forward.3} parent=11 // pred_fallthru
        _
      // Predicated region
      $region33: #{attention_mlp_forward.3} parent=11 // pred_check
        %p221 = pneg %p165
      $region34: #{attention_mlp_forward.3} parent=11 // pred_check_branch
        %223 = sbr.rel (%p221) target = $region36
      $region35: #{attention_mlp_forward.3} parent=11 // pred_region
        _
      $region36: #{attention_mlp_forward.3} parent=11 // pred_fallthru
        _
    $region12: #{attention_mlp_forward.3} parent=5 // pred_fallthru
      _
    %p224 = scmp.lt.s32.totalorder %s13, 2
    // Predicated region
    $region37: #{attention_mlp_forward.3} parent=5 // pred_check
      %p225 = pneg %p224
    $region38: #{attention_mlp_forward.3} parent=5 // pred_check_branch
      %227 = sbr.rel (%p225) target = $region40
    $region39: #{attention_mlp_forward.3} parent=5 // pred_region
      // Predicated region
      $region41: #{attention_mlp_forward.3} parent=39 // pred_check
        %p228 = pneg %p33
      $region42: #{attention_mlp_forward.3} parent=39 // pred_check_branch
        %230 = sbr.rel (%p228) target = $region44
      $region43: #{attention_mlp_forward.3} parent=39 // pred_region
        %s231 = smul.u32 64, %s13
        %p232 = scmp.lt.s32.totalorder %s231, 127
        %s233 = scalar_select %p232, %s231, 127
        %s234 = smul.addr %s233, 8
        %s235 = scalar_lea.vmem %s0, %s234
        %s236 = smul.u32 64, %s13
      $region44: #{attention_mlp_forward.3} parent=39 // pred_fallthru
        _
    $region40: #{attention_mlp_forward.3} parent=5 // pred_fallthru
      _
    %p237 = scmp.le.s32.totalorder 1, %s13
    %p238 = scmp.lt.s32.totalorder %s13, 3
    %p239 = pnand %p237, %p238
    %p240 = pneg %p239
    // Predicated region
    $region45: #{attention_mlp_forward.3} parent=5 // pred_check
      _
    $region46: #{attention_mlp_forward.3} parent=5 // pred_check_branch
      %242 = sbr.rel (%p239) target = $region48
    $region47: #{attention_mlp_forward.3} parent=5 // pred_region
      %s243 = ssub.s32 %s13, 1
      %s244 = smul.u32 64, %s18
      %p245 = scmp.lt.s32.totalorder %s244, 127
      %s246 = scalar_select %p245, %s244, 127
      %s247 = smul.addr %s246, 8
      %s248 = scalar_lea.vmem %s0, %s247
      %p249 = pneg %p39
      %p250 = pneg %p36
      %p251 = pneg %p60
      %p252 = pneg %p57
      %p253 = pneg %p81
      %p254 = pneg %p78
      %p255 = pneg %p102
      %p256 = pneg %p99
      %p257 = pneg %p123
      %p258 = pneg %p120
      %p259 = pneg %p144
      %p260 = pneg %p141
      %p261 = pneg %p165
      %p262 = pneg %p162
      %p263 = pneg %p191
      %p264 = pneg %p188
      %s265 = smul.u32 64, %s18
      %p266 = scmp.lt.s32.totalorder %s265, 127
      %s267 = scalar_select %p266, %s265, 127
      %s268 = smul.addr %s267, 8
      %s269 = scalar_lea.vmem %s7, %s268
      %s270 = smul.u32 64, %s18
      %p271 = scmp.lt.s32.totalorder %s270, 127
      %s272 = scalar_select %p271, %s270, 127
      %s273 = smul.addr %s272, 8
      %s274 = scalar_lea.vmem %s0, %s273
      %s275 = smul.u32 64, %s18
      %s276 = smul.u32 64, %s18
      %p277 = scmp.lt.s32.totalorder %s276, 127
      %s278 = scalar_select %p277, %s276, 127
      %s279 = smul.addr %s278, 8
      %s280 = scalar_lea.vmem %s7, %s279
      %s281 = smul.u32 64, %s18
      %v282 = vld [vmem:[%s274] sm:$0xff]
      %v283 = vld [vmem:[%s274 + $0x8] sm:$0xff]
      %v284 = vld [vmem:[%s274 + $0x10] sm:$0xff]
      %v285 = vld [vmem:[%s274 + $0x18] sm:$0xff]
      %v286 = vld [vmem:[%s274 + $0x20] sm:$0xff]
      %v287 = vld [vmem:[%s274 + $0x28] sm:$0xff]
      %v288 = vld [vmem:[%s274 + $0x30] sm:$0xff]
      %v289 = vld [vmem:[%s274 + $0x38] sm:$0xff]
      %v290 = vld [vmem:[%s274 + $0x40] sm:$0xff]
      %v291 = vld [vmem:[%s274 + $0x48] sm:$0xff]
      %v292 = vld [vmem:[%s274 + $0x50] sm:$0xff]
      %v293 = vld [vmem:[%s274 + $0x58] sm:$0xff]
      %v294 = vld [vmem:[%s274 + $0x60] sm:$0xff]
      %v295 = vld [vmem:[%s274 + $0x68] sm:$0xff]
      %v296 = vld [vmem:[%s274 + $0x70] sm:$0xff]
      %v297 = vld [vmem:[%s274 + $0x78] sm:$0xff]
      %v298 = vld [vmem:[%s274 + $0x80] sm:$0xff]
      %v299 = vld [vmem:[%s274 + $0x88] sm:$0xff]
      %v300 = vld [vmem:[%s274 + $0x90] sm:$0xff]
      %v301 = vld [vmem:[%s274 + $0x98] sm:$0xff]
      %v302 = vld [vmem:[%s274 + $0xa0] sm:$0xff]
      %v303 = vld [vmem:[%s274 + $0xa8] sm:$0xff]
      %v304 = vld [vmem:[%s274 + $0xb0] sm:$0xff]
      %v305 = vld [vmem:[%s274 + $0xb8] sm:$0xff]
      %v306 = vld [vmem:[%s274 + $0xc0] sm:$0xff]
      %v307 = vld [vmem:[%s274 + $0xc8] sm:$0xff]
      %v308 = vld [vmem:[%s274 + $0xd0] sm:$0xff]
      %v309 = vld [vmem:[%s274 + $0xd8] sm:$0xff]
      %v310 = vld [vmem:[%s274 + $0xe0] sm:$0xff]
      %v311 = vld [vmem:[%s274 + $0xe8] sm:$0xff]
      %v312 = vld [vmem:[%s274 + $0xf0] sm:$0xff]
      %v313 = vld [vmem:[%s274 + $0xf8] sm:$0xff]
      %v314 = vld [vmem:[%s274 + $0x100] sm:$0xff]
      %v315 = vld [vmem:[%s274 + $0x108] sm:$0xff]
      %v316 = vld [vmem:[%s274 + $0x110] sm:$0xff]
      %v317 = vld [vmem:[%s274 + $0x118] sm:$0xff]
      %v318 = vld [vmem:[%s274 + $0x120] sm:$0xff]
      %v319 = vld [vmem:[%s274 + $0x128] sm:$0xff]
      %v320 = vld [vmem:[%s274 + $0x130] sm:$0xff]
      %v321 = vld [vmem:[%s274 + $0x138] sm:$0xff]
      %v322 = vld [vmem:[%s274 + $0x140] sm:$0xff]
      %v323 = vld [vmem:[%s274 + $0x148] sm:$0xff]
      %v324 = vld [vmem:[%s274 + $0x150] sm:$0xff]
      %v325 = vld [vmem:[%s274 + $0x158] sm:$0xff]
      %v326 = vld [vmem:[%s274 + $0x160] sm:$0xff]
      %v327 = vld [vmem:[%s274 + $0x168] sm:$0xff]
      %v328 = vld [vmem:[%s274 + $0x170] sm:$0xff]
      %v329 = vld [vmem:[%s274 + $0x178] sm:$0xff]
      %v330 = vld [vmem:[%s274 + $0x180] sm:$0xff]
      %v331 = vld [vmem:[%s274 + $0x188] sm:$0xff]
      %v332 = vld [vmem:[%s274 + $0x190] sm:$0xff]
      %v333 = vld [vmem:[%s274 + $0x198] sm:$0xff]
      %v334 = vld [vmem:[%s274 + $0x1a0] sm:$0xff]
      %v335 = vld [vmem:[%s274 + $0x1a8] sm:$0xff]
      %v336 = vld [vmem:[%s274 + $0x1b0] sm:$0xff]
      %v337 = vld [vmem:[%s274 + $0x1b8] sm:$0xff]
      %v338 = vld [vmem:[%s274 + $0x1c0] sm:$0xff]
      %v339 = vld [vmem:[%s274 + $0x1c8] sm:$0xff]
      %v340 = vld [vmem:[%s274 + $0x1d0] sm:$0xff]
      %v341 = vld [vmem:[%s274 + $0x1d8] sm:$0xff]
      %v342 = vld [vmem:[%s274 + $0x1e0] sm:$0xff]
      %v343 = vld [vmem:[%s274 + $0x1e8] sm:$0xff]
      %v344 = vld [vmem:[%s274 + $0x1f0] sm:$0xff]
      %v345 = vld [vmem:[%s274 + $0x1f8] sm:$0xff]
      %v346 = vld [vmem:[%s1] sm:$0xff]
      %v347 = vld [vmem:[%s1 + $0x8] sm:$0xff]
      %v348 = vld [vmem:[%s1 + $0x10] sm:$0xff]
      %v349 = vld [vmem:[%s1 + $0x18] sm:$0xff]
      %v350 = vld [vmem:[%s1 + $0x20] sm:$0xff]
      %v351 = vld [vmem:[%s1 + $0x28] sm:$0xff]
      %v352 = vld [vmem:[%s1 + $0x30] sm:$0xff]
      %v353 = vld [vmem:[%s1 + $0x38] sm:$0xff]
      %v354 = vld [vmem:[%s1 + $0x40] sm:$0xff]
      %v355 = vld [vmem:[%s1 + $0x48] sm:$0xff]
      %v356 = vld [vmem:[%s1 + $0x50] sm:$0xff]
      %v357 = vld [vmem:[%s1 + $0x58] sm:$0xff]
      %v358 = vld [vmem:[%s1 + $0x60] sm:$0xff]
      %v359 = vld [vmem:[%s1 + $0x68] sm:$0xff]
      %v360 = vld [vmem:[%s1 + $0x70] sm:$0xff]
      %v361 = vld [vmem:[%s1 + $0x78] sm:$0xff]
      %v362 = vld [vmem:[%s2] sm:$0x1]
      %v364 = vlaneseq
      %v365 = vshrl.u32 %v364, 7
      %v366 = vsub.s32 0, %v365
      %v367 = vrot.slane %v362, %v366
      %369 = vmatprep.subr.mxu0 0.0
      %370 = vmatpush1.msra.mxu0 %v361
      %371 = vmatprep.subr.mxu0 0.0
      %372 = vmatpush1.msra.mxu0 %v360
      %373 = vmatprep.subr.mxu0 0.0
      %374 = vmatpush1.msra.mxu0 %v359
      %375 = vmatprep.subr.mxu0 0.0
      %376 = vmatpush1.msra.mxu0 %v358
      %377 = vmatprep.subr.mxu0 0.0
      %378 = vmatpush1.msra.mxu0 %v357
      %379 = vmatprep.subr.mxu0 0.0
      %380 = vmatpush1.msra.mxu0 %v356
      %381 = vmatprep.subr.mxu0 0.0
      %382 = vmatpush1.msra.mxu0 %v355
      %383 = vmatprep.subr.mxu0 0.0
      %384 = vmatpush1.msra.mxu0 %v354
      %385 = vmatprep.subr.mxu0 0.0
      %386 = vmatpush1.msra.mxu0 %v353
      %387 = vmatprep.subr.mxu0 0.0
      %388 = vmatpush1.msra.mxu0 %v352
      %389 = vmatprep.subr.mxu0 0.0
      %390 = vmatpush1.msra.mxu0 %v351
      %391 = vmatprep.subr.mxu0 0.0
      %392 = vmatpush1.msra.mxu0 %v350
      %393 = vmatprep.subr.mxu0 0.0
      %394 = vmatpush1.msra.mxu0 %v349
      %395 = vmatprep.subr.mxu0 0.0
      %396 = vmatpush1.msra.mxu0 %v348
      %397 = vmatprep.subr.mxu0 0.0
      %398 = vmatpush1.msra.mxu0 %v347
      %399 = vmatprep.subr.mxu0 0.0
      %400 = vmatpush1.msra.mxu0 %v346
      %401 = vmatprep.subr.mxu0 0.0
      %402 = vmatpush2.msra.mxu0 0.0
      %403 = vmatprep.subr.mxu0 0.0
      %404 = vmatpush2.msra.mxu0 0.0
      %405 = vmatprep.subr.mxu0 0.0
      %406 = vmatpush2.msra.mxu0 0.0
      %407 = vmatprep.subr.mxu0 0.0
      %408 = vmatpush2.msra.mxu0 0.0
      %409 = vmatprep.subr.mxu0 0.0
      %410 = vmatpush2.msra.mxu0 0.0
      %411 = vmatprep.subr.mxu0 0.0
      %412 = vmatpush2.msra.mxu0 0.0
      %413 = vmatprep.subr.mxu0 0.0
      %414 = vmatpush2.msra.mxu0 0.0
      %415 = vmatprep.subr.mxu0 0.0
      %416 = vmatpush2.msra.mxu0 0.0
      %417 = vmatprep.subr.mxu0 0.0
      %418 = vmatpush2.msra.mxu0 0.0
      %419 = vmatprep.subr.mxu0 0.0
      %420 = vmatpush2.msra.mxu0 0.0
      %421 = vmatprep.subr.mxu0 0.0
      %422 = vmatpush2.msra.mxu0 0.0
      %423 = vmatprep.subr.mxu0 0.0
      %424 = vmatpush2.msra.mxu0 0.0
      %425 = vmatprep.subr.mxu0 0.0
      %426 = vmatpush2.msra.mxu0 0.0
      %427 = vmatprep.subr.mxu0 0.0
      %428 = vmatpush2.msra.mxu0 0.0
      %429 = vmatprep.subr.mxu0 0.0
      %430 = vmatpush2.msra.mxu0 0.0
      %431 = vmatprep.subr.mxu0 0.0
      %432 = vmatpush2.msra.mxu0 0.0
      %433 = vmatprep.mubr.f32.mxu0 0.0
      %434 = vmatmul.mubr.f32.gmra.mxu0 %v282
      %v435 = vpop.f32.mrf.mxu0
      %v436 = vadd.f32 %v367, %v435
      %v437 = vpop.f32.mrf.mxu0
      %438 = vmatprep.mubr.f32.mxu0 0.0
      %439 = vmatmul.mubr.f32.gmra.mxu0 %v283
      %v440 = vpop.f32.mrf.mxu0
      %v441 = vadd.f32 %v367, %v440
      %v442 = vpop.f32.mrf.mxu0
      %443 = vmatprep.mubr.f32.mxu0 0.0
      %444 = vmatmul.mubr.f32.gmra.mxu0 %v284
      %v445 = vpop.f32.mrf.mxu0
      %v446 = vadd.f32 %v367, %v445
      %v447 = vpop.f32.mrf.mxu0
      %448 = vmatprep.mubr.f32.mxu0 0.0
      %449 = vmatmul.mubr.f32.gmra.mxu0 %v285
      %v450 = vpop.f32.mrf.mxu0
      %v451 = vadd.f32 %v367, %v450
      %v452 = vpop.f32.mrf.mxu0
      %453 = vmatprep.mubr.f32.mxu0 0.0
      %454 = vmatmul.mubr.f32.gmra.mxu0 %v286
      %v455 = vpop.f32.mrf.mxu0
      %v456 = vadd.f32 %v367, %v455
      %v457 = vpop.f32.mrf.mxu0
      %458 = vmatprep.mubr.f32.mxu0 0.0
      %459 = vmatmul.mubr.f32.gmra.mxu0 %v287
      %v460 = vpop.f32.mrf.mxu0
      %v461 = vadd.f32 %v367, %v460
      %v462 = vpop.f32.mrf.mxu0
      %463 = vmatprep.mubr.f32.mxu0 0.0
      %464 = vmatmul.mubr.f32.gmra.mxu0 %v288
      %v465 = vpop.f32.mrf.mxu0
      %v466 = vadd.f32 %v367, %v465
      %v467 = vpop.f32.mrf.mxu0
      %468 = vmatprep.mubr.f32.mxu0 0.0
      %469 = vmatmul.mubr.f32.gmra.mxu0 %v289
      %v470 = vpop.f32.mrf.mxu0
      %v471 = vadd.f32 %v367, %v470
      %v472 = vpop.f32.mrf.mxu0
      %473 = vmatprep.mubr.f32.mxu0 0.0
      %474 = vmatmul.mubr.f32.gmra.mxu0 %v290
      %v475 = vpop.f32.mrf.mxu0
      %v476 = vadd.f32 %v367, %v475
      %v477 = vpop.f32.mrf.mxu0
      %478 = vmatprep.mubr.f32.mxu0 0.0
      %479 = vmatmul.mubr.f32.gmra.mxu0 %v291
      %v480 = vpop.f32.mrf.mxu0
      %v481 = vadd.f32 %v367, %v480
      %v482 = vpop.f32.mrf.mxu0
      %483 = vmatprep.mubr.f32.mxu0 0.0
      %484 = vmatmul.mubr.f32.gmra.mxu0 %v292
      %v485 = vpop.f32.mrf.mxu0
      %v486 = vadd.f32 %v367, %v485
      %v487 = vpop.f32.mrf.mxu0
      %488 = vmatprep.mubr.f32.mxu0 0.0
      %489 = vmatmul.mubr.f32.gmra.mxu0 %v293
      %v490 = vpop.f32.mrf.mxu0
      %v491 = vadd.f32 %v367, %v490
      %v492 = vpop.f32.mrf.mxu0
      %493 = vmatprep.mubr.f32.mxu0 0.0
      %494 = vmatmul.mubr.f32.gmra.mxu0 %v294
      %v495 = vpop.f32.mrf.mxu0
      %v496 = vadd.f32 %v367, %v495
      %v497 = vpop.f32.mrf.mxu0
      %498 = vmatprep.mubr.f32.mxu0 0.0
      %499 = vmatmul.mubr.f32.gmra.mxu0 %v295
      %v500 = vpop.f32.mrf.mxu0
      %v501 = vadd.f32 %v367, %v500
      %v502 = vpop.f32.mrf.mxu0
      %503 = vmatprep.mubr.f32.mxu0 0.0
      %504 = vmatmul.mubr.f32.gmra.mxu0 %v296
      %v505 = vpop.f32.mrf.mxu0
      %v506 = vadd.f32 %v367, %v505
      %v507 = vpop.f32.mrf.mxu0
      %508 = vmatprep.mubr.f32.mxu0 0.0
      %509 = vmatmul.mubr.f32.gmra.mxu0 %v297
      %v510 = vpop.f32.mrf.mxu0
      %v511 = vadd.f32 %v367, %v510
      %v512 = vpop.f32.mrf.mxu0
      %513 = vmatprep.mubr.f32.mxu0 0.0
      %514 = vmatmul.mubr.f32.gmra.mxu0 %v298
      %v515 = vpop.f32.mrf.mxu0
      %v516 = vadd.f32 %v367, %v515
      %v517 = vpop.f32.mrf.mxu0
      %518 = vmatprep.mubr.f32.mxu0 0.0
      %519 = vmatmul.mubr.f32.gmra.mxu0 %v299
      %v520 = vpop.f32.mrf.mxu0
      %v521 = vadd.f32 %v367, %v520
      %v522 = vpop.f32.mrf.mxu0
      %523 = vmatprep.mubr.f32.mxu0 0.0
      %524 = vmatmul.mubr.f32.gmra.mxu0 %v300
      %v525 = vpop.f32.mrf.mxu0
      %v526 = vadd.f32 %v367, %v525
      %v527 = vpop.f32.mrf.mxu0
      %528 = vmatprep.mubr.f32.mxu0 0.0
      %529 = vmatmul.mubr.f32.gmra.mxu0 %v301
      %v530 = vpop.f32.mrf.mxu0
      %v531 = vadd.f32 %v367, %v530
      %v532 = vpop.f32.mrf.mxu0
      %533 = vmatprep.mubr.f32.mxu0 0.0
      %534 = vmatmul.mubr.f32.gmra.mxu0 %v302
      %v535 = vpop.f32.mrf.mxu0
      %v536 = vadd.f32 %v367, %v535
      %v537 = vpop.f32.mrf.mxu0
      %538 = vmatprep.mubr.f32.mxu0 0.0
      %539 = vmatmul.mubr.f32.gmra.mxu0 %v303
      %v540 = vpop.f32.mrf.mxu0
      %v541 = vadd.f32 %v367, %v540
      %v542 = vpop.f32.mrf.mxu0
      %543 = vmatprep.mubr.f32.mxu0 0.0
      %544 = vmatmul.mubr.f32.gmra.mxu0 %v304
      %v545 = vpop.f32.mrf.mxu0
      %v546 = vadd.f32 %v367, %v545
      %v547 = vpop.f32.mrf.mxu0
      %548 = vmatprep.mubr.f32.mxu0 0.0
      %549 = vmatmul.mubr.f32.gmra.mxu0 %v305
      %v550 = vpop.f32.mrf.mxu0
      %v551 = vadd.f32 %v367, %v550
      %v552 = vpop.f32.mrf.mxu0
      %553 = vmatprep.mubr.f32.mxu0 0.0
      %554 = vmatmul.mubr.f32.gmra.mxu0 %v306
      %v555 = vpop.f32.mrf.mxu0
      %v556 = vadd.f32 %v367, %v555
      %v557 = vpop.f32.mrf.mxu0
      %558 = vmatprep.mubr.f32.mxu0 0.0
      %559 = vmatmul.mubr.f32.gmra.mxu0 %v307
      %v560 = vpop.f32.mrf.mxu0
      %v561 = vadd.f32 %v367, %v560
      %v562 = vpop.f32.mrf.mxu0
      %563 = vmatprep.mubr.f32.mxu0 0.0
      %564 = vmatmul.mubr.f32.gmra.mxu0 %v308
      %v565 = vpop.f32.mrf.mxu0
      %v566 = vadd.f32 %v367, %v565
      %v567 = vpop.f32.mrf.mxu0
      %568 = vmatprep.mubr.f32.mxu0 0.0
      %569 = vmatmul.mubr.f32.gmra.mxu0 %v309
      %v570 = vpop.f32.mrf.mxu0
      %v571 = vadd.f32 %v367, %v570
      %v572 = vpop.f32.mrf.mxu0
      %573 = vmatprep.mubr.f32.mxu0 0.0
      %574 = vmatmul.mubr.f32.gmra.mxu0 %v310
      %v575 = vpop.f32.mrf.mxu0
      %v576 = vadd.f32 %v367, %v575
      %v577 = vpop.f32.mrf.mxu0
      %578 = vmatprep.mubr.f32.mxu0 0.0
      %579 = vmatmul.mubr.f32.gmra.mxu0 %v311
      %v580 = vpop.f32.mrf.mxu0
      %v581 = vadd.f32 %v367, %v580
      %v582 = vpop.f32.mrf.mxu0
      %583 = vmatprep.mubr.f32.mxu0 0.0
      %584 = vmatmul.mubr.f32.gmra.mxu0 %v312
      %v585 = vpop.f32.mrf.mxu0
      %v586 = vadd.f32 %v367, %v585
      %v587 = vpop.f32.mrf.mxu0
      %588 = vmatprep.mubr.f32.mxu0 0.0
      %589 = vmatmul.mubr.f32.gmra.mxu0 %v313
      %v590 = vpop.f32.mrf.mxu0
      %v591 = vadd.f32 %v367, %v590
      %v592 = vpop.f32.mrf.mxu0
      %593 = vmatprep.mubr.f32.mxu0 0.0
      %594 = vmatmul.mubr.f32.gmra.mxu0 %v314
      %v595 = vpop.f32.mrf.mxu0
      %v596 = vadd.f32 %v367, %v595
      %v597 = vpop.f32.mrf.mxu0
      %598 = vmatprep.mubr.f32.mxu0 0.0
      %599 = vmatmul.mubr.f32.gmra.mxu0 %v315
      %v600 = vpop.f32.mrf.mxu0
      %v601 = vadd.f32 %v367, %v600
      %v602 = vpop.f32.mrf.mxu0
      %603 = vmatprep.mubr.f32.mxu0 0.0
      %604 = vmatmul.mubr.f32.gmra.mxu0 %v316
      %v605 = vpop.f32.mrf.mxu0
      %v606 = vadd.f32 %v367, %v605
      %v607 = vpop.f32.mrf.mxu0
      %608 = vmatprep.mubr.f32.mxu0 0.0
      %609 = vmatmul.mubr.f32.gmra.mxu0 %v317
      %v610 = vpop.f32.mrf.mxu0
      %v611 = vadd.f32 %v367, %v610
      %v612 = vpop.f32.mrf.mxu0
      %613 = vmatprep.mubr.f32.mxu0 0.0
      %614 = vmatmul.mubr.f32.gmra.mxu0 %v318
      %v615 = vpop.f32.mrf.mxu0
      %v616 = vadd.f32 %v367, %v615
      %v617 = vpop.f32.mrf.mxu0
      %618 = vmatprep.mubr.f32.mxu0 0.0
      %619 = vmatmul.mubr.f32.gmra.mxu0 %v319
      %v620 = vpop.f32.mrf.mxu0
      %v621 = vadd.f32 %v367, %v620
      %v622 = vpop.f32.mrf.mxu0
      %623 = vmatprep.mubr.f32.mxu0 0.0
      %624 = vmatmul.mubr.f32.gmra.mxu0 %v320
      %v625 = vpop.f32.mrf.mxu0
      %v626 = vadd.f32 %v367, %v625
      %v627 = vpop.f32.mrf.mxu0
      %628 = vmatprep.mubr.f32.mxu0 0.0
      %629 = vmatmul.mubr.f32.gmra.mxu0 %v321
      %v630 = vpop.f32.mrf.mxu0
      %v631 = vadd.f32 %v367, %v630
      %v632 = vpop.f32.mrf.mxu0
      %633 = vmatprep.mubr.f32.mxu0 0.0
      %634 = vmatmul.mubr.f32.gmra.mxu0 %v322
      %v635 = vpop.f32.mrf.mxu0
      %v636 = vadd.f32 %v367, %v635
      %v637 = vpop.f32.mrf.mxu0
      %638 = vmatprep.mubr.f32.mxu0 0.0
      %639 = vmatmul.mubr.f32.gmra.mxu0 %v323
      %v640 = vpop.f32.mrf.mxu0
      %v641 = vadd.f32 %v367, %v640
      %v642 = vpop.f32.mrf.mxu0
      %643 = vmatprep.mubr.f32.mxu0 0.0
      %644 = vmatmul.mubr.f32.gmra.mxu0 %v324
      %v645 = vpop.f32.mrf.mxu0
      %v646 = vadd.f32 %v367, %v645
      %v647 = vpop.f32.mrf.mxu0
      %648 = vmatprep.mubr.f32.mxu0 0.0
      %649 = vmatmul.mubr.f32.gmra.mxu0 %v325
      %v650 = vpop.f32.mrf.mxu0
      %v651 = vadd.f32 %v367, %v650
      %v652 = vpop.f32.mrf.mxu0
      %653 = vmatprep.mubr.f32.mxu0 0.0
      %654 = vmatmul.mubr.f32.gmra.mxu0 %v326
      %v655 = vpop.f32.mrf.mxu0
      %v656 = vadd.f32 %v367, %v655
      %v657 = vpop.f32.mrf.mxu0
      %658 = vmatprep.mubr.f32.mxu0 0.0
      %659 = vmatmul.mubr.f32.gmra.mxu0 %v327
      %v660 = vpop.f32.mrf.mxu0
      %v661 = vadd.f32 %v367, %v660
      %v662 = vpop.f32.mrf.mxu0
      %663 = vmatprep.mubr.f32.mxu0 0.0
      %664 = vmatmul.mubr.f32.gmra.mxu0 %v328
      %v665 = vpop.f32.mrf.mxu0
      %v666 = vadd.f32 %v367, %v665
      %v667 = vpop.f32.mrf.mxu0
      %668 = vmatprep.mubr.f32.mxu0 0.0
      %669 = vmatmul.mubr.f32.gmra.mxu0 %v329
      %v670 = vpop.f32.mrf.mxu0
      %v671 = vadd.f32 %v367, %v670
      %v672 = vpop.f32.mrf.mxu0
      %673 = vmatprep.mubr.f32.mxu0 0.0
      %674 = vmatmul.mubr.f32.gmra.mxu0 %v330
      %v675 = vpop.f32.mrf.mxu0
      %v676 = vadd.f32 %v367, %v675
      %v677 = vpop.f32.mrf.mxu0
      %678 = vmatprep.mubr.f32.mxu0 0.0
      %679 = vmatmul.mubr.f32.gmra.mxu0 %v331
      %v680 = vpop.f32.mrf.mxu0
      %v681 = vadd.f32 %v367, %v680
      %v682 = vpop.f32.mrf.mxu0
      %683 = vmatprep.mubr.f32.mxu0 0.0
      %684 = vmatmul.mubr.f32.gmra.mxu0 %v332
      %v685 = vpop.f32.mrf.mxu0
      %v686 = vadd.f32 %v367, %v685
      %v687 = vpop.f32.mrf.mxu0
      %688 = vmatprep.mubr.f32.mxu0 0.0
      %689 = vmatmul.mubr.f32.gmra.mxu0 %v333
      %v690 = vpop.f32.mrf.mxu0
      %v691 = vadd.f32 %v367, %v690
      %v692 = vpop.f32.mrf.mxu0
      %693 = vmatprep.mubr.f32.mxu0 0.0
      %694 = vmatmul.mubr.f32.gmra.mxu0 %v334
      %v695 = vpop.f32.mrf.mxu0
      %v696 = vadd.f32 %v367, %v695
      %v697 = vpop.f32.mrf.mxu0
      %698 = vmatprep.mubr.f32.mxu0 0.0
      %699 = vmatmul.mubr.f32.gmra.mxu0 %v335
      %v700 = vpop.f32.mrf.mxu0
      %v701 = vadd.f32 %v367, %v700
      %v702 = vpop.f32.mrf.mxu0
      %703 = vmatprep.mubr.f32.mxu0 0.0
      %704 = vmatmul.mubr.f32.gmra.mxu0 %v336
      %v705 = vpop.f32.mrf.mxu0
      %v706 = vadd.f32 %v367, %v705
      %v707 = vpop.f32.mrf.mxu0
      %708 = vmatprep.mubr.f32.mxu0 0.0
      %709 = vmatmul.mubr.f32.gmra.mxu0 %v337
      %v710 = vpop.f32.mrf.mxu0
      %v711 = vadd.f32 %v367, %v710
      %v712 = vpop.f32.mrf.mxu0
      %713 = vmatprep.mubr.f32.mxu0 0.0
      %714 = vmatmul.mubr.f32.gmra.mxu0 %v338
      %v715 = vpop.f32.mrf.mxu0
      %v716 = vadd.f32 %v367, %v715
      %v717 = vpop.f32.mrf.mxu0
      %718 = vmatprep.mubr.f32.mxu0 0.0
      %719 = vmatmul.mubr.f32.gmra.mxu0 %v339
      %v720 = vpop.f32.mrf.mxu0
      %v721 = vadd.f32 %v367, %v720
      %v722 = vpop.f32.mrf.mxu0
      %723 = vmatprep.mubr.f32.mxu0 0.0
      %724 = vmatmul.mubr.f32.gmra.mxu0 %v340
      %v725 = vpop.f32.mrf.mxu0
      %v726 = vadd.f32 %v367, %v725
      %v727 = vpop.f32.mrf.mxu0
      %728 = vmatprep.mubr.f32.mxu0 0.0
      %729 = vmatmul.mubr.f32.gmra.mxu0 %v341
      %v730 = vpop.f32.mrf.mxu0
      %v731 = vadd.f32 %v367, %v730
      %v732 = vpop.f32.mrf.mxu0
      %733 = vmatprep.mubr.f32.mxu0 0.0
      %734 = vmatmul.mubr.f32.gmra.mxu0 %v342
      %v735 = vpop.f32.mrf.mxu0
      %v736 = vadd.f32 %v367, %v735
      %v737 = vpop.f32.mrf.mxu0
      %738 = vmatprep.mubr.f32.mxu0 0.0
      %739 = vmatmul.mubr.f32.gmra.mxu0 %v343
      %v740 = vpop.f32.mrf.mxu0
      %v741 = vadd.f32 %v367, %v740
      %v742 = vpop.f32.mrf.mxu0
      %743 = vmatprep.mubr.f32.mxu0 0.0
      %744 = vmatmul.mubr.f32.gmra.mxu0 %v344
      %v745 = vpop.f32.mrf.mxu0
      %v746 = vadd.f32 %v367, %v745
      %v747 = vpop.f32.mrf.mxu0
      %748 = vmatprep.mubr.f32.mxu0 0.0
      %749 = vmatmul.mubr.f32.gmra.mxu0 %v345
      %v750 = vpop.f32.mrf.mxu0
      %v751 = vadd.f32 %v367, %v750
      %v752 = vpop.f32.mrf.mxu0
      %753 = vdwg.mxu0
      %v754 = vmax.f32 %v436, 0.0
      %v755 = vmax.f32 %v441, 0.0
      %v756 = vmax.f32 %v446, 0.0
      %v757 = vmax.f32 %v451, 0.0
      %v758 = vmax.f32 %v456, 0.0
      %v759 = vmax.f32 %v461, 0.0
      %v760 = vmax.f32 %v466, 0.0
      %v761 = vmax.f32 %v471, 0.0
      %v762 = vmax.f32 %v476, 0.0
      %v763 = vmax.f32 %v481, 0.0
      %v764 = vmax.f32 %v486, 0.0
      %v765 = vmax.f32 %v491, 0.0
      %v766 = vmax.f32 %v496, 0.0
      %v767 = vmax.f32 %v501, 0.0
      %v768 = vmax.f32 %v506, 0.0
      %v769 = vmax.f32 %v511, 0.0
      %v770 = vmax.f32 %v516, 0.0
      %v771 = vmax.f32 %v521, 0.0
      %v772 = vmax.f32 %v526, 0.0
      %v773 = vmax.f32 %v531, 0.0
      %v774 = vmax.f32 %v536, 0.0
      %v775 = vmax.f32 %v541, 0.0
      %v776 = vmax.f32 %v546, 0.0
      %v777 = vmax.f32 %v551, 0.0
      %v778 = vmax.f32 %v556, 0.0
      %v779 = vmax.f32 %v561, 0.0
      %v780 = vmax.f32 %v566, 0.0
      %v781 = vmax.f32 %v571, 0.0
      %v782 = vmax.f32 %v576, 0.0
      %v783 = vmax.f32 %v581, 0.0
      %v784 = vmax.f32 %v586, 0.0
      %v785 = vmax.f32 %v591, 0.0
      %v786 = vmax.f32 %v596, 0.0
      %v787 = vmax.f32 %v601, 0.0
      %v788 = vmax.f32 %v606, 0.0
      %v789 = vmax.f32 %v611, 0.0
      %v790 = vmax.f32 %v616, 0.0
      %v791 = vmax.f32 %v621, 0.0
      %v792 = vmax.f32 %v626, 0.0
      %v793 = vmax.f32 %v631, 0.0
      %v794 = vmax.f32 %v636, 0.0
      %v795 = vmax.f32 %v641, 0.0
      %v796 = vmax.f32 %v646, 0.0
      %v797 = vmax.f32 %v651, 0.0
      %v798 = vmax.f32 %v656, 0.0
      %v799 = vmax.f32 %v661, 0.0
      %v800 = vmax.f32 %v666, 0.0
      %v801 = vmax.f32 %v671, 0.0
      %v802 = vmax.f32 %v676, 0.0
      %v803 = vmax.f32 %v681, 0.0
      %v804 = vmax.f32 %v686, 0.0
      %v805 = vmax.f32 %v691, 0.0
      %v806 = vmax.f32 %v696, 0.0
      %v807 = vmax.f32 %v701, 0.0
      %v808 = vmax.f32 %v706, 0.0
      %v809 = vmax.f32 %v711, 0.0
      %v810 = vmax.f32 %v716, 0.0
      %v811 = vmax.f32 %v721, 0.0
      %v812 = vmax.f32 %v726, 0.0
      %v813 = vmax.f32 %v731, 0.0
      %v814 = vmax.f32 %v736, 0.0
      %v815 = vmax.f32 %v741, 0.0
      %v816 = vmax.f32 %v746, 0.0
      %v817 = vmax.f32 %v751, 0.0
      %v818 = vld [vmem:[%s3] sm:$0x1]
      %v820 = vlaneseq
      %v821 = vshrl.u32 %v820, 7
      %v822 = vsub.s32 0, %v821
      %v823 = vrot.slane %v818, %v822
      %v825 = vmul.f32 %v754, %v823
      %v826 = vmul.f32 %v755, %v823
      %v827 = vmul.f32 %v756, %v823
      %v828 = vmul.f32 %v757, %v823
      %v829 = vmul.f32 %v758, %v823
      %v830 = vmul.f32 %v759, %v823
      %v831 = vmul.f32 %v760, %v823
      %v832 = vmul.f32 %v761, %v823
      %v833 = vmul.f32 %v762, %v823
      %v834 = vmul.f32 %v763, %v823
      %v835 = vmul.f32 %v764, %v823
      %v836 = vmul.f32 %v765, %v823
      %v837 = vmul.f32 %v766, %v823
      %v838 = vmul.f32 %v767, %v823
      %v839 = vmul.f32 %v768, %v823
      %v840 = vmul.f32 %v769, %v823
      %v841 = vmul.f32 %v770, %v823
      %v842 = vmul.f32 %v771, %v823
      %v843 = vmul.f32 %v772, %v823
      %v844 = vmul.f32 %v773, %v823
      %v845 = vmul.f32 %v774, %v823
      %v846 = vmul.f32 %v775, %v823
      %v847 = vmul.f32 %v776, %v823
      %v848 = vmul.f32 %v777, %v823
      %v849 = vmul.f32 %v778, %v823
      %v850 = vmul.f32 %v779, %v823
      %v851 = vmul.f32 %v780, %v823
      %v852 = vmul.f32 %v781, %v823
      %v853 = vmul.f32 %v782, %v823
      %v854 = vmul.f32 %v783, %v823
      %v855 = vmul.f32 %v784, %v823
      %v856 = vmul.f32 %v785, %v823
      %v857 = vmul.f32 %v786, %v823
      %v858 = vmul.f32 %v787, %v823
      %v859 = vmul.f32 %v788, %v823
      %v860 = vmul.f32 %v789, %v823
      %v861 = vmul.f32 %v790, %v823
      %v862 = vmul.f32 %v791, %v823
      %v863 = vmul.f32 %v792, %v823
      %v864 = vmul.f32 %v793, %v823
      %v865 = vmul.f32 %v794, %v823
      %v866 = vmul.f32 %v795, %v823
      %v867 = vmul.f32 %v796, %v823
      %v868 = vmul.f32 %v797, %v823
      %v869 = vmul.f32 %v798, %v823
      %v870 = vmul.f32 %v799, %v823
      %v871 = vmul.f32 %v800, %v823
      %v872 = vmul.f32 %v801, %v823
      %v873 = vmul.f32 %v802, %v823
      %v874 = vmul.f32 %v803, %v823
      %v875 = vmul.f32 %v804, %v823
      %v876 = vmul.f32 %v805, %v823
      %v877 = vmul.f32 %v806, %v823
      %v878 = vmul.f32 %v807, %v823
      %v879 = vmul.f32 %v808, %v823
      %v880 = vmul.f32 %v809, %v823
      %v881 = vmul.f32 %v810, %v823
      %v882 = vmul.f32 %v811, %v823
      %v883 = vmul.f32 %v812, %v823
      %v884 = vmul.f32 %v813, %v823
      %v885 = vmul.f32 %v814, %v823
      %v886 = vmul.f32 %v815, %v823
      %v887 = vmul.f32 %v816, %v823
      %v888 = vmul.f32 %v817, %v823
      %v889 = vld [vmem:[%s4] sm:$0x1]
      %v891 = vlaneseq
      %v892 = vshrl.u32 %v891, 7
      %v893 = vsub.s32 0, %v892
      %v894 = vrot.slane %v889, %v893
      %v896 = vadd.f32 %v825, %v894
      %v897 = vadd.f32 %v826, %v894
      %v898 = vadd.f32 %v827, %v894
      %v899 = vadd.f32 %v828, %v894
      %v900 = vadd.f32 %v829, %v894
      %v901 = vadd.f32 %v830, %v894
      %v902 = vadd.f32 %v831, %v894
      %v903 = vadd.f32 %v832, %v894
      %v904 = vadd.f32 %v833, %v894
      %v905 = vadd.f32 %v834, %v894
      %v906 = vadd.f32 %v835, %v894
      %v907 = vadd.f32 %v836, %v894
      %v908 = vadd.f32 %v837, %v894
      %v909 = vadd.f32 %v838, %v894
      %v910 = vadd.f32 %v839, %v894
      %v911 = vadd.f32 %v840, %v894
      %v912 = vadd.f32 %v841, %v894
      %v913 = vadd.f32 %v842, %v894
      %v914 = vadd.f32 %v843, %v894
      %v915 = vadd.f32 %v844, %v894
      %v916 = vadd.f32 %v845, %v894
      %v917 = vadd.f32 %v846, %v894
      %v918 = vadd.f32 %v847, %v894
      %v919 = vadd.f32 %v848, %v894
      %v920 = vadd.f32 %v849, %v894
      %v921 = vadd.f32 %v850, %v894
      %v922 = vadd.f32 %v851, %v894
      %v923 = vadd.f32 %v852, %v894
      %v924 = vadd.f32 %v853, %v894
      %v925 = vadd.f32 %v854, %v894
      %v926 = vadd.f32 %v855, %v894
      %v927 = vadd.f32 %v856, %v894
      %v928 = vadd.f32 %v857, %v894
      %v929 = vadd.f32 %v858, %v894
      %v930 = vadd.f32 %v859, %v894
      %v931 = vadd.f32 %v860, %v894
      %v932 = vadd.f32 %v861, %v894
      %v933 = vadd.f32 %v862, %v894
      %v934 = vadd.f32 %v863, %v894
      %v935 = vadd.f32 %v864, %v894
      %v936 = vadd.f32 %v865, %v894
      %v937 = vadd.f32 %v866, %v894
      %v938 = vadd.f32 %v867, %v894
      %v939 = vadd.f32 %v868, %v894
      %v940 = vadd.f32 %v869, %v894
      %v941 = vadd.f32 %v870, %v894
      %v942 = vadd.f32 %v871, %v894
      %v943 = vadd.f32 %v872, %v894
      %v944 = vadd.f32 %v873, %v894
      %v945 = vadd.f32 %v874, %v894
      %v946 = vadd.f32 %v875, %v894
      %v947 = vadd.f32 %v876, %v894
      %v948 = vadd.f32 %v877, %v894
      %v949 = vadd.f32 %v878, %v894
      %v950 = vadd.f32 %v879, %v894
      %v951 = vadd.f32 %v880, %v894
      %v952 = vadd.f32 %v881, %v894
      %v953 = vadd.f32 %v882, %v894
      %v954 = vadd.f32 %v883, %v894
      %v955 = vadd.f32 %v884, %v894
      %v956 = vadd.f32 %v885, %v894
      %v957 = vadd.f32 %v886, %v894
      %v958 = vadd.f32 %v887, %v894
      %v959 = vadd.f32 %v888, %v894
      %v960 = vld [vmem:[%s5] sm:$0xff]
      %v961 = vld [vmem:[%s5 + $0x8] sm:$0xff]
      %v962 = vld [vmem:[%s5 + $0x10] sm:$0xff]
      %v963 = vld [vmem:[%s5 + $0x18] sm:$0xff]
      %v964 = vld [vmem:[%s5 + $0x20] sm:$0xff]
      %v965 = vld [vmem:[%s5 + $0x28] sm:$0xff]
      %v966 = vld [vmem:[%s5 + $0x30] sm:$0xff]
      %v967 = vld [vmem:[%s5 + $0x38] sm:$0xff]
      %v968 = vld [vmem:[%s6] sm:$0x1]
      %v970 = vlaneseq
      %v971 = vshrl.u32 %v970, 7
      %v972 = vsub.s32 0, %v971
      %v973 = vrot.slane %v968, %v972
      %vm975 = vcmask 523264
      %v977 = vsel %vm975, %v896, 0
      %v980 = vsel %vm975, %v897, 0
      %v983 = vsel %vm975, %v898, 0
      %v986 = vsel %vm975, %v899, 0
      %v989 = vsel %vm975, %v900, 0
      %v992 = vsel %vm975, %v901, 0
      %v995 = vsel %vm975, %v902, 0
      %v998 = vsel %vm975, %v903, 0
      %v1001 = vsel %vm975, %v904, 0
      %v1004 = vsel %vm975, %v905, 0
      %v1007 = vsel %vm975, %v906, 0
      %v1010 = vsel %vm975, %v907, 0
      %v1013 = vsel %vm975, %v908, 0
      %v1016 = vsel %vm975, %v909, 0
      %v1019 = vsel %vm975, %v910, 0
      %v1022 = vsel %vm975, %v911, 0
      %v1025 = vsel %vm975, %v912, 0
      %v1028 = vsel %vm975, %v913, 0
      %v1031 = vsel %vm975, %v914, 0
      %v1034 = vsel %vm975, %v915, 0
      %v1037 = vsel %vm975, %v916, 0
      %v1040 = vsel %vm975, %v917, 0
      %v1043 = vsel %vm975, %v918, 0
      %v1046 = vsel %vm975, %v919, 0
      %v1049 = vsel %vm975, %v920, 0
      %v1052 = vsel %vm975, %v921, 0
      %v1055 = vsel %vm975, %v922, 0
      %v1058 = vsel %vm975, %v923, 0
      %v1061 = vsel %vm975, %v924, 0
      %v1064 = vsel %vm975, %v925, 0
      %v1067 = vsel %vm975, %v926, 0
      %v1070 = vsel %vm975, %v927, 0
      %v1073 = vsel %vm975, %v928, 0
      %v1076 = vsel %vm975, %v929, 0
      %v1079 = vsel %vm975, %v930, 0
      %v1082 = vsel %vm975, %v931, 0
      %v1085 = vsel %vm975, %v932, 0
      %v1088 = vsel %vm975, %v933, 0
      %v1091 = vsel %vm975, %v934, 0
      %v1094 = vsel %vm975, %v935, 0
      %v1097 = vsel %vm975, %v936, 0
      %v1100 = vsel %vm975, %v937, 0
      %v1103 = vsel %vm975, %v938, 0
      %v1106 = vsel %vm975, %v939, 0
      %v1109 = vsel %vm975, %v940, 0
      %v1112 = vsel %vm975, %v941, 0
      %v1115 = vsel %vm975, %v942, 0
      %v1118 = vsel %vm975, %v943, 0
      %v1121 = vsel %vm975, %v944, 0
      %v1124 = vsel %vm975, %v945, 0
      %v1127 = vsel %vm975, %v946, 0
      %v1130 = vsel %vm975, %v947, 0
      %v1133 = vsel %vm975, %v948, 0
      %v1136 = vsel %vm975, %v949, 0
      %v1139 = vsel %vm975, %v950, 0
      %v1142 = vsel %vm975, %v951, 0
      %v1145 = vsel %vm975, %v952, 0
      %v1148 = vsel %vm975, %v953, 0
      %v1151 = vsel %vm975, %v954, 0
      %v1154 = vsel %vm975, %v955, 0
      %v1157 = vsel %vm975, %v956, 0
      %v1160 = vsel %vm975, %v957, 0
      %v1163 = vsel %vm975, %v958, 0
      %v1166 = vsel %vm975, %v959, 0
      %1168 = vmatprep.subr.mxu0 0.0
      %1169 = vmatpush1.msra.mxu0 0.0
      %1170 = vmatprep.subr.mxu0 0.0
      %1171 = vmatpush1.msra.mxu0 0.0
      %1172 = vmatprep.subr.mxu0 0.0
      %1173 = vmatpush1.msra.mxu0 0.0
      %1174 = vmatprep.subr.mxu0 0.0
      %1175 = vmatpush1.msra.mxu0 0.0
      %1176 = vmatprep.subr.mxu0 0.0
      %1177 = vmatpush1.msra.mxu0 0.0
      %1178 = vmatprep.subr.mxu0 0.0
      %1179 = vmatpush1.msra.mxu0 0.0
      %1180 = vmatprep.subr.mxu0 0.0
      %1181 = vmatpush1.msra.mxu0 0.0
      %1182 = vmatprep.subr.mxu0 0.0
      %1183 = vmatpush1.msra.mxu0 0.0
      %1184 = vmatprep.subr.mxu0 0.0
      %1185 = vmatpush1.msra.mxu0 %v967
      %1186 = vmatprep.subr.mxu0 0.0
      %1187 = vmatpush1.msra.mxu0 %v966
      %1188 = vmatprep.subr.mxu0 0.0
      %1189 = vmatpush1.msra.mxu0 %v965
      %1190 = vmatprep.subr.mxu0 0.0
      %1191 = vmatpush1.msra.mxu0 %v964
      %1192 = vmatprep.subr.mxu0 0.0
      %1193 = vmatpush1.msra.mxu0 %v963
      %1194 = vmatprep.subr.mxu0 0.0
      %1195 = vmatpush1.msra.mxu0 %v962
      %1196 = vmatprep.subr.mxu0 0.0
      %1197 = vmatpush1.msra.mxu0 %v961
      %1198 = vmatprep.subr.mxu0 0.0
      %1199 = vmatpush1.msra.mxu0 %v960
      %1200 = vmatprep.subr.mxu0 0.0
      %1201 = vmatpush2.msra.mxu0 0.0
      %1202 = vmatprep.subr.mxu0 0.0
      %1203 = vmatpush2.msra.mxu0 0.0
      %1204 = vmatprep.subr.mxu0 0.0
      %1205 = vmatpush2.msra.mxu0 0.0
      %1206 = vmatprep.subr.mxu0 0.0
      %1207 = vmatpush2.msra.mxu0 0.0
      %1208 = vmatprep.subr.mxu0 0.0
      %1209 = vmatpush2.msra.mxu0 0.0
      %1210 = vmatprep.subr.mxu0 0.0
      %1211 = vmatpush2.msra.mxu0 0.0
      %1212 = vmatprep.subr.mxu0 0.0
      %1213 = vmatpush2.msra.mxu0 0.0
      %1214 = vmatprep.subr.mxu0 0.0
      %1215 = vmatpush2.msra.mxu0 0.0
      %1216 = vmatprep.subr.mxu0 0.0
      %1217 = vmatpush2.msra.mxu0 0.0
      %1218 = vmatprep.subr.mxu0 0.0
      %1219 = vmatpush2.msra.mxu0 0.0
      %1220 = vmatprep.subr.mxu0 0.0
      %1221 = vmatpush2.msra.mxu0 0.0
      %1222 = vmatprep.subr.mxu0 0.0
      %1223 = vmatpush2.msra.mxu0 0.0
      %1224 = vmatprep.subr.mxu0 0.0
      %1225 = vmatpush2.msra.mxu0 0.0
      %1226 = vmatprep.subr.mxu0 0.0
      %1227 = vmatpush2.msra.mxu0 0.0
      %1228 = vmatprep.subr.mxu0 0.0
      %1229 = vmatpush2.msra.mxu0 0.0
      %1230 = vmatprep.subr.mxu0 0.0
      %1231 = vmatpush2.msra.mxu0 0.0
      %1232 = vmatprep.mubr.f32.mxu0 0.0
      %1233 = vmatmul.mubr.f32.gmra.mxu0 %v977
      %v1234 = vpop.f32.mrf.mxu0
      %v1235 = vadd.f32 %v973, %v1234
      %v1236 = vpop.f32.mrf.mxu0
      %1237 = vmatprep.mubr.f32.mxu0 0.0
      %1238 = vmatmul.mubr.f32.gmra.mxu0 %v980
      %v1239 = vpop.f32.mrf.mxu0
      %v1240 = vadd.f32 %v973, %v1239
      %v1241 = vpop.f32.mrf.mxu0
      %1242 = vmatprep.mubr.f32.mxu0 0.0
      %1243 = vmatmul.mubr.f32.gmra.mxu0 %v983
      %v1244 = vpop.f32.mrf.mxu0
      %v1245 = vadd.f32 %v973, %v1244
      %v1246 = vpop.f32.mrf.mxu0
      %1247 = vmatprep.mubr.f32.mxu0 0.0
      %1248 = vmatmul.mubr.f32.gmra.mxu0 %v986
      %v1249 = vpop.f32.mrf.mxu0
      %v1250 = vadd.f32 %v973, %v1249
      %v1251 = vpop.f32.mrf.mxu0
      %1252 = vmatprep.mubr.f32.mxu0 0.0
      %1253 = vmatmul.mubr.f32.gmra.mxu0 %v989
      %v1254 = vpop.f32.mrf.mxu0
      %v1255 = vadd.f32 %v973, %v1254
      %v1256 = vpop.f32.mrf.mxu0
      %1257 = vmatprep.mubr.f32.mxu0 0.0
      %1258 = vmatmul.mubr.f32.gmra.mxu0 %v992
      %v1259 = vpop.f32.mrf.mxu0
      %v1260 = vadd.f32 %v973, %v1259
      %v1261 = vpop.f32.mrf.mxu0
      %1262 = vmatprep.mubr.f32.mxu0 0.0
      %1263 = vmatmul.mubr.f32.gmra.mxu0 %v995
      %v1264 = vpop.f32.mrf.mxu0
      %v1265 = vadd.f32 %v973, %v1264
      %v1266 = vpop.f32.mrf.mxu0
      %1267 = vmatprep.mubr.f32.mxu0 0.0
      %1268 = vmatmul.mubr.f32.gmra.mxu0 %v998
      %v1269 = vpop.f32.mrf.mxu0
      %v1270 = vadd.f32 %v973, %v1269
      %v1271 = vpop.f32.mrf.mxu0
      %1272 = vmatprep.mubr.f32.mxu0 0.0
      %1273 = vmatmul.mubr.f32.gmra.mxu0 %v1001
      %v1274 = vpop.f32.mrf.mxu0
      %v1275 = vadd.f32 %v973, %v1274
      %v1276 = vpop.f32.mrf.mxu0
      %1277 = vmatprep.mubr.f32.mxu0 0.0
      %1278 = vmatmul.mubr.f32.gmra.mxu0 %v1004
      %v1279 = vpop.f32.mrf.mxu0
      %v1280 = vadd.f32 %v973, %v1279
      %v1281 = vpop.f32.mrf.mxu0
      %1282 = vmatprep.mubr.f32.mxu0 0.0
      %1283 = vmatmul.mubr.f32.gmra.mxu0 %v1007
      %v1284 = vpop.f32.mrf.mxu0
      %v1285 = vadd.f32 %v973, %v1284
      %v1286 = vpop.f32.mrf.mxu0
      %1287 = vmatprep.mubr.f32.mxu0 0.0
      %1288 = vmatmul.mubr.f32.gmra.mxu0 %v1010
      %v1289 = vpop.f32.mrf.mxu0
      %v1290 = vadd.f32 %v973, %v1289
      %v1291 = vpop.f32.mrf.mxu0
      %1292 = vmatprep.mubr.f32.mxu0 0.0
      %1293 = vmatmul.mubr.f32.gmra.mxu0 %v1013
      %v1294 = vpop.f32.mrf.mxu0
      %v1295 = vadd.f32 %v973, %v1294
      %v1296 = vpop.f32.mrf.mxu0
      %1297 = vmatprep.mubr.f32.mxu0 0.0
      %1298 = vmatmul.mubr.f32.gmra.mxu0 %v1016
      %v1299 = vpop.f32.mrf.mxu0
      %v1300 = vadd.f32 %v973, %v1299
      %v1301 = vpop.f32.mrf.mxu0
      %1302 = vmatprep.mubr.f32.mxu0 0.0
      %1303 = vmatmul.mubr.f32.gmra.mxu0 %v1019
      %v1304 = vpop.f32.mrf.mxu0
      %v1305 = vadd.f32 %v973, %v1304
      %v1306 = vpop.f32.mrf.mxu0
      %1307 = vmatprep.mubr.f32.mxu0 0.0
      %1308 = vmatmul.mubr.f32.gmra.mxu0 %v1022
      %v1309 = vpop.f32.mrf.mxu0
      %v1310 = vadd.f32 %v973, %v1309
      %v1311 = vpop.f32.mrf.mxu0
      %1312 = vmatprep.mubr.f32.mxu0 0.0
      %1313 = vmatmul.mubr.f32.gmra.mxu0 %v1025
      %v1314 = vpop.f32.mrf.mxu0
      %v1315 = vadd.f32 %v973, %v1314
      %v1316 = vpop.f32.mrf.mxu0
      %1317 = vmatprep.mubr.f32.mxu0 0.0
      %1318 = vmatmul.mubr.f32.gmra.mxu0 %v1028
      %v1319 = vpop.f32.mrf.mxu0
      %v1320 = vadd.f32 %v973, %v1319
      %v1321 = vpop.f32.mrf.mxu0
      %1322 = vmatprep.mubr.f32.mxu0 0.0
      %1323 = vmatmul.mubr.f32.gmra.mxu0 %v1031
      %v1324 = vpop.f32.mrf.mxu0
      %v1325 = vadd.f32 %v973, %v1324
      %v1326 = vpop.f32.mrf.mxu0
      %1327 = vmatprep.mubr.f32.mxu0 0.0
      %1328 = vmatmul.mubr.f32.gmra.mxu0 %v1034
      %v1329 = vpop.f32.mrf.mxu0
      %v1330 = vadd.f32 %v973, %v1329
      %v1331 = vpop.f32.mrf.mxu0
      %1332 = vmatprep.mubr.f32.mxu0 0.0
      %1333 = vmatmul.mubr.f32.gmra.mxu0 %v1037
      %v1334 = vpop.f32.mrf.mxu0
      %v1335 = vadd.f32 %v973, %v1334
      %v1336 = vpop.f32.mrf.mxu0
      %1337 = vmatprep.mubr.f32.mxu0 0.0
      %1338 = vmatmul.mubr.f32.gmra.mxu0 %v1040
      %v1339 = vpop.f32.mrf.mxu0
      %v1340 = vadd.f32 %v973, %v1339
      %v1341 = vpop.f32.mrf.mxu0
      %1342 = vmatprep.mubr.f32.mxu0 0.0
      %1343 = vmatmul.mubr.f32.gmra.mxu0 %v1043
      %v1344 = vpop.f32.mrf.mxu0
      %v1345 = vadd.f32 %v973, %v1344
      %v1346 = vpop.f32.mrf.mxu0
      %1347 = vmatprep.mubr.f32.mxu0 0.0
      %1348 = vmatmul.mubr.f32.gmra.mxu0 %v1046
      %v1349 = vpop.f32.mrf.mxu0
      %v1350 = vadd.f32 %v973, %v1349
      %v1351 = vpop.f32.mrf.mxu0
      %1352 = vmatprep.mubr.f32.mxu0 0.0
      %1353 = vmatmul.mubr.f32.gmra.mxu0 %v1049
      %v1354 = vpop.f32.mrf.mxu0
      %v1355 = vadd.f32 %v973, %v1354
      %v1356 = vpop.f32.mrf.mxu0
      %1357 = vmatprep.mubr.f32.mxu0 0.0
      %1358 = vmatmul.mubr.f32.gmra.mxu0 %v1052
      %v1359 = vpop.f32.mrf.mxu0
      %v1360 = vadd.f32 %v973, %v1359
      %v1361 = vpop.f32.mrf.mxu0
      %1362 = vmatprep.mubr.f32.mxu0 0.0
      %1363 = vmatmul.mubr.f32.gmra.mxu0 %v1055
      %v1364 = vpop.f32.mrf.mxu0
      %v1365 = vadd.f32 %v973, %v1364
      %v1366 = vpop.f32.mrf.mxu0
      %1367 = vmatprep.mubr.f32.mxu0 0.0
      %1368 = vmatmul.mubr.f32.gmra.mxu0 %v1058
      %v1369 = vpop.f32.mrf.mxu0
      %v1370 = vadd.f32 %v973, %v1369
      %v1371 = vpop.f32.mrf.mxu0
      %1372 = vmatprep.mubr.f32.mxu0 0.0
      %1373 = vmatmul.mubr.f32.gmra.mxu0 %v1061
      %v1374 = vpop.f32.mrf.mxu0
      %v1375 = vadd.f32 %v973, %v1374
      %v1376 = vpop.f32.mrf.mxu0
      %1377 = vmatprep.mubr.f32.mxu0 0.0
      %1378 = vmatmul.mubr.f32.gmra.mxu0 %v1064
      %v1379 = vpop.f32.mrf.mxu0
      %v1380 = vadd.f32 %v973, %v1379
      %v1381 = vpop.f32.mrf.mxu0
      %1382 = vmatprep.mubr.f32.mxu0 0.0
      %1383 = vmatmul.mubr.f32.gmra.mxu0 %v1067
      %v1384 = vpop.f32.mrf.mxu0
      %v1385 = vadd.f32 %v973, %v1384
      %v1386 = vpop.f32.mrf.mxu0
      %1387 = vmatprep.mubr.f32.mxu0 0.0
      %1388 = vmatmul.mubr.f32.gmra.mxu0 %v1070
      %v1389 = vpop.f32.mrf.mxu0
      %v1390 = vadd.f32 %v973, %v1389
      %v1391 = vpop.f32.mrf.mxu0
      %1392 = vmatprep.mubr.f32.mxu0 0.0
      %1393 = vmatmul.mubr.f32.gmra.mxu0 %v1073
      %v1394 = vpop.f32.mrf.mxu0
      %v1395 = vadd.f32 %v973, %v1394
      %v1396 = vpop.f32.mrf.mxu0
      %1397 = vmatprep.mubr.f32.mxu0 0.0
      %1398 = vmatmul.mubr.f32.gmra.mxu0 %v1076
      %v1399 = vpop.f32.mrf.mxu0
      %v1400 = vadd.f32 %v973, %v1399
      %v1401 = vpop.f32.mrf.mxu0
      %1402 = vmatprep.mubr.f32.mxu0 0.0
      %1403 = vmatmul.mubr.f32.gmra.mxu0 %v1079
      %v1404 = vpop.f32.mrf.mxu0
      %v1405 = vadd.f32 %v973, %v1404
      %v1406 = vpop.f32.mrf.mxu0
      %1407 = vmatprep.mubr.f32.mxu0 0.0
      %1408 = vmatmul.mubr.f32.gmra.mxu0 %v1082
      %v1409 = vpop.f32.mrf.mxu0
      %v1410 = vadd.f32 %v973, %v1409
      %v1411 = vpop.f32.mrf.mxu0
      %1412 = vmatprep.mubr.f32.mxu0 0.0
      %1413 = vmatmul.mubr.f32.gmra.mxu0 %v1085
      %v1414 = vpop.f32.mrf.mxu0
      %v1415 = vadd.f32 %v973, %v1414
      %v1416 = vpop.f32.mrf.mxu0
      %1417 = vmatprep.mubr.f32.mxu0 0.0
      %1418 = vmatmul.mubr.f32.gmra.mxu0 %v1088
      %v1419 = vpop.f32.mrf.mxu0
      %v1420 = vadd.f32 %v973, %v1419
      %v1421 = vpop.f32.mrf.mxu0
      %1422 = vmatprep.mubr.f32.mxu0 0.0
      %1423 = vmatmul.mubr.f32.gmra.mxu0 %v1091
      %v1424 = vpop.f32.mrf.mxu0
      %v1425 = vadd.f32 %v973, %v1424
      %v1426 = vpop.f32.mrf.mxu0
      %1427 = vmatprep.mubr.f32.mxu0 0.0
      %1428 = vmatmul.mubr.f32.gmra.mxu0 %v1094
      %v1429 = vpop.f32.mrf.mxu0
      %v1430 = vadd.f32 %v973, %v1429
      %v1431 = vpop.f32.mrf.mxu0
      %1432 = vmatprep.mubr.f32.mxu0 0.0
      %1433 = vmatmul.mubr.f32.gmra.mxu0 %v1097
      %v1434 = vpop.f32.mrf.mxu0
      %v1435 = vadd.f32 %v973, %v1434
      %v1436 = vpop.f32.mrf.mxu0
      %1437 = vmatprep.mubr.f32.mxu0 0.0
      %1438 = vmatmul.mubr.f32.gmra.mxu0 %v1100
      %v1439 = vpop.f32.mrf.mxu0
      %v1440 = vadd.f32 %v973, %v1439
      %v1441 = vpop.f32.mrf.mxu0
      %1442 = vmatprep.mubr.f32.mxu0 0.0
      %1443 = vmatmul.mubr.f32.gmra.mxu0 %v1103
      %v1444 = vpop.f32.mrf.mxu0
      %v1445 = vadd.f32 %v973, %v1444
      %v1446 = vpop.f32.mrf.mxu0
      %1447 = vmatprep.mubr.f32.mxu0 0.0
      %1448 = vmatmul.mubr.f32.gmra.mxu0 %v1106
      %v1449 = vpop.f32.mrf.mxu0
      %v1450 = vadd.f32 %v973, %v1449
      %v1451 = vpop.f32.mrf.mxu0
      %1452 = vmatprep.mubr.f32.mxu0 0.0
      %1453 = vmatmul.mubr.f32.gmra.mxu0 %v1109
      %v1454 = vpop.f32.mrf.mxu0
      %v1455 = vadd.f32 %v973, %v1454
      %v1456 = vpop.f32.mrf.mxu0
      %1457 = vmatprep.mubr.f32.mxu0 0.0
      %1458 = vmatmul.mubr.f32.gmra.mxu0 %v1112
      %v1459 = vpop.f32.mrf.mxu0
      %v1460 = vadd.f32 %v973, %v1459
      %v1461 = vpop.f32.mrf.mxu0
      %1462 = vmatprep.mubr.f32.mxu0 0.0
      %1463 = vmatmul.mubr.f32.gmra.mxu0 %v1115
      %v1464 = vpop.f32.mrf.mxu0
      %v1465 = vadd.f32 %v973, %v1464
      %v1466 = vpop.f32.mrf.mxu0
      %1467 = vmatprep.mubr.f32.mxu0 0.0
      %1468 = vmatmul.mubr.f32.gmra.mxu0 %v1118
      %v1469 = vpop.f32.mrf.mxu0
      %v1470 = vadd.f32 %v973, %v1469
      %v1471 = vpop.f32.mrf.mxu0
      %1472 = vmatprep.mubr.f32.mxu0 0.0
      %1473 = vmatmul.mubr.f32.gmra.mxu0 %v1121
      %v1474 = vpop.f32.mrf.mxu0
      %v1475 = vadd.f32 %v973, %v1474
      %v1476 = vpop.f32.mrf.mxu0
      %1477 = vmatprep.mubr.f32.mxu0 0.0
      %1478 = vmatmul.mubr.f32.gmra.mxu0 %v1124
      %v1479 = vpop.f32.mrf.mxu0
      %v1480 = vadd.f32 %v973, %v1479
      %v1481 = vpop.f32.mrf.mxu0
      %1482 = vmatprep.mubr.f32.mxu0 0.0
      %1483 = vmatmul.mubr.f32.gmra.mxu0 %v1127
      %v1484 = vpop.f32.mrf.mxu0
      %v1485 = vadd.f32 %v973, %v1484
      %v1486 = vpop.f32.mrf.mxu0
      %1487 = vmatprep.mubr.f32.mxu0 0.0
      %1488 = vmatmul.mubr.f32.gmra.mxu0 %v1130
      %v1489 = vpop.f32.mrf.mxu0
      %v1490 = vadd.f32 %v973, %v1489
      %v1491 = vpop.f32.mrf.mxu0
      %1492 = vmatprep.mubr.f32.mxu0 0.0
      %1493 = vmatmul.mubr.f32.gmra.mxu0 %v1133
      %v1494 = vpop.f32.mrf.mxu0
      %v1495 = vadd.f32 %v973, %v1494
      %v1496 = vpop.f32.mrf.mxu0
      %1497 = vmatprep.mubr.f32.mxu0 0.0
      %1498 = vmatmul.mubr.f32.gmra.mxu0 %v1136
      %v1499 = vpop.f32.mrf.mxu0
      %v1500 = vadd.f32 %v973, %v1499
      %v1501 = vpop.f32.mrf.mxu0
      %1502 = vmatprep.mubr.f32.mxu0 0.0
      %1503 = vmatmul.mubr.f32.gmra.mxu0 %v1139
      %v1504 = vpop.f32.mrf.mxu0
      %v1505 = vadd.f32 %v973, %v1504
      %v1506 = vpop.f32.mrf.mxu0
      %1507 = vmatprep.mubr.f32.mxu0 0.0
      %1508 = vmatmul.mubr.f32.gmra.mxu0 %v1142
      %v1509 = vpop.f32.mrf.mxu0
      %v1510 = vadd.f32 %v973, %v1509
      %v1511 = vpop.f32.mrf.mxu0
      %1512 = vmatprep.mubr.f32.mxu0 0.0
      %1513 = vmatmul.mubr.f32.gmra.mxu0 %v1145
      %v1514 = vpop.f32.mrf.mxu0
      %v1515 = vadd.f32 %v973, %v1514
      %v1516 = vpop.f32.mrf.mxu0
      %1517 = vmatprep.mubr.f32.mxu0 0.0
      %1518 = vmatmul.mubr.f32.gmra.mxu0 %v1148
      %v1519 = vpop.f32.mrf.mxu0
      %v1520 = vadd.f32 %v973, %v1519
      %v1521 = vpop.f32.mrf.mxu0
      %1522 = vmatprep.mubr.f32.mxu0 0.0
      %1523 = vmatmul.mubr.f32.gmra.mxu0 %v1151
      %v1524 = vpop.f32.mrf.mxu0
      %v1525 = vadd.f32 %v973, %v1524
      %v1526 = vpop.f32.mrf.mxu0
      %1527 = vmatprep.mubr.f32.mxu0 0.0
      %1528 = vmatmul.mubr.f32.gmra.mxu0 %v1154
      %v1529 = vpop.f32.mrf.mxu0
      %v1530 = vadd.f32 %v973, %v1529
      %v1531 = vpop.f32.mrf.mxu0
      %1532 = vmatprep.mubr.f32.mxu0 0.0
      %1533 = vmatmul.mubr.f32.gmra.mxu0 %v1157
      %v1534 = vpop.f32.mrf.mxu0
      %v1535 = vadd.f32 %v973, %v1534
      %v1536 = vpop.f32.mrf.mxu0
      %1537 = vmatprep.mubr.f32.mxu0 0.0
      %1538 = vmatmul.mubr.f32.gmra.mxu0 %v1160
      %v1539 = vpop.f32.mrf.mxu0
      %v1540 = vadd.f32 %v973, %v1539
      %v1541 = vpop.f32.mrf.mxu0
      %1542 = vmatprep.mubr.f32.mxu0 0.0
      %1543 = vmatmul.mubr.f32.gmra.mxu0 %v1163
      %v1544 = vpop.f32.mrf.mxu0
      %v1545 = vadd.f32 %v973, %v1544
      %v1546 = vpop.f32.mrf.mxu0
      %1547 = vmatprep.mubr.f32.mxu0 0.0
      %1548 = vmatmul.mubr.f32.gmra.mxu0 %v1166
      %v1549 = vpop.f32.mrf.mxu0
      %v1550 = vadd.f32 %v973, %v1549
      %v1551 = vpop.f32.mrf.mxu0
      %1552 = vdwg.mxu0
      %v1553 = vmax.f32 %v1235, 0.0
      %v1554 = vmax.f32 %v1240, 0.0
      %v1555 = vmax.f32 %v1245, 0.0
      %v1556 = vmax.f32 %v1250, 0.0
      %v1557 = vmax.f32 %v1255, 0.0
      %v1558 = vmax.f32 %v1260, 0.0
      %v1559 = vmax.f32 %v1265, 0.0
      %v1560 = vmax.f32 %v1270, 0.0
      %v1561 = vmax.f32 %v1275, 0.0
      %v1562 = vmax.f32 %v1280, 0.0
      %v1563 = vmax.f32 %v1285, 0.0
      %v1564 = vmax.f32 %v1290, 0.0
      %v1565 = vmax.f32 %v1295, 0.0
      %v1566 = vmax.f32 %v1300, 0.0
      %v1567 = vmax.f32 %v1305, 0.0
      %v1568 = vmax.f32 %v1310, 0.0
      %v1569 = vmax.f32 %v1315, 0.0
      %v1570 = vmax.f32 %v1320, 0.0
      %v1571 = vmax.f32 %v1325, 0.0
      %v1572 = vmax.f32 %v1330, 0.0
      %v1573 = vmax.f32 %v1335, 0.0
      %v1574 = vmax.f32 %v1340, 0.0
      %v1575 = vmax.f32 %v1345, 0.0
      %v1576 = vmax.f32 %v1350, 0.0
      %v1577 = vmax.f32 %v1355, 0.0
      %v1578 = vmax.f32 %v1360, 0.0
      %v1579 = vmax.f32 %v1365, 0.0
      %v1580 = vmax.f32 %v1370, 0.0
      %v1581 = vmax.f32 %v1375, 0.0
      %v1582 = vmax.f32 %v1380, 0.0
      %v1583 = vmax.f32 %v1385, 0.0
      %v1584 = vmax.f32 %v1390, 0.0
      %v1585 = vmax.f32 %v1395, 0.0
      %v1586 = vmax.f32 %v1400, 0.0
      %v1587 = vmax.f32 %v1405, 0.0
      %v1588 = vmax.f32 %v1410, 0.0
      %v1589 = vmax.f32 %v1415, 0.0
      %v1590 = vmax.f32 %v1420, 0.0
      %v1591 = vmax.f32 %v1425, 0.0
      %v1592 = vmax.f32 %v1430, 0.0
      %v1593 = vmax.f32 %v1435, 0.0
      %v1594 = vmax.f32 %v1440, 0.0
      %v1595 = vmax.f32 %v1445, 0.0
      %v1596 = vmax.f32 %v1450, 0.0
      %v1597 = vmax.f32 %v1455, 0.0
      %v1598 = vmax.f32 %v1460, 0.0
      %v1599 = vmax.f32 %v1465, 0.0
      %v1600 = vmax.f32 %v1470, 0.0
      %v1601 = vmax.f32 %v1475, 0.0
      %v1602 = vmax.f32 %v1480, 0.0
      %v1603 = vmax.f32 %v1485, 0.0
      %v1604 = vmax.f32 %v1490, 0.0
      %v1605 = vmax.f32 %v1495, 0.0
      %v1606 = vmax.f32 %v1500, 0.0
      %v1607 = vmax.f32 %v1505, 0.0
      %v1608 = vmax.f32 %v1510, 0.0
      %v1609 = vmax.f32 %v1515, 0.0
      %v1610 = vmax.f32 %v1520, 0.0
      %v1611 = vmax.f32 %v1525, 0.0
      %v1612 = vmax.f32 %v1530, 0.0
      %v1613 = vmax.f32 %v1535, 0.0
      %v1614 = vmax.f32 %v1540, 0.0
      %v1615 = vmax.f32 %v1545, 0.0
      %v1616 = vmax.f32 %v1550, 0.0
      %vm1617 = vcmask 31744
      %1618 = vst.msk [vmem:[%s280] sm:$0xff] %vm1617, %v1553
      %1619 = vst.msk [vmem:[%s280 + $0x8] sm:$0xff] %vm1617, %v1554
      %1620 = vst.msk [vmem:[%s280 + $0x10] sm:$0xff] %vm1617, %v1555
      %1621 = vst.msk [vmem:[%s280 + $0x18] sm:$0xff] %vm1617, %v1556
      %1622 = vst.msk [vmem:[%s280 + $0x20] sm:$0xff] %vm1617, %v1557
      %1623 = vst.msk [vmem:[%s280 + $0x28] sm:$0xff] %vm1617, %v1558
      %1624 = vst.msk [vmem:[%s280 + $0x30] sm:$0xff] %vm1617, %v1559
      %1625 = vst.msk [vmem:[%s280 + $0x38] sm:$0xff] %vm1617, %v1560
      %1626 = vst.msk [vmem:[%s280 + $0x40] sm:$0xff] %vm1617, %v1561
      %1627 = vst.msk [vmem:[%s280 + $0x48] sm:$0xff] %vm1617, %v1562
      %1628 = vst.msk [vmem:[%s280 + $0x50] sm:$0xff] %vm1617, %v1563
      %1629 = vst.msk [vmem:[%s280 + $0x58] sm:$0xff] %vm1617, %v1564
      %1630 = vst.msk [vmem:[%s280 + $0x60] sm:$0xff] %vm1617, %v1565
      %1631 = vst.msk [vmem:[%s280 + $0x68] sm:$0xff] %vm1617, %v1566
      %1632 = vst.msk [vmem:[%s280 + $0x70] sm:$0xff] %vm1617, %v1567
      %1633 = vst.msk [vmem:[%s280 + $0x78] sm:$0xff] %vm1617, %v1568
      %1634 = vst.msk [vmem:[%s280 + $0x80] sm:$0xff] %vm1617, %v1569
      %1635 = vst.msk [vmem:[%s280 + $0x88] sm:$0xff] %vm1617, %v1570
      %1636 = vst.msk [vmem:[%s280 + $0x90] sm:$0xff] %vm1617, %v1571
      %1637 = vst.msk [vmem:[%s280 + $0x98] sm:$0xff] %vm1617, %v1572
      %1638 = vst.msk [vmem:[%s280 + $0xa0] sm:$0xff] %vm1617, %v1573
      %1639 = vst.msk [vmem:[%s280 + $0xa8] sm:$0xff] %vm1617, %v1574
      %1640 = vst.msk [vmem:[%s280 + $0xb0] sm:$0xff] %vm1617, %v1575
      %1641 = vst.msk [vmem:[%s280 + $0xb8] sm:$0xff] %vm1617, %v1576
      %1642 = vst.msk [vmem:[%s280 + $0xc0] sm:$0xff] %vm1617, %v1577
      %1643 = vst.msk [vmem:[%s280 + $0xc8] sm:$0xff] %vm1617, %v1578
      %1644 = vst.msk [vmem:[%s280 + $0xd0] sm:$0xff] %vm1617, %v1579
      %1645 = vst.msk [vmem:[%s280 + $0xd8] sm:$0xff] %vm1617, %v1580
      %1646 = vst.msk [vmem:[%s280 + $0xe0] sm:$0xff] %vm1617, %v1581
      %1647 = vst.msk [vmem:[%s280 + $0xe8] sm:$0xff] %vm1617, %v1582
      %1648 = vst.msk [vmem:[%s280 + $0xf0] sm:$0xff] %vm1617, %v1583
      %1649 = vst.msk [vmem:[%s280 + $0xf8] sm:$0xff] %vm1617, %v1584
      %1650 = vst.msk [vmem:[%s280 + $0x100] sm:$0xff] %vm1617, %v1585
      %1651 = vst.msk [vmem:[%s280 + $0x108] sm:$0xff] %vm1617, %v1586
      %1652 = vst.msk [vmem:[%s280 + $0x110] sm:$0xff] %vm1617, %v1587
      %1653 = vst.msk [vmem:[%s280 + $0x118] sm:$0xff] %vm1617, %v1588
      %1654 = vst.msk [vmem:[%s280 + $0x120] sm:$0xff] %vm1617, %v1589
      %1655 = vst.msk [vmem:[%s280 + $0x128] sm:$0xff] %vm1617, %v1590
      %1656 = vst.msk [vmem:[%s280 + $0x130] sm:$0xff] %vm1617, %v1591
      %1657 = vst.msk [vmem:[%s280 + $0x138] sm:$0xff] %vm1617, %v1592
      %1658 = vst.msk [vmem:[%s280 + $0x140] sm:$0xff] %vm1617, %v1593
      %1659 = vst.msk [vmem:[%s280 + $0x148] sm:$0xff] %vm1617, %v1594
      %1660 = vst.msk [vmem:[%s280 + $0x150] sm:$0xff] %vm1617, %v1595
      %1661 = vst.msk [vmem:[%s280 + $0x158] sm:$0xff] %vm1617, %v1596
      %1662 = vst.msk [vmem:[%s280 + $0x160] sm:$0xff] %vm1617, %v1597
      %1663 = vst.msk [vmem:[%s280 + $0x168] sm:$0xff] %vm1617, %v1598
      %1664 = vst.msk [vmem:[%s280 + $0x170] sm:$0xff] %vm1617, %v1599
      %1665 = vst.msk [vmem:[%s280 + $0x178] sm:$0xff] %vm1617, %v1600
      %1666 = vst.msk [vmem:[%s280 + $0x180] sm:$0xff] %vm1617, %v1601
      %1667 = vst.msk [vmem:[%s280 + $0x188] sm:$0xff] %vm1617, %v1602
      %1668 = vst.msk [vmem:[%s280 + $0x190] sm:$0xff] %vm1617, %v1603
      %1669 = vst.msk [vmem:[%s280 + $0x198] sm:$0xff] %vm1617, %v1604
      %1670 = vst.msk [vmem:[%s280 + $0x1a0] sm:$0xff] %vm1617, %v1605
      %1671 = vst.msk [vmem:[%s280 + $0x1a8] sm:$0xff] %vm1617, %v1606
      %1672 = vst.msk [vmem:[%s280 + $0x1b0] sm:$0xff] %vm1617, %v1607
      %1673 = vst.msk [vmem:[%s280 + $0x1b8] sm:$0xff] %vm1617, %v1608
      %1674 = vst.msk [vmem:[%s280 + $0x1c0] sm:$0xff] %vm1617, %v1609
      %1675 = vst.msk [vmem:[%s280 + $0x1c8] sm:$0xff] %vm1617, %v1610
      %1676 = vst.msk [vmem:[%s280 + $0x1d0] sm:$0xff] %vm1617, %v1611
      %1677 = vst.msk [vmem:[%s280 + $0x1d8] sm:$0xff] %vm1617, %v1612
      %1678 = vst.msk [vmem:[%s280 + $0x1e0] sm:$0xff] %vm1617, %v1613
      %1679 = vst.msk [vmem:[%s280 + $0x1e8] sm:$0xff] %vm1617, %v1614
      %1680 = vst.msk [vmem:[%s280 + $0x1f0] sm:$0xff] %vm1617, %v1615
      %1681 = vst.msk [vmem:[%s280 + $0x1f8] sm:$0xff] %vm1617, %v1616
      %s1682 = smul.u32 64, %s18
      %p1683 = scmp.lt.s32.totalorder %s1682, 127
      %s1684 = scalar_select %p1683, %s1682, 127
      %s1685 = smul.addr %s1684, 8
      %s1686 = scalar_lea.vmem %s7, %s1685
      // Predicated region
      $region49: #{attention_mlp_forward.3} parent=47 // pred_check
        %p1687 = pneg %p188
      $region50: #{attention_mlp_forward.3} parent=47 // pred_check_branch
        %1689 = sbr.rel (%p1687) target = $region52
      $region51: #{attention_mlp_forward.3} parent=47 // pred_region
        %s1690 = smul.u32 64, %s18
      $region52: #{attention_mlp_forward.3} parent=47 // pred_fallthru
        _
    $region48: #{attention_mlp_forward.3} parent=5 // pred_fallthru
      _
    %p1691 = scmp.le.s32.totalorder 2, %s13
    // Predicated region
    $region53: #{attention_mlp_forward.3} parent=5 // pred_check
      %p1692 = pneg %p1691
    $region54: #{attention_mlp_forward.3} parent=5 // pred_check_branch
      %1694 = sbr.rel (%p1692) target = $region56
    $region55: #{attention_mlp_forward.3} parent=5 // pred_region
      %s1695 = ssub.s32 %s13, 2
      // Predicated region
      $region57: #{attention_mlp_forward.3} parent=55 // pred_check
        %p1696 = pneg %p194
      $region58: #{attention_mlp_forward.3} parent=55 // pred_check_branch
        %1698 = sbr.rel (%p1696) target = $region60
      $region59: #{attention_mlp_forward.3} parent=55 // pred_region
        %s1699 = smul.u32 64, %s19
        %p1700 = scmp.lt.s32.totalorder %s1699, 127
        %s1701 = scalar_select %p1700, %s1699, 127
        %s1702 = smul.addr %s1701, 8
        %s1703 = scalar_lea.vmem %s7, %s1702
      $region60: #{attention_mlp_forward.3} parent=55 // pred_fallthru
        _
    $region56: #{attention_mlp_forward.3} parent=5 // pred_fallthru
      _
  $region6: #{attention_mlp_forward.3} parent=0 // loop_footer
    %s17 = sadd.s32 1, %s13
  $region7: #{attention_mlp_forward.3} parent=0 // loop_footer_branch
    %12 = sbr.rel target = $region3
  $region8: #{attention_mlp_forward.3} parent=0 // loop_exit
    _

// kernel: attention_mlp_forward.2
$region0: #{attention_mlp_forward.2}
  #allocation0 [shape = 'u32[]', space=smem, size = 0x4, offset = 0x4, fixed_abs, tag = 'smem constant byte address 0x4 - core index']
  #allocation1 [shape = 'u32[144,128]{1,0:T(1,128)}', space=vmem, size = 0x12000, scoped, tag = 'internal scratch']
  %s0 = inlined_call_operand.vmem [shape: f32[1024,128], index: 0, kind: input, shape index: {}]
  %s1 = inlined_call_operand.vmem [shape: f32[128,64], index: 1, kind: input, shape index: {}]
  %s2 = inlined_call_operand.vmem [shape: f32[1,64], index: 2, kind: input, shape index: {}]
  %s3 = inlined_call_operand.vmem [shape: f32[64,4], index: 3, kind: input, shape index: {}]
  %s4 = inlined_call_operand.vmem [shape: f32[4,64], index: 4, kind: input, shape index: {}]
  %s5 = inlined_call_operand.vmem [shape: f32[2,1,4], index: 5, kind: output, shape index: {0}]
  %s6 = inlined_call_operand.vmem [shape: f32[2,1,4], index: 6, kind: output, shape index: {1}]
  %7 = xla_tuple %s5, %s6
  %s8 = sld [smem:[#allocation0]]
  $region61: #{attention_mlp_forward.2} parent=0
    _
  %s10 = ssub.s32 1, %s8
  %s11 = scalar_select 0, %s10, %s8
  loop: start=0, step=1, limit=4
  $region2: #{attention_mlp_forward.2} parent=0 // loop_pre_header
    _
  $region3: #{attention_mlp_forward.2} parent=0 // loop_header
    %s13 = sphi 0, %s17
    %p14 = scmp.ge.s32.totalorder %s13, 4
    %s23 = sphi 0, %s25
    %s26 = sphi 0, %s23
    %s27 = sphi 0, %s26
    %s43 = sphi 0, %s27
    %s47 = sphi 0, %s47
    %s49 = sphi 0, %s47
    %s50 = sphi 0, %s49
    %s64 = sphi 0, %s50
    %s68 = sphi 0, %s68
    %s70 = sphi 0, %s68
    %s71 = sphi 0, %s70
    %s85 = sphi 0, %s71
    %s89 = sphi 0, %s89
    %s91 = sphi 0, %s89
    %s92 = sphi 0, %s91
    %s106 = sphi 0, %s92
    %s110 = sphi 0, %s110
    %s112 = sphi 0, %s110
    %s113 = sphi 0, %s112
    %s127 = sphi 0, %s113
    %s133 = sphi 0, %s135
    %s136 = sphi 0, %s133
    %s137 = sphi 0, %s136
    %s153 = sphi 0, %s137
    %s159 = sphi 0, %s161
    %s162 = sphi 0, %s159
    %s163 = sphi 0, %s162
    %s179 = sphi 0, %s163
  $region4: #{attention_mlp_forward.2} parent=0 // loop_header_branch
    %16 = sbr.rel (%p14) target = $region8
  $region5: #{attention_mlp_forward.2} parent=0 // loop_body
    %s18 = ssub.s32 %s13, 1
    %s19 = ssub.s32 %s13, 2
    %s20 = sadd.s32 %s13, 1
    %s21 = ssub.s32 %s13, %s20
    %p22 = scmp.eq.s32.totalorder %s21, 0
    %s24 = sadd.s32 %s23, 1
    %s25 = scalar_select %p22, %s23, %s24
    %p28 = pneg %p22
    %p29 = scmp.eq.s32.totalorder %s13, 1
    %p30 = por %p28, %p29
    %p31 = scmp.ne.s32.totalorder %s23, %s26
    %p32 = scmp.eq.s32.totalorder %s13, 0
    %p33 = por %p31, %p32
    %p34 = scmp.ne.s32.totalorder %s23, %s26
    %p35 = scmp.eq.s32.totalorder %s18, 1
    %p36 = por %p34, %p35
    %p37 = scmp.ne.s32.totalorder %s26, %s27
    %p38 = scmp.eq.s32.totalorder %s18, 0
    %p39 = por %p37, %p38
    %p40 = scmp.ne.s32.totalorder %s26, %s27
    %p41 = scmp.eq.s32.totalorder %s19, 1
    %p42 = por %p40, %p41
    %p44 = scmp.ne.s32.totalorder %s27, %s43
    %p45 = scmp.eq.s32.totalorder %s19, 0
    %p46 = por %p44, %p45
    %s48 = sadd.s32 %s47, 1
    %p51 = scmp.eq.s32.totalorder %s13, 1
    %p52 = scmp.ne.s32.totalorder %s47, %s49
    %p53 = scmp.eq.s32.totalorder %s13, 0
    %p54 = por %p52, %p53
    %p55 = scmp.ne.s32.totalorder %s47, %s49
    %p56 = scmp.eq.s32.totalorder %s18, 1
    %p57 = por %p55, %p56
    %p58 = scmp.ne.s32.totalorder %s49, %s50
    %p59 = scmp.eq.s32.totalorder %s18, 0
    %p60 = por %p58, %p59
    %p61 = scmp.ne.s32.totalorder %s49, %s50
    %p62 = scmp.eq.s32.totalorder %s19, 1
    %p63 = por %p61, %p62
    %p65 = scmp.ne.s32.totalorder %s50, %s64
    %p66 = scmp.eq.s32.totalorder %s19, 0
    %p67 = por %p65, %p66
    %s69 = sadd.s32 %s68, 1
    %p72 = scmp.eq.s32.totalorder %s13, 1
    %p73 = scmp.ne.s32.totalorder %s68, %s70
    %p74 = scmp.eq.s32.totalorder %s13, 0
    %p75 = por %p73, %p74
    %p76 = scmp.ne.s32.totalorder %s68, %s70
    %p77 = scmp.eq.s32.totalorder %s18, 1
    %p78 = por %p76, %p77
    %p79 = scmp.ne.s32.totalorder %s70, %s71
    %p80 = scmp.eq.s32.totalorder %s18, 0
    %p81 = por %p79, %p80
    %p82 = scmp.ne.s32.totalorder %s70, %s71
    %p83 = scmp.eq.s32.totalorder %s19, 1
    %p84 = por %p82, %p83
    %p86 = scmp.ne.s32.totalorder %s71, %s85
    %p87 = scmp.eq.s32.totalorder %s19, 0
    %p88 = por %p86, %p87
    %s90 = sadd.s32 %s89, 1
    %p93 = scmp.eq.s32.totalorder %s13, 1
    %p94 = scmp.ne.s32.totalorder %s89, %s91
    %p95 = scmp.eq.s32.totalorder %s13, 0
    %p96 = por %p94, %p95
    %p97 = scmp.ne.s32.totalorder %s89, %s91
    %p98 = scmp.eq.s32.totalorder %s18, 1
    %p99 = por %p97, %p98
    %p100 = scmp.ne.s32.totalorder %s91, %s92
    %p101 = scmp.eq.s32.totalorder %s18, 0
    %p102 = por %p100, %p101
    %p103 = scmp.ne.s32.totalorder %s91, %s92
    %p104 = scmp.eq.s32.totalorder %s19, 1
    %p105 = por %p103, %p104
    %p107 = scmp.ne.s32.totalorder %s92, %s106
    %p108 = scmp.eq.s32.totalorder %s19, 0
    %p109 = por %p107, %p108
    %s111 = sadd.s32 %s110, 1
    %p114 = scmp.eq.s32.totalorder %s13, 1
    %p115 = scmp.ne.s32.totalorder %s110, %s112
    %p116 = scmp.eq.s32.totalorder %s13, 0
    %p117 = por %p115, %p116
    %p118 = scmp.ne.s32.totalorder %s110, %s112
    %p119 = scmp.eq.s32.totalorder %s18, 1
    %p120 = por %p118, %p119
    %p121 = scmp.ne.s32.totalorder %s112, %s113
    %p122 = scmp.eq.s32.totalorder %s18, 0
    %p123 = por %p121, %p122
    %p124 = scmp.ne.s32.totalorder %s112, %s113
    %p125 = scmp.eq.s32.totalorder %s19, 1
    %p126 = por %p124, %p125
    %p128 = scmp.ne.s32.totalorder %s113, %s127
    %p129 = scmp.eq.s32.totalorder %s19, 0
    %p130 = por %p128, %p129
    %s131 = ssub.s32 %s13, %s20
    %p132 = scmp.eq.s32.totalorder %s131, 0
    %s134 = sadd.s32 %s133, 1
    %s135 = scalar_select %p132, %s133, %s134
    %p138 = pneg %p132
    %p139 = scmp.eq.s32.totalorder %s13, 1
    %p140 = por %p138, %p139
    %p141 = scmp.ne.s32.totalorder %s133, %s136
    %p142 = scmp.eq.s32.totalorder %s13, 0
    %p143 = por %p141, %p142
    %p144 = scmp.ne.s32.totalorder %s133, %s136
    %p145 = scmp.eq.s32.totalorder %s18, 1
    %p146 = por %p144, %p145
    %p147 = scmp.ne.s32.totalorder %s136, %s137
    %p148 = scmp.eq.s32.totalorder %s18, 0
    %p149 = por %p147, %p148
    %p150 = scmp.ne.s32.totalorder %s136, %s137
    %p151 = scmp.eq.s32.totalorder %s19, 1
    %p152 = por %p150, %p151
    %p154 = scmp.ne.s32.totalorder %s137, %s153
    %p155 = scmp.eq.s32.totalorder %s19, 0
    %p156 = por %p154, %p155
    %s157 = ssub.s32 %s13, %s20
    %p158 = scmp.eq.s32.totalorder %s157, 0
    %s160 = sadd.s32 %s159, 1
    %s161 = scalar_select %p158, %s159, %s160
    %p164 = pneg %p158
    %p165 = scmp.eq.s32.totalorder %s13, 1
    %p166 = por %p164, %p165
    %p167 = scmp.ne.s32.totalorder %s159, %s162
    %p168 = scmp.eq.s32.totalorder %s13, 0
    %p169 = por %p167, %p168
    %p170 = scmp.ne.s32.totalorder %s159, %s162
    %p171 = scmp.eq.s32.totalorder %s18, 1
    %p172 = por %p170, %p171
    %p173 = scmp.ne.s32.totalorder %s162, %s163
    %p174 = scmp.eq.s32.totalorder %s18, 0
    %p175 = por %p173, %p174
    %p176 = scmp.ne.s32.totalorder %s162, %s163
    %p177 = scmp.eq.s32.totalorder %s19, 1
    %p178 = por %p176, %p177
    %p180 = scmp.ne.s32.totalorder %s163, %s179
    %p181 = scmp.eq.s32.totalorder %s19, 0
    %p182 = por %p180, %p181
    %p183 = scmp.le.s32.totalorder 1, %s13
    %p184 = scmp.lt.s32.totalorder %s13, 3
    %p185 = pnand %p183, %p184
    %p186 = pneg %p185
    // Predicated region
    $region9: #{attention_mlp_forward.2} parent=5 // pred_check
      _
    $region10: #{attention_mlp_forward.2} parent=5 // pred_check_branch
      %188 = sbr.rel (%p185) target = $region12
    $region11: #{attention_mlp_forward.2} parent=5 // pred_region
      %s189 = ssub.s32 %s13, 1
      // Predicated region
      $region13: #{attention_mlp_forward.2} parent=11 // pred_check
        %p190 = pneg %p60
      $region14: #{attention_mlp_forward.2} parent=11 // pred_check_branch
        %192 = sbr.rel (%p190) target = $region16
      $region15: #{attention_mlp_forward.2} parent=11 // pred_region
        _
      $region16: #{attention_mlp_forward.2} parent=11 // pred_fallthru
        _
      // Predicated region
      $region17: #{attention_mlp_forward.2} parent=11 // pred_check
        %p193 = pneg %p81
      $region18: #{attention_mlp_forward.2} parent=11 // pred_check_branch
        %195 = sbr.rel (%p193) target = $region20
      $region19: #{attention_mlp_forward.2} parent=11 // pred_region
        _
      $region20: #{attention_mlp_forward.2} parent=11 // pred_fallthru
        _
      // Predicated region
      $region21: #{attention_mlp_forward.2} parent=11 // pred_check
        %p196 = pneg %p102
      $region22: #{attention_mlp_forward.2} parent=11 // pred_check_branch
        %198 = sbr.rel (%p196) target = $region24
      $region23: #{attention_mlp_forward.2} parent=11 // pred_region
        _
      $region24: #{attention_mlp_forward.2} parent=11 // pred_fallthru
        _
      // Predicated region
      $region25: #{attention_mlp_forward.2} parent=11 // pred_check
        %p199 = pneg %p123
      $region26: #{attention_mlp_forward.2} parent=11 // pred_check_branch
        %201 = sbr.rel (%p199) target = $region28
      $region27: #{attention_mlp_forward.2} parent=11 // pred_region
        _
      $region28: #{attention_mlp_forward.2} parent=11 // pred_fallthru
        _
    $region12: #{attention_mlp_forward.2} parent=5 // pred_fallthru
      _
    %p202 = scmp.lt.s32.totalorder %s13, 2
    // Predicated region
    $region29: #{attention_mlp_forward.2} parent=5 // pred_check
      %p203 = pneg %p202
    $region30: #{attention_mlp_forward.2} parent=5 // pred_check_branch
      %205 = sbr.rel (%p203) target = $region32
    $region31: #{attention_mlp_forward.2} parent=5 // pred_region
      // Predicated region
      $region33: #{attention_mlp_forward.2} parent=31 // pred_check
        %p206 = pneg %p33
      $region34: #{attention_mlp_forward.2} parent=31 // pred_check_branch
        %208 = sbr.rel (%p206) target = $region36
      $region35: #{attention_mlp_forward.2} parent=31 // pred_region
        %s209 = smul.u32 64, %s13
        %p210 = scmp.lt.s32.totalorder %s209, 127
        %s211 = scalar_select %p210, %s209, 127
        %s212 = smul.addr %s211, 8
        %s213 = scalar_lea.vmem %s0, %s212
        %s214 = smul.u32 64, %s13
      $region36: #{attention_mlp_forward.2} parent=31 // pred_fallthru
        _
    $region32: #{attention_mlp_forward.2} parent=5 // pred_fallthru
      _
    %p215 = scmp.le.s32.totalorder 1, %s13
    %p216 = scmp.lt.s32.totalorder %s13, 3
    %p217 = pnand %p215, %p216
    %p218 = pneg %p217
    // Predicated region
    $region37: #{attention_mlp_forward.2} parent=5 // pred_check
      _
    $region38: #{attention_mlp_forward.2} parent=5 // pred_check_branch
      %220 = sbr.rel (%p217) target = $region40
    $region39: #{attention_mlp_forward.2} parent=5 // pred_region
      %s221 = ssub.s32 %s13, 1
      %s222 = smul.u32 64, %s18
      %p223 = scmp.lt.s32.totalorder %s222, 127
      %s224 = scalar_select %p223, %s222, 127
      %s225 = smul.addr %s224, 8
      %s226 = scalar_lea.vmem %s0, %s225
      %p227 = pneg %p39
      %p228 = pneg %p36
      %p229 = pneg %p60
      %p230 = pneg %p57
      %p231 = pneg %p81
      %p232 = pneg %p78
      %p233 = pneg %p102
      %p234 = pneg %p99
      %p235 = pneg %p123
      %p236 = pneg %p120
      %p237 = pneg %p149
      %p238 = pneg %p146
      %p239 = scmp.lt.s32.totalorder %s18, 1
      %s240 = scalar_select %p239, %s18, 1
      %s241 = scalar_lea.vmem %s5, %s240
      %p242 = pneg %p175
      %p243 = pneg %p172
      %p244 = scmp.lt.s32.totalorder %s18, 1
      %s245 = scalar_select %p244, %s18, 1
      %s246 = scalar_lea.vmem %s6, %s245
      %s247 = smul.u32 64, %s18
      %p248 = scmp.lt.s32.totalorder %s247, 127
      %s249 = scalar_select %p248, %s247, 127
      %s250 = smul.addr %s249, 8
      %s251 = scalar_lea.vmem %s0, %s250
      %s252 = smul.u32 64, %s18
      %p253 = scmp.lt.s32.totalorder %s18, 1
      %s254 = scalar_select %p253, %s18, 1
      %s255 = scalar_lea.vmem %s5, %s254
      %p256 = scmp.lt.s32.totalorder %s18, 1
      %s257 = scalar_select %p256, %s18, 1
      %s258 = scalar_lea.vmem %s6, %s257
      %v259 = vld [vmem:[%s251] sm:$0xff]
      %v260 = vld [vmem:[%s251 + $0x8] sm:$0xff]
      %v261 = vld [vmem:[%s251 + $0x10] sm:$0xff]
      %v262 = vld [vmem:[%s251 + $0x18] sm:$0xff]
      %v263 = vld [vmem:[%s251 + $0x20] sm:$0xff]
      %v264 = vld [vmem:[%s251 + $0x28] sm:$0xff]
      %v265 = vld [vmem:[%s251 + $0x30] sm:$0xff]
      %v266 = vld [vmem:[%s251 + $0x38] sm:$0xff]
      %v267 = vld [vmem:[%s251 + $0x40] sm:$0xff]
      %v268 = vld [vmem:[%s251 + $0x48] sm:$0xff]
      %v269 = vld [vmem:[%s251 + $0x50] sm:$0xff]
      %v270 = vld [vmem:[%s251 + $0x58] sm:$0xff]
      %v271 = vld [vmem:[%s251 + $0x60] sm:$0xff]
      %v272 = vld [vmem:[%s251 + $0x68] sm:$0xff]
      %v273 = vld [vmem:[%s251 + $0x70] sm:$0xff]
      %v274 = vld [vmem:[%s251 + $0x78] sm:$0xff]
      %v275 = vld [vmem:[%s251 + $0x80] sm:$0xff]
      %v276 = vld [vmem:[%s251 + $0x88] sm:$0xff]
      %v277 = vld [vmem:[%s251 + $0x90] sm:$0xff]
      %v278 = vld [vmem:[%s251 + $0x98] sm:$0xff]
      %v279 = vld [vmem:[%s251 + $0xa0] sm:$0xff]
      %v280 = vld [vmem:[%s251 + $0xa8] sm:$0xff]
      %v281 = vld [vmem:[%s251 + $0xb0] sm:$0xff]
      %v282 = vld [vmem:[%s251 + $0xb8] sm:$0xff]
      %v283 = vld [vmem:[%s251 + $0xc0] sm:$0xff]
      %v284 = vld [vmem:[%s251 + $0xc8] sm:$0xff]
      %v285 = vld [vmem:[%s251 + $0xd0] sm:$0xff]
      %v286 = vld [vmem:[%s251 + $0xd8] sm:$0xff]
      %v287 = vld [vmem:[%s251 + $0xe0] sm:$0xff]
      %v288 = vld [vmem:[%s251 + $0xe8] sm:$0xff]
      %v289 = vld [vmem:[%s251 + $0xf0] sm:$0xff]
      %v290 = vld [vmem:[%s251 + $0xf8] sm:$0xff]
      %v291 = vld [vmem:[%s251 + $0x100] sm:$0xff]
      %v292 = vld [vmem:[%s251 + $0x108] sm:$0xff]
      %v293 = vld [vmem:[%s251 + $0x110] sm:$0xff]
      %v294 = vld [vmem:[%s251 + $0x118] sm:$0xff]
      %v295 = vld [vmem:[%s251 + $0x120] sm:$0xff]
      %v296 = vld [vmem:[%s251 + $0x128] sm:$0xff]
      %v297 = vld [vmem:[%s251 + $0x130] sm:$0xff]
      %v298 = vld [vmem:[%s251 + $0x138] sm:$0xff]
      %v299 = vld [vmem:[%s251 + $0x140] sm:$0xff]
      %v300 = vld [vmem:[%s251 + $0x148] sm:$0xff]
      %v301 = vld [vmem:[%s251 + $0x150] sm:$0xff]
      %v302 = vld [vmem:[%s251 + $0x158] sm:$0xff]
      %v303 = vld [vmem:[%s251 + $0x160] sm:$0xff]
      %v304 = vld [vmem:[%s251 + $0x168] sm:$0xff]
      %v305 = vld [vmem:[%s251 + $0x170] sm:$0xff]
      %v306 = vld [vmem:[%s251 + $0x178] sm:$0xff]
      %v307 = vld [vmem:[%s251 + $0x180] sm:$0xff]
      %v308 = vld [vmem:[%s251 + $0x188] sm:$0xff]
      %v309 = vld [vmem:[%s251 + $0x190] sm:$0xff]
      %v310 = vld [vmem:[%s251 + $0x198] sm:$0xff]
      %v311 = vld [vmem:[%s251 + $0x1a0] sm:$0xff]
      %v312 = vld [vmem:[%s251 + $0x1a8] sm:$0xff]
      %v313 = vld [vmem:[%s251 + $0x1b0] sm:$0xff]
      %v314 = vld [vmem:[%s251 + $0x1b8] sm:$0xff]
      %v315 = vld [vmem:[%s251 + $0x1c0] sm:$0xff]
      %v316 = vld [vmem:[%s251 + $0x1c8] sm:$0xff]
      %v317 = vld [vmem:[%s251 + $0x1d0] sm:$0xff]
      %v318 = vld [vmem:[%s251 + $0x1d8] sm:$0xff]
      %v319 = vld [vmem:[%s251 + $0x1e0] sm:$0xff]
      %v320 = vld [vmem:[%s251 + $0x1e8] sm:$0xff]
      %v321 = vld [vmem:[%s251 + $0x1f0] sm:$0xff]
      %v322 = vld [vmem:[%s251 + $0x1f8] sm:$0xff]
      %v323 = vld [vmem:[%s1] sm:$0xff]
      %v324 = vld [vmem:[%s1 + $0x8] sm:$0xff]
      %v325 = vld [vmem:[%s1 + $0x10] sm:$0xff]
      %v326 = vld [vmem:[%s1 + $0x18] sm:$0xff]
      %v327 = vld [vmem:[%s1 + $0x20] sm:$0xff]
      %v328 = vld [vmem:[%s1 + $0x28] sm:$0xff]
      %v329 = vld [vmem:[%s1 + $0x30] sm:$0xff]
      %v330 = vld [vmem:[%s1 + $0x38] sm:$0xff]
      %v331 = vld [vmem:[%s1 + $0x40] sm:$0xff]
      %v332 = vld [vmem:[%s1 + $0x48] sm:$0xff]
      %v333 = vld [vmem:[%s1 + $0x50] sm:$0xff]
      %v334 = vld [vmem:[%s1 + $0x58] sm:$0xff]
      %v335 = vld [vmem:[%s1 + $0x60] sm:$0xff]
      %v336 = vld [vmem:[%s1 + $0x68] sm:$0xff]
      %v337 = vld [vmem:[%s1 + $0x70] sm:$0xff]
      %v338 = vld [vmem:[%s1 + $0x78] sm:$0xff]
      %v339 = vld [vmem:[%s2] sm:$0x1]
      %v341 = vlaneseq
      %v342 = vshrl.u32 %v341, 7
      %v343 = vsub.s32 0, %v342
      %v344 = vrot.slane %v339, %v343
      %346 = vmatprep.subr.mxu0 0.0
      %347 = vmatpush1.msra.mxu0 %v338
      %348 = vmatprep.subr.mxu0 0.0
      %349 = vmatpush1.msra.mxu0 %v337
      %350 = vmatprep.subr.mxu0 0.0
      %351 = vmatpush1.msra.mxu0 %v336
      %352 = vmatprep.subr.mxu0 0.0
      %353 = vmatpush1.msra.mxu0 %v335
      %354 = vmatprep.subr.mxu0 0.0
      %355 = vmatpush1.msra.mxu0 %v334
      %356 = vmatprep.subr.mxu0 0.0
      %357 = vmatpush1.msra.mxu0 %v333
      %358 = vmatprep.subr.mxu0 0.0
      %359 = vmatpush1.msra.mxu0 %v332
      %360 = vmatprep.subr.mxu0 0.0
      %361 = vmatpush1.msra.mxu0 %v331
      %362 = vmatprep.subr.mxu0 0.0
      %363 = vmatpush1.msra.mxu0 %v330
      %364 = vmatprep.subr.mxu0 0.0
      %365 = vmatpush1.msra.mxu0 %v329
      %366 = vmatprep.subr.mxu0 0.0
      %367 = vmatpush1.msra.mxu0 %v328
      %368 = vmatprep.subr.mxu0 0.0
      %369 = vmatpush1.msra.mxu0 %v327
      %370 = vmatprep.subr.mxu0 0.0
      %371 = vmatpush1.msra.mxu0 %v326
      %372 = vmatprep.subr.mxu0 0.0
      %373 = vmatpush1.msra.mxu0 %v325
      %374 = vmatprep.subr.mxu0 0.0
      %375 = vmatpush1.msra.mxu0 %v324
      %376 = vmatprep.subr.mxu0 0.0
      %377 = vmatpush1.msra.mxu0 %v323
      %378 = vmatprep.subr.mxu0 0.0
      %379 = vmatpush2.msra.mxu0 0.0
      %380 = vmatprep.subr.mxu0 0.0
      %381 = vmatpush2.msra.mxu0 0.0
      %382 = vmatprep.subr.mxu0 0.0
      %383 = vmatpush2.msra.mxu0 0.0
      %384 = vmatprep.subr.mxu0 0.0
      %385 = vmatpush2.msra.mxu0 0.0
      %386 = vmatprep.subr.mxu0 0.0
      %387 = vmatpush2.msra.mxu0 0.0
      %388 = vmatprep.subr.mxu0 0.0
      %389 = vmatpush2.msra.mxu0 0.0
      %390 = vmatprep.subr.mxu0 0.0
      %391 = vmatpush2.msra.mxu0 0.0
      %392 = vmatprep.subr.mxu0 0.0
      %393 = vmatpush2.msra.mxu0 0.0
      %394 = vmatprep.subr.mxu0 0.0
      %395 = vmatpush2.msra.mxu0 0.0
      %396 = vmatprep.subr.mxu0 0.0
      %397 = vmatpush2.msra.mxu0 0.0
      %398 = vmatprep.subr.mxu0 0.0
      %399 = vmatpush2.msra.mxu0 0.0
      %400 = vmatprep.subr.mxu0 0.0
      %401 = vmatpush2.msra.mxu0 0.0
      %402 = vmatprep.subr.mxu0 0.0
      %403 = vmatpush2.msra.mxu0 0.0
      %404 = vmatprep.subr.mxu0 0.0
      %405 = vmatpush2.msra.mxu0 0.0
      %406 = vmatprep.subr.mxu0 0.0
      %407 = vmatpush2.msra.mxu0 0.0
      %408 = vmatprep.subr.mxu0 0.0
      %409 = vmatpush2.msra.mxu0 0.0
      %410 = vmatprep.mubr.f32.mxu0 0.0
      %411 = vmatmul.mubr.f32.gmra.mxu0 %v259
      %v412 = vpop.f32.mrf.mxu0
      %v413 = vadd.f32 %v344, %v412
      %v414 = vpop.f32.mrf.mxu0
      %415 = vmatprep.mubr.f32.mxu0 0.0
      %416 = vmatmul.mubr.f32.gmra.mxu0 %v260
      %v417 = vpop.f32.mrf.mxu0
      %v418 = vadd.f32 %v344, %v417
      %v419 = vpop.f32.mrf.mxu0
      %420 = vmatprep.mubr.f32.mxu0 0.0
      %421 = vmatmul.mubr.f32.gmra.mxu0 %v261
      %v422 = vpop.f32.mrf.mxu0
      %v423 = vadd.f32 %v344, %v422
      %v424 = vpop.f32.mrf.mxu0
      %425 = vmatprep.mubr.f32.mxu0 0.0
      %426 = vmatmul.mubr.f32.gmra.mxu0 %v262
      %v427 = vpop.f32.mrf.mxu0
      %v428 = vadd.f32 %v344, %v427
      %v429 = vpop.f32.mrf.mxu0
      %430 = vmatprep.mubr.f32.mxu0 0.0
      %431 = vmatmul.mubr.f32.gmra.mxu0 %v263
      %v432 = vpop.f32.mrf.mxu0
      %v433 = vadd.f32 %v344, %v432
      %v434 = vpop.f32.mrf.mxu0
      %435 = vmatprep.mubr.f32.mxu0 0.0
      %436 = vmatmul.mubr.f32.gmra.mxu0 %v264
      %v437 = vpop.f32.mrf.mxu0
      %v438 = vadd.f32 %v344, %v437
      %v439 = vpop.f32.mrf.mxu0
      %440 = vmatprep.mubr.f32.mxu0 0.0
      %441 = vmatmul.mubr.f32.gmra.mxu0 %v265
      %v442 = vpop.f32.mrf.mxu0
      %v443 = vadd.f32 %v344, %v442
      %v444 = vpop.f32.mrf.mxu0
      %445 = vmatprep.mubr.f32.mxu0 0.0
      %446 = vmatmul.mubr.f32.gmra.mxu0 %v266
      %v447 = vpop.f32.mrf.mxu0
      %v448 = vadd.f32 %v344, %v447
      %v449 = vpop.f32.mrf.mxu0
      %450 = vmatprep.mubr.f32.mxu0 0.0
      %451 = vmatmul.mubr.f32.gmra.mxu0 %v267
      %v452 = vpop.f32.mrf.mxu0
      %v453 = vadd.f32 %v344, %v452
      %v454 = vpop.f32.mrf.mxu0
      %455 = vmatprep.mubr.f32.mxu0 0.0
      %456 = vmatmul.mubr.f32.gmra.mxu0 %v268
      %v457 = vpop.f32.mrf.mxu0
      %v458 = vadd.f32 %v344, %v457
      %v459 = vpop.f32.mrf.mxu0
      %460 = vmatprep.mubr.f32.mxu0 0.0
      %461 = vmatmul.mubr.f32.gmra.mxu0 %v269
      %v462 = vpop.f32.mrf.mxu0
      %v463 = vadd.f32 %v344, %v462
      %v464 = vpop.f32.mrf.mxu0
      %465 = vmatprep.mubr.f32.mxu0 0.0
      %466 = vmatmul.mubr.f32.gmra.mxu0 %v270
      %v467 = vpop.f32.mrf.mxu0
      %v468 = vadd.f32 %v344, %v467
      %v469 = vpop.f32.mrf.mxu0
      %470 = vmatprep.mubr.f32.mxu0 0.0
      %471 = vmatmul.mubr.f32.gmra.mxu0 %v271
      %v472 = vpop.f32.mrf.mxu0
      %v473 = vadd.f32 %v344, %v472
      %v474 = vpop.f32.mrf.mxu0
      %475 = vmatprep.mubr.f32.mxu0 0.0
      %476 = vmatmul.mubr.f32.gmra.mxu0 %v272
      %v477 = vpop.f32.mrf.mxu0
      %v478 = vadd.f32 %v344, %v477
      %v479 = vpop.f32.mrf.mxu0
      %480 = vmatprep.mubr.f32.mxu0 0.0
      %481 = vmatmul.mubr.f32.gmra.mxu0 %v273
      %v482 = vpop.f32.mrf.mxu0
      %v483 = vadd.f32 %v344, %v482
      %v484 = vpop.f32.mrf.mxu0
      %485 = vmatprep.mubr.f32.mxu0 0.0
      %486 = vmatmul.mubr.f32.gmra.mxu0 %v274
      %v487 = vpop.f32.mrf.mxu0
      %v488 = vadd.f32 %v344, %v487
      %v489 = vpop.f32.mrf.mxu0
      %490 = vmatprep.mubr.f32.mxu0 0.0
      %491 = vmatmul.mubr.f32.gmra.mxu0 %v275
      %v492 = vpop.f32.mrf.mxu0
      %v493 = vadd.f32 %v344, %v492
      %v494 = vpop.f32.mrf.mxu0
      %495 = vmatprep.mubr.f32.mxu0 0.0
      %496 = vmatmul.mubr.f32.gmra.mxu0 %v276
      %v497 = vpop.f32.mrf.mxu0
      %v498 = vadd.f32 %v344, %v497
      %v499 = vpop.f32.mrf.mxu0
      %500 = vmatprep.mubr.f32.mxu0 0.0
      %501 = vmatmul.mubr.f32.gmra.mxu0 %v277
      %v502 = vpop.f32.mrf.mxu0
      %v503 = vadd.f32 %v344, %v502
      %v504 = vpop.f32.mrf.mxu0
      %505 = vmatprep.mubr.f32.mxu0 0.0
      %506 = vmatmul.mubr.f32.gmra.mxu0 %v278
      %v507 = vpop.f32.mrf.mxu0
      %v508 = vadd.f32 %v344, %v507
      %v509 = vpop.f32.mrf.mxu0
      %510 = vmatprep.mubr.f32.mxu0 0.0
      %511 = vmatmul.mubr.f32.gmra.mxu0 %v279
      %v512 = vpop.f32.mrf.mxu0
      %v513 = vadd.f32 %v344, %v512
      %v514 = vpop.f32.mrf.mxu0
      %515 = vmatprep.mubr.f32.mxu0 0.0
      %516 = vmatmul.mubr.f32.gmra.mxu0 %v280
      %v517 = vpop.f32.mrf.mxu0
      %v518 = vadd.f32 %v344, %v517
      %v519 = vpop.f32.mrf.mxu0
      %520 = vmatprep.mubr.f32.mxu0 0.0
      %521 = vmatmul.mubr.f32.gmra.mxu0 %v281
      %v522 = vpop.f32.mrf.mxu0
      %v523 = vadd.f32 %v344, %v522
      %v524 = vpop.f32.mrf.mxu0
      %525 = vmatprep.mubr.f32.mxu0 0.0
      %526 = vmatmul.mubr.f32.gmra.mxu0 %v282
      %v527 = vpop.f32.mrf.mxu0
      %v528 = vadd.f32 %v344, %v527
      %v529 = vpop.f32.mrf.mxu0
      %530 = vmatprep.mubr.f32.mxu0 0.0
      %531 = vmatmul.mubr.f32.gmra.mxu0 %v283
      %v532 = vpop.f32.mrf.mxu0
      %v533 = vadd.f32 %v344, %v532
      %v534 = vpop.f32.mrf.mxu0
      %535 = vmatprep.mubr.f32.mxu0 0.0
      %536 = vmatmul.mubr.f32.gmra.mxu0 %v284
      %v537 = vpop.f32.mrf.mxu0
      %v538 = vadd.f32 %v344, %v537
      %v539 = vpop.f32.mrf.mxu0
      %540 = vmatprep.mubr.f32.mxu0 0.0
      %541 = vmatmul.mubr.f32.gmra.mxu0 %v285
      %v542 = vpop.f32.mrf.mxu0
      %v543 = vadd.f32 %v344, %v542
      %v544 = vpop.f32.mrf.mxu0
      %545 = vmatprep.mubr.f32.mxu0 0.0
      %546 = vmatmul.mubr.f32.gmra.mxu0 %v286
      %v547 = vpop.f32.mrf.mxu0
      %v548 = vadd.f32 %v344, %v547
      %v549 = vpop.f32.mrf.mxu0
      %550 = vmatprep.mubr.f32.mxu0 0.0
      %551 = vmatmul.mubr.f32.gmra.mxu0 %v287
      %v552 = vpop.f32.mrf.mxu0
      %v553 = vadd.f32 %v344, %v552
      %v554 = vpop.f32.mrf.mxu0
      %555 = vmatprep.mubr.f32.mxu0 0.0
      %556 = vmatmul.mubr.f32.gmra.mxu0 %v288
      %v557 = vpop.f32.mrf.mxu0
      %v558 = vadd.f32 %v344, %v557
      %v559 = vpop.f32.mrf.mxu0
      %560 = vmatprep.mubr.f32.mxu0 0.0
      %561 = vmatmul.mubr.f32.gmra.mxu0 %v289
      %v562 = vpop.f32.mrf.mxu0
      %v563 = vadd.f32 %v344, %v562
      %v564 = vpop.f32.mrf.mxu0
      %565 = vmatprep.mubr.f32.mxu0 0.0
      %566 = vmatmul.mubr.f32.gmra.mxu0 %v290
      %v567 = vpop.f32.mrf.mxu0
      %v568 = vadd.f32 %v344, %v567
      %v569 = vpop.f32.mrf.mxu0
      %570 = vmatprep.mubr.f32.mxu0 0.0
      %571 = vmatmul.mubr.f32.gmra.mxu0 %v291
      %v572 = vpop.f32.mrf.mxu0
      %v573 = vadd.f32 %v344, %v572
      %v574 = vpop.f32.mrf.mxu0
      %575 = vmatprep.mubr.f32.mxu0 0.0
      %576 = vmatmul.mubr.f32.gmra.mxu0 %v292
      %v577 = vpop.f32.mrf.mxu0
      %v578 = vadd.f32 %v344, %v577
      %v579 = vpop.f32.mrf.mxu0
      %580 = vmatprep.mubr.f32.mxu0 0.0
      %581 = vmatmul.mubr.f32.gmra.mxu0 %v293
      %v582 = vpop.f32.mrf.mxu0
      %v583 = vadd.f32 %v344, %v582
      %v584 = vpop.f32.mrf.mxu0
      %585 = vmatprep.mubr.f32.mxu0 0.0
      %586 = vmatmul.mubr.f32.gmra.mxu0 %v294
      %v587 = vpop.f32.mrf.mxu0
      %v588 = vadd.f32 %v344, %v587
      %v589 = vpop.f32.mrf.mxu0
      %590 = vmatprep.mubr.f32.mxu0 0.0
      %591 = vmatmul.mubr.f32.gmra.mxu0 %v295
      %v592 = vpop.f32.mrf.mxu0
      %v593 = vadd.f32 %v344, %v592
      %v594 = vpop.f32.mrf.mxu0
      %595 = vmatprep.mubr.f32.mxu0 0.0
      %596 = vmatmul.mubr.f32.gmra.mxu0 %v296
      %v597 = vpop.f32.mrf.mxu0
      %v598 = vadd.f32 %v344, %v597
      %v599 = vpop.f32.mrf.mxu0
      %600 = vmatprep.mubr.f32.mxu0 0.0
      %601 = vmatmul.mubr.f32.gmra.mxu0 %v297
      %v602 = vpop.f32.mrf.mxu0
      %v603 = vadd.f32 %v344, %v602
      %v604 = vpop.f32.mrf.mxu0
      %605 = vmatprep.mubr.f32.mxu0 0.0
      %606 = vmatmul.mubr.f32.gmra.mxu0 %v298
      %v607 = vpop.f32.mrf.mxu0
      %v608 = vadd.f32 %v344, %v607
      %v609 = vpop.f32.mrf.mxu0
      %610 = vmatprep.mubr.f32.mxu0 0.0
      %611 = vmatmul.mubr.f32.gmra.mxu0 %v299
      %v612 = vpop.f32.mrf.mxu0
      %v613 = vadd.f32 %v344, %v612
      %v614 = vpop.f32.mrf.mxu0
      %615 = vmatprep.mubr.f32.mxu0 0.0
      %616 = vmatmul.mubr.f32.gmra.mxu0 %v300
      %v617 = vpop.f32.mrf.mxu0
      %v618 = vadd.f32 %v344, %v617
      %v619 = vpop.f32.mrf.mxu0
      %620 = vmatprep.mubr.f32.mxu0 0.0
      %621 = vmatmul.mubr.f32.gmra.mxu0 %v301
      %v622 = vpop.f32.mrf.mxu0
      %v623 = vadd.f32 %v344, %v622
      %v624 = vpop.f32.mrf.mxu0
      %625 = vmatprep.mubr.f32.mxu0 0.0
      %626 = vmatmul.mubr.f32.gmra.mxu0 %v302
      %v627 = vpop.f32.mrf.mxu0
      %v628 = vadd.f32 %v344, %v627
      %v629 = vpop.f32.mrf.mxu0
      %630 = vmatprep.mubr.f32.mxu0 0.0
      %631 = vmatmul.mubr.f32.gmra.mxu0 %v303
      %v632 = vpop.f32.mrf.mxu0
      %v633 = vadd.f32 %v344, %v632
      %v634 = vpop.f32.mrf.mxu0
      %635 = vmatprep.mubr.f32.mxu0 0.0
      %636 = vmatmul.mubr.f32.gmra.mxu0 %v304
      %v637 = vpop.f32.mrf.mxu0
      %v638 = vadd.f32 %v344, %v637
      %v639 = vpop.f32.mrf.mxu0
      %640 = vmatprep.mubr.f32.mxu0 0.0
      %641 = vmatmul.mubr.f32.gmra.mxu0 %v305
      %v642 = vpop.f32.mrf.mxu0
      %v643 = vadd.f32 %v344, %v642
      %v644 = vpop.f32.mrf.mxu0
      %645 = vmatprep.mubr.f32.mxu0 0.0
      %646 = vmatmul.mubr.f32.gmra.mxu0 %v306
      %v647 = vpop.f32.mrf.mxu0
      %v648 = vadd.f32 %v344, %v647
      %v649 = vpop.f32.mrf.mxu0
      %650 = vmatprep.mubr.f32.mxu0 0.0
      %651 = vmatmul.mubr.f32.gmra.mxu0 %v307
      %v652 = vpop.f32.mrf.mxu0
      %v653 = vadd.f32 %v344, %v652
      %v654 = vpop.f32.mrf.mxu0
      %655 = vmatprep.mubr.f32.mxu0 0.0
      %656 = vmatmul.mubr.f32.gmra.mxu0 %v308
      %v657 = vpop.f32.mrf.mxu0
      %v658 = vadd.f32 %v344, %v657
      %v659 = vpop.f32.mrf.mxu0
      %660 = vmatprep.mubr.f32.mxu0 0.0
      %661 = vmatmul.mubr.f32.gmra.mxu0 %v309
      %v662 = vpop.f32.mrf.mxu0
      %v663 = vadd.f32 %v344, %v662
      %v664 = vpop.f32.mrf.mxu0
      %665 = vmatprep.mubr.f32.mxu0 0.0
      %666 = vmatmul.mubr.f32.gmra.mxu0 %v310
      %v667 = vpop.f32.mrf.mxu0
      %v668 = vadd.f32 %v344, %v667
      %v669 = vpop.f32.mrf.mxu0
      %670 = vmatprep.mubr.f32.mxu0 0.0
      %671 = vmatmul.mubr.f32.gmra.mxu0 %v311
      %v672 = vpop.f32.mrf.mxu0
      %v673 = vadd.f32 %v344, %v672
      %v674 = vpop.f32.mrf.mxu0
      %675 = vmatprep.mubr.f32.mxu0 0.0
      %676 = vmatmul.mubr.f32.gmra.mxu0 %v312
      %v677 = vpop.f32.mrf.mxu0
      %v678 = vadd.f32 %v344, %v677
      %v679 = vpop.f32.mrf.mxu0
      %680 = vmatprep.mubr.f32.mxu0 0.0
      %681 = vmatmul.mubr.f32.gmra.mxu0 %v313
      %v682 = vpop.f32.mrf.mxu0
      %v683 = vadd.f32 %v344, %v682
      %v684 = vpop.f32.mrf.mxu0
      %685 = vmatprep.mubr.f32.mxu0 0.0
      %686 = vmatmul.mubr.f32.gmra.mxu0 %v314
      %v687 = vpop.f32.mrf.mxu0
      %v688 = vadd.f32 %v344, %v687
      %v689 = vpop.f32.mrf.mxu0
      %690 = vmatprep.mubr.f32.mxu0 0.0
      %691 = vmatmul.mubr.f32.gmra.mxu0 %v315
      %v692 = vpop.f32.mrf.mxu0
      %v693 = vadd.f32 %v344, %v692
      %v694 = vpop.f32.mrf.mxu0
      %695 = vmatprep.mubr.f32.mxu0 0.0
      %696 = vmatmul.mubr.f32.gmra.mxu0 %v316
      %v697 = vpop.f32.mrf.mxu0
      %v698 = vadd.f32 %v344, %v697
      %v699 = vpop.f32.mrf.mxu0
      %700 = vmatprep.mubr.f32.mxu0 0.0
      %701 = vmatmul.mubr.f32.gmra.mxu0 %v317
      %v702 = vpop.f32.mrf.mxu0
      %v703 = vadd.f32 %v344, %v702
      %v704 = vpop.f32.mrf.mxu0
      %705 = vmatprep.mubr.f32.mxu0 0.0
      %706 = vmatmul.mubr.f32.gmra.mxu0 %v318
      %v707 = vpop.f32.mrf.mxu0
      %v708 = vadd.f32 %v344, %v707
      %v709 = vpop.f32.mrf.mxu0
      %710 = vmatprep.mubr.f32.mxu0 0.0
      %711 = vmatmul.mubr.f32.gmra.mxu0 %v319
      %v712 = vpop.f32.mrf.mxu0
      %v713 = vadd.f32 %v344, %v712
      %v714 = vpop.f32.mrf.mxu0
      %715 = vmatprep.mubr.f32.mxu0 0.0
      %716 = vmatmul.mubr.f32.gmra.mxu0 %v320
      %v717 = vpop.f32.mrf.mxu0
      %v718 = vadd.f32 %v344, %v717
      %v719 = vpop.f32.mrf.mxu0
      %720 = vmatprep.mubr.f32.mxu0 0.0
      %721 = vmatmul.mubr.f32.gmra.mxu0 %v321
      %v722 = vpop.f32.mrf.mxu0
      %v723 = vadd.f32 %v344, %v722
      %v724 = vpop.f32.mrf.mxu0
      %725 = vmatprep.mubr.f32.mxu0 0.0
      %726 = vmatmul.mubr.f32.gmra.mxu0 %v322
      %v727 = vpop.f32.mrf.mxu0
      %v728 = vadd.f32 %v344, %v727
      %v729 = vpop.f32.mrf.mxu0
      %730 = vdwg.mxu0
      %v731 = vmax.f32 %v413, 0.0
      %v732 = vmax.f32 %v418, 0.0
      %v733 = vmax.f32 %v423, 0.0
      %v734 = vmax.f32 %v428, 0.0
      %v735 = vmax.f32 %v433, 0.0
      %v736 = vmax.f32 %v438, 0.0
      %v737 = vmax.f32 %v443, 0.0
      %v738 = vmax.f32 %v448, 0.0
      %v739 = vmax.f32 %v453, 0.0
      %v740 = vmax.f32 %v458, 0.0
      %v741 = vmax.f32 %v463, 0.0
      %v742 = vmax.f32 %v468, 0.0
      %v743 = vmax.f32 %v473, 0.0
      %v744 = vmax.f32 %v478, 0.0
      %v745 = vmax.f32 %v483, 0.0
      %v746 = vmax.f32 %v488, 0.0
      %v747 = vmax.f32 %v493, 0.0
      %v748 = vmax.f32 %v498, 0.0
      %v749 = vmax.f32 %v503, 0.0
      %v750 = vmax.f32 %v508, 0.0
      %v751 = vmax.f32 %v513, 0.0
      %v752 = vmax.f32 %v518, 0.0
      %v753 = vmax.f32 %v523, 0.0
      %v754 = vmax.f32 %v528, 0.0
      %v755 = vmax.f32 %v533, 0.0
      %v756 = vmax.f32 %v538, 0.0
      %v757 = vmax.f32 %v543, 0.0
      %v758 = vmax.f32 %v548, 0.0
      %v759 = vmax.f32 %v553, 0.0
      %v760 = vmax.f32 %v558, 0.0
      %v761 = vmax.f32 %v563, 0.0
      %v762 = vmax.f32 %v568, 0.0
      %v763 = vmax.f32 %v573, 0.0
      %v764 = vmax.f32 %v578, 0.0
      %v765 = vmax.f32 %v583, 0.0
      %v766 = vmax.f32 %v588, 0.0
      %v767 = vmax.f32 %v593, 0.0
      %v768 = vmax.f32 %v598, 0.0
      %v769 = vmax.f32 %v603, 0.0
      %v770 = vmax.f32 %v608, 0.0
      %v771 = vmax.f32 %v613, 0.0
      %v772 = vmax.f32 %v618, 0.0
      %v773 = vmax.f32 %v623, 0.0
      %v774 = vmax.f32 %v628, 0.0
      %v775 = vmax.f32 %v633, 0.0
      %v776 = vmax.f32 %v638, 0.0
      %v777 = vmax.f32 %v643, 0.0
      %v778 = vmax.f32 %v648, 0.0
      %v779 = vmax.f32 %v653, 0.0
      %v780 = vmax.f32 %v658, 0.0
      %v781 = vmax.f32 %v663, 0.0
      %v782 = vmax.f32 %v668, 0.0
      %v783 = vmax.f32 %v673, 0.0
      %v784 = vmax.f32 %v678, 0.0
      %v785 = vmax.f32 %v683, 0.0
      %v786 = vmax.f32 %v688, 0.0
      %v787 = vmax.f32 %v693, 0.0
      %v788 = vmax.f32 %v698, 0.0
      %v789 = vmax.f32 %v703, 0.0
      %v790 = vmax.f32 %v708, 0.0
      %v791 = vmax.f32 %v713, 0.0
      %v792 = vmax.f32 %v718, 0.0
      %v793 = vmax.f32 %v723, 0.0
      %v794 = vmax.f32 %v728, 0.0
      %v795 = vlaneseq
      %v796 = vshrl.u32 %v795, 7
      %v797 = vadd.s32 %v796, 8
      %v798 = vadd.s32 %v796, 16
      %v799 = vadd.s32 %v796, 24
      %v800 = vadd.s32 %v796, 32
      %v801 = vadd.s32 %v796, 40
      %v802 = vadd.s32 %v796, 48
      %v803 = vadd.s32 %v796, 56
      %v804 = vadd.s32 %v796, 64
      %v805 = vadd.s32 %v796, 72
      %v806 = vadd.s32 %v796, 80
      %v807 = vadd.s32 %v796, 88
      %v808 = vadd.s32 %v796, 96
      %v809 = vadd.s32 %v796, 104
      %v810 = vadd.s32 %v796, 112
      %v811 = vadd.s32 %v796, 120
      %v812 = vadd.s32 %v796, 128
      %v813 = vadd.s32 %v796, 136
      %v814 = vadd.s32 %v796, 144
      %v815 = vadd.s32 %v796, 152
      %v816 = vadd.s32 %v796, 160
      %v817 = vadd.s32 %v796, 168
      %v818 = vadd.s32 %v796, 176
      %v819 = vadd.s32 %v796, 184
      %v820 = vadd.s32 %v796, 192
      %v821 = vadd.s32 %v796, 200
      %v822 = vadd.s32 %v796, 208
      %v823 = vadd.s32 %v796, 216
      %v824 = vadd.s32 %v796, 224
      %v825 = vadd.s32 %v796, 232
      %v826 = vadd.s32 %v796, 240
      %v827 = vadd.s32 %v796, 248
      %v828 = vadd.s32 %v796, 256
      %v829 = vadd.s32 %v796, 264
      %v830 = vadd.s32 %v796, 272
      %v831 = vadd.s32 %v796, 280
      %v832 = vadd.s32 %v796, 288
      %v833 = vadd.s32 %v796, 296
      %v834 = vadd.s32 %v796, 304
      %v835 = vadd.s32 %v796, 312
      %v836 = vadd.s32 %v796, 320
      %v837 = vadd.s32 %v796, 328
      %v838 = vadd.s32 %v796, 336
      %v839 = vadd.s32 %v796, 344
      %v840 = vadd.s32 %v796, 352
      %v841 = vadd.s32 %v796, 360
      %v842 = vadd.s32 %v796, 368
      %v843 = vadd.s32 %v796, 376
      %v844 = vadd.s32 %v796, 384
      %v845 = vadd.s32 %v796, 392
      %v846 = vadd.s32 %v796, 400
      %v847 = vadd.s32 %v796, 408
      %v848 = vadd.s32 %v796, 416
      %v849 = vadd.s32 %v796, 424
      %v850 = vadd.s32 %v796, 432
      %v851 = vadd.s32 %v796, 440
      %v852 = vadd.s32 %v796, 448
      %v853 = vadd.s32 %v796, 456
      %v854 = vadd.s32 %v796, 464
      %v855 = vadd.s32 %v796, 472
      %v856 = vadd.s32 %v796, 480
      %v857 = vadd.s32 %v796, 488
      %v858 = vadd.s32 %v796, 496
      %v859 = vadd.s32 %v796, 504
      %s860 = smul.u32 %s18, 512
      %v861 = vstv %s860
      %v862 = vadd.s32 %v796, %v861
      %v863 = vadd.s32 %v797, %v861
      %v864 = vadd.s32 %v798, %v861
      %v865 = vadd.s32 %v799, %v861
      %v866 = vadd.s32 %v800, %v861
      %v867 = vadd.s32 %v801, %v861
      %v868 = vadd.s32 %v802, %v861
      %v869 = vadd.s32 %v803, %v861
      %v870 = vadd.s32 %v804, %v861
      %v871 = vadd.s32 %v805, %v861
      %v872 = vadd.s32 %v806, %v861
      %v873 = vadd.s32 %v807, %v861
      %v874 = vadd.s32 %v808, %v861
      %v875 = vadd.s32 %v809, %v861
      %v876 = vadd.s32 %v810, %v861
      %v877 = vadd.s32 %v811, %v861
      %v878 = vadd.s32 %v812, %v861
      %v879 = vadd.s32 %v813, %v861
      %v880 = vadd.s32 %v814, %v861
      %v881 = vadd.s32 %v815, %v861
      %v882 = vadd.s32 %v816, %v861
      %v883 = vadd.s32 %v817, %v861
      %v884 = vadd.s32 %v818, %v861
      %v885 = vadd.s32 %v819, %v861
      %v886 = vadd.s32 %v820, %v861
      %v887 = vadd.s32 %v821, %v861
      %v888 = vadd.s32 %v822, %v861
      %v889 = vadd.s32 %v823, %v861
      %v890 = vadd.s32 %v824, %v861
      %v891 = vadd.s32 %v825, %v861
      %v892 = vadd.s32 %v826, %v861
      %v893 = vadd.s32 %v827, %v861
      %v894 = vadd.s32 %v828, %v861
      %v895 = vadd.s32 %v829, %v861
      %v896 = vadd.s32 %v830, %v861
      %v897 = vadd.s32 %v831, %v861
      %v898 = vadd.s32 %v832, %v861
      %v899 = vadd.s32 %v833, %v861
      %v900 = vadd.s32 %v834, %v861
      %v901 = vadd.s32 %v835, %v861
      %v902 = vadd.s32 %v836, %v861
      %v903 = vadd.s32 %v837, %v861
      %v904 = vadd.s32 %v838, %v861
      %v905 = vadd.s32 %v839, %v861
      %v906 = vadd.s32 %v840, %v861
      %v907 = vadd.s32 %v841, %v861
      %v908 = vadd.s32 %v842, %v861
      %v909 = vadd.s32 %v843, %v861
      %v910 = vadd.s32 %v844, %v861
      %v911 = vadd.s32 %v845, %v861
      %v912 = vadd.s32 %v846, %v861
      %v913 = vadd.s32 %v847, %v861
      %v914 = vadd.s32 %v848, %v861
      %v915 = vadd.s32 %v849, %v861
      %v916 = vadd.s32 %v850, %v861
      %v917 = vadd.s32 %v851, %v861
      %v918 = vadd.s32 %v852, %v861
      %v919 = vadd.s32 %v853, %v861
      %v920 = vadd.s32 %v854, %v861
      %v921 = vadd.s32 %v855, %v861
      %v922 = vadd.s32 %v856, %v861
      %v923 = vadd.s32 %v857, %v861
      %v924 = vadd.s32 %v858, %v861
      %v925 = vadd.s32 %v859, %v861
      %vm926 = vcmp.lt.s32.totalorder %v862, 1000
      %vm927 = vcmp.lt.s32.totalorder %v863, 1000
      %vm928 = vcmp.lt.s32.totalorder %v864, 1000
      %vm929 = vcmp.lt.s32.totalorder %v865, 1000
      %vm930 = vcmp.lt.s32.totalorder %v866, 1000
      %vm931 = vcmp.lt.s32.totalorder %v867, 1000
      %vm932 = vcmp.lt.s32.totalorder %v868, 1000
      %vm933 = vcmp.lt.s32.totalorder %v869, 1000
      %vm934 = vcmp.lt.s32.totalorder %v870, 1000
      %vm935 = vcmp.lt.s32.totalorder %v871, 1000
      %vm936 = vcmp.lt.s32.totalorder %v872, 1000
      %vm937 = vcmp.lt.s32.totalorder %v873, 1000
      %vm938 = vcmp.lt.s32.totalorder %v874, 1000
      %vm939 = vcmp.lt.s32.totalorder %v875, 1000
      %vm940 = vcmp.lt.s32.totalorder %v876, 1000
      %vm941 = vcmp.lt.s32.totalorder %v877, 1000
      %vm942 = vcmp.lt.s32.totalorder %v878, 1000
      %vm943 = vcmp.lt.s32.totalorder %v879, 1000
      %vm944 = vcmp.lt.s32.totalorder %v880, 1000
      %vm945 = vcmp.lt.s32.totalorder %v881, 1000
      %vm946 = vcmp.lt.s32.totalorder %v882, 1000
      %vm947 = vcmp.lt.s32.totalorder %v883, 1000
      %vm948 = vcmp.lt.s32.totalorder %v884, 1000
      %vm949 = vcmp.lt.s32.totalorder %v885, 1000
      %vm950 = vcmp.lt.s32.totalorder %v886, 1000
      %vm951 = vcmp.lt.s32.totalorder %v887, 1000
      %vm952 = vcmp.lt.s32.totalorder %v888, 1000
      %vm953 = vcmp.lt.s32.totalorder %v889, 1000
      %vm954 = vcmp.lt.s32.totalorder %v890, 1000
      %vm955 = vcmp.lt.s32.totalorder %v891, 1000
      %vm956 = vcmp.lt.s32.totalorder %v892, 1000
      %vm957 = vcmp.lt.s32.totalorder %v893, 1000
      %vm958 = vcmp.lt.s32.totalorder %v894, 1000
      %vm959 = vcmp.lt.s32.totalorder %v895, 1000
      %vm960 = vcmp.lt.s32.totalorder %v896, 1000
      %vm961 = vcmp.lt.s32.totalorder %v897, 1000
      %vm962 = vcmp.lt.s32.totalorder %v898, 1000
      %vm963 = vcmp.lt.s32.totalorder %v899, 1000
      %vm964 = vcmp.lt.s32.totalorder %v900, 1000
      %vm965 = vcmp.lt.s32.totalorder %v901, 1000
      %vm966 = vcmp.lt.s32.totalorder %v902, 1000
      %vm967 = vcmp.lt.s32.totalorder %v903, 1000
      %vm968 = vcmp.lt.s32.totalorder %v904, 1000
      %vm969 = vcmp.lt.s32.totalorder %v905, 1000
      %vm970 = vcmp.lt.s32.totalorder %v906, 1000
      %vm971 = vcmp.lt.s32.totalorder %v907, 1000
      %vm972 = vcmp.lt.s32.totalorder %v908, 1000
      %vm973 = vcmp.lt.s32.totalorder %v909, 1000
      %vm974 = vcmp.lt.s32.totalorder %v910, 1000
      %vm975 = vcmp.lt.s32.totalorder %v911, 1000
      %vm976 = vcmp.lt.s32.totalorder %v912, 1000
      %vm977 = vcmp.lt.s32.totalorder %v913, 1000
      %vm978 = vcmp.lt.s32.totalorder %v914, 1000
      %vm979 = vcmp.lt.s32.totalorder %v915, 1000
      %vm980 = vcmp.lt.s32.totalorder %v916, 1000
      %vm981 = vcmp.lt.s32.totalorder %v917, 1000
      %vm982 = vcmp.lt.s32.totalorder %v918, 1000
      %vm983 = vcmp.lt.s32.totalorder %v919, 1000
      %vm984 = vcmp.lt.s32.totalorder %v920, 1000
      %vm985 = vcmp.lt.s32.totalorder %v921, 1000
      %vm986 = vcmp.lt.s32.totalorder %v922, 1000
      %vm987 = vcmp.lt.s32.totalorder %v923, 1000
      %vm988 = vcmp.lt.s32.totalorder %v924, 1000
      %vm989 = vcmp.lt.s32.totalorder %v925, 1000
      %s990 = ssub.s32 1000, %s860
      %p991 = scmp.lt.s32.totalorder %s990, 512
      %s992 = scalar_select %p991, %s990, 512
      %s993 = scvt.s32.f32 %s992
      %s994 = smul.f32 %s993, 16.0
      %v995 = vsel %vm926, 1, 0
      %v996 = vsel %vm927, 1, 0
      %v997 = vsel %vm928, 1, 0
      %v998 = vsel %vm929, 1, 0
      %v999 = vsel %vm930, 1, 0
      %v1000 = vsel %vm931, 1, 0
      %v1001 = vsel %vm932, 1, 0
      %v1002 = vsel %vm933, 1, 0
      %v1003 = vsel %vm934, 1, 0
      %v1004 = vsel %vm935, 1, 0
      %v1005 = vsel %vm936, 1, 0
      %v1006 = vsel %vm937, 1, 0
      %v1007 = vsel %vm938, 1, 0
      %v1008 = vsel %vm939, 1, 0
      %v1009 = vsel %vm940, 1, 0
      %v1010 = vsel %vm941, 1, 0
      %v1011 = vsel %vm942, 1, 0
      %v1012 = vsel %vm943, 1, 0
      %v1013 = vsel %vm944, 1, 0
      %v1014 = vsel %vm945, 1, 0
      %v1015 = vsel %vm946, 1, 0
      %v1016 = vsel %vm947, 1, 0
      %v1017 = vsel %vm948, 1, 0
      %v1018 = vsel %vm949, 1, 0
      %v1019 = vsel %vm950, 1, 0
      %v1020 = vsel %vm951, 1, 0
      %v1021 = vsel %vm952, 1, 0
      %v1022 = vsel %vm953, 1, 0
      %v1023 = vsel %vm954, 1, 0
      %v1024 = vsel %vm955, 1, 0
      %v1025 = vsel %vm956, 1, 0
      %v1026 = vsel %vm957, 1, 0
      %v1027 = vsel %vm958, 1, 0
      %v1028 = vsel %vm959, 1, 0
      %v1029 = vsel %vm960, 1, 0
      %v1030 = vsel %vm961, 1, 0
      %v1031 = vsel %vm962, 1, 0
      %v1032 = vsel %vm963, 1, 0
      %v1033 = vsel %vm964, 1, 0
      %v1034 = vsel %vm965, 1, 0
      %v1035 = vsel %vm966, 1, 0
      %v1036 = vsel %vm967, 1, 0
      %v1037 = vsel %vm968, 1, 0
      %v1038 = vsel %vm969, 1, 0
      %v1039 = vsel %vm970, 1, 0
      %v1040 = vsel %vm971, 1, 0
      %v1041 = vsel %vm972, 1, 0
      %v1042 = vsel %vm973, 1, 0
      %v1043 = vsel %vm974, 1, 0
      %v1044 = vsel %vm975, 1, 0
      %v1045 = vsel %vm976, 1, 0
      %v1046 = vsel %vm977, 1, 0
      %v1047 = vsel %vm978, 1, 0
      %v1048 = vsel %vm979, 1, 0
      %v1049 = vsel %vm980, 1, 0
      %v1050 = vsel %vm981, 1, 0
      %v1051 = vsel %vm982, 1, 0
      %v1052 = vsel %vm983, 1, 0
      %v1053 = vsel %vm984, 1, 0
      %v1054 = vsel %vm985, 1, 0
      %v1055 = vsel %vm986, 1, 0
      %v1056 = vsel %vm987, 1, 0
      %v1057 = vsel %vm988, 1, 0
      %v1058 = vsel %vm989, 1, 0
      %vm1059 = vcmp.eq.s32.totalorder %v995, 1
      %vm1060 = vcmp.eq.s32.totalorder %v996, 1
      %vm1061 = vcmp.eq.s32.totalorder %v997, 1
      %vm1062 = vcmp.eq.s32.totalorder %v998, 1
      %vm1063 = vcmp.eq.s32.totalorder %v999, 1
      %vm1064 = vcmp.eq.s32.totalorder %v1000, 1
      %vm1065 = vcmp.eq.s32.totalorder %v1001, 1
      %vm1066 = vcmp.eq.s32.totalorder %v1002, 1
      %vm1067 = vcmp.eq.s32.totalorder %v1003, 1
      %vm1068 = vcmp.eq.s32.totalorder %v1004, 1
      %vm1069 = vcmp.eq.s32.totalorder %v1005, 1
      %vm1070 = vcmp.eq.s32.totalorder %v1006, 1
      %vm1071 = vcmp.eq.s32.totalorder %v1007, 1
      %vm1072 = vcmp.eq.s32.totalorder %v1008, 1
      %vm1073 = vcmp.eq.s32.totalorder %v1009, 1
      %vm1074 = vcmp.eq.s32.totalorder %v1010, 1
      %vm1075 = vcmp.eq.s32.totalorder %v1011, 1
      %vm1076 = vcmp.eq.s32.totalorder %v1012, 1
      %vm1077 = vcmp.eq.s32.totalorder %v1013, 1
      %vm1078 = vcmp.eq.s32.totalorder %v1014, 1
      %vm1079 = vcmp.eq.s32.totalorder %v1015, 1
      %vm1080 = vcmp.eq.s32.totalorder %v1016, 1
      %vm1081 = vcmp.eq.s32.totalorder %v1017, 1
      %vm1082 = vcmp.eq.s32.totalorder %v1018, 1
      %vm1083 = vcmp.eq.s32.totalorder %v1019, 1
      %vm1084 = vcmp.eq.s32.totalorder %v1020, 1
      %vm1085 = vcmp.eq.s32.totalorder %v1021, 1
      %vm1086 = vcmp.eq.s32.totalorder %v1022, 1
      %vm1087 = vcmp.eq.s32.totalorder %v1023, 1
      %vm1088 = vcmp.eq.s32.totalorder %v1024, 1
      %vm1089 = vcmp.eq.s32.totalorder %v1025, 1
      %vm1090 = vcmp.eq.s32.totalorder %v1026, 1
      %vm1091 = vcmp.eq.s32.totalorder %v1027, 1
      %vm1092 = vcmp.eq.s32.totalorder %v1028, 1
      %vm1093 = vcmp.eq.s32.totalorder %v1029, 1
      %vm1094 = vcmp.eq.s32.totalorder %v1030, 1
      %vm1095 = vcmp.eq.s32.totalorder %v1031, 1
      %vm1096 = vcmp.eq.s32.totalorder %v1032, 1
      %vm1097 = vcmp.eq.s32.totalorder %v1033, 1
      %vm1098 = vcmp.eq.s32.totalorder %v1034, 1
      %vm1099 = vcmp.eq.s32.totalorder %v1035, 1
      %vm1100 = vcmp.eq.s32.totalorder %v1036, 1
      %vm1101 = vcmp.eq.s32.totalorder %v1037, 1
      %vm1102 = vcmp.eq.s32.totalorder %v1038, 1
      %vm1103 = vcmp.eq.s32.totalorder %v1039, 1
      %vm1104 = vcmp.eq.s32.totalorder %v1040, 1
      %vm1105 = vcmp.eq.s32.totalorder %v1041, 1
      %vm1106 = vcmp.eq.s32.totalorder %v1042, 1
      %vm1107 = vcmp.eq.s32.totalorder %v1043, 1
      %vm1108 = vcmp.eq.s32.totalorder %v1044, 1
      %vm1109 = vcmp.eq.s32.totalorder %v1045, 1
      %vm1110 = vcmp.eq.s32.totalorder %v1046, 1
      %vm1111 = vcmp.eq.s32.totalorder %v1047, 1
      %vm1112 = vcmp.eq.s32.totalorder %v1048, 1
      %vm1113 = vcmp.eq.s32.totalorder %v1049, 1
      %vm1114 = vcmp.eq.s32.totalorder %v1050, 1
      %vm1115 = vcmp.eq.s32.totalorder %v1051, 1
      %vm1116 = vcmp.eq.s32.totalorder %v1052, 1
      %vm1117 = vcmp.eq.s32.totalorder %v1053, 1
      %vm1118 = vcmp.eq.s32.totalorder %v1054, 1
      %vm1119 = vcmp.eq.s32.totalorder %v1055, 1
      %vm1120 = vcmp.eq.s32.totalorder %v1056, 1
      %vm1121 = vcmp.eq.s32.totalorder %v1057, 1
      %vm1122 = vcmp.eq.s32.totalorder %v1058, 1
      %v1123 = vsel %vm1059, %v731, 0.0
      %v1124 = vsel %vm1060, %v732, 0.0
      %v1125 = vsel %vm1061, %v733, 0.0
      %v1126 = vsel %vm1062, %v734, 0.0
      %v1127 = vsel %vm1063, %v735, 0.0
      %v1128 = vsel %vm1064, %v736, 0.0
      %v1129 = vsel %vm1065, %v737, 0.0
      %v1130 = vsel %vm1066, %v738, 0.0
      %v1131 = vsel %vm1067, %v739, 0.0
      %v1132 = vsel %vm1068, %v740, 0.0
      %v1133 = vsel %vm1069, %v741, 0.0
      %v1134 = vsel %vm1070, %v742, 0.0
      %v1135 = vsel %vm1071, %v743, 0.0
      %v1136 = vsel %vm1072, %v744, 0.0
      %v1137 = vsel %vm1073, %v745, 0.0
      %v1138 = vsel %vm1074, %v746, 0.0
      %v1139 = vsel %vm1075, %v747, 0.0
      %v1140 = vsel %vm1076, %v748, 0.0
      %v1141 = vsel %vm1077, %v749, 0.0
      %v1142 = vsel %vm1078, %v750, 0.0
      %v1143 = vsel %vm1079, %v751, 0.0
      %v1144 = vsel %vm1080, %v752, 0.0
      %v1145 = vsel %vm1081, %v753, 0.0
      %v1146 = vsel %vm1082, %v754, 0.0
      %v1147 = vsel %vm1083, %v755, 0.0
      %v1148 = vsel %vm1084, %v756, 0.0
      %v1149 = vsel %vm1085, %v757, 0.0
      %v1150 = vsel %vm1086, %v758, 0.0
      %v1151 = vsel %vm1087, %v759, 0.0
      %v1152 = vsel %vm1088, %v760, 0.0
      %v1153 = vsel %vm1089, %v761, 0.0
      %v1154 = vsel %vm1090, %v762, 0.0
      %v1155 = vsel %vm1091, %v763, 0.0
      %v1156 = vsel %vm1092, %v764, 0.0
      %v1157 = vsel %vm1093, %v765, 0.0
      %v1158 = vsel %vm1094, %v766, 0.0
      %v1159 = vsel %vm1095, %v767, 0.0
      %v1160 = vsel %vm1096, %v768, 0.0
      %v1161 = vsel %vm1097, %v769, 0.0
      %v1162 = vsel %vm1098, %v770, 0.0
      %v1163 = vsel %vm1099, %v771, 0.0
      %v1164 = vsel %vm1100, %v772, 0.0
      %v1165 = vsel %vm1101, %v773, 0.0
      %v1166 = vsel %vm1102, %v774, 0.0
      %v1167 = vsel %vm1103, %v775, 0.0
      %v1168 = vsel %vm1104, %v776, 0.0
      %v1169 = vsel %vm1105, %v777, 0.0
      %v1170 = vsel %vm1106, %v778, 0.0
      %v1171 = vsel %vm1107, %v779, 0.0
      %v1172 = vsel %vm1108, %v780, 0.0
      %v1173 = vsel %vm1109, %v781, 0.0
      %v1174 = vsel %vm1110, %v782, 0.0
      %v1175 = vsel %vm1111, %v783, 0.0
      %v1176 = vsel %vm1112, %v784, 0.0
      %v1177 = vsel %vm1113, %v785, 0.0
      %v1178 = vsel %vm1114, %v786, 0.0
      %v1179 = vsel %vm1115, %v787, 0.0
      %v1180 = vsel %vm1116, %v788, 0.0
      %v1181 = vsel %vm1117, %v789, 0.0
      %v1182 = vsel %vm1118, %v790, 0.0
      %v1183 = vsel %vm1119, %v791, 0.0
      %v1184 = vsel %vm1120, %v792, 0.0
      %v1185 = vsel %vm1121, %v793, 0.0
      %v1186 = vsel %vm1122, %v794, 0.0
      %v1187 = vld [vmem:[%s3] sm:$0xff]
      %v1188 = vld [vmem:[%s3 + $0x8] sm:$0xff]
      %v1189 = vld [vmem:[%s3 + $0x10] sm:$0xff]
      %v1190 = vld [vmem:[%s3 + $0x18] sm:$0xff]
      %v1191 = vld [vmem:[%s3 + $0x20] sm:$0xff]
      %v1192 = vld [vmem:[%s3 + $0x28] sm:$0xff]
      %v1193 = vld [vmem:[%s3 + $0x30] sm:$0xff]
      %v1194 = vld [vmem:[%s3 + $0x38] sm:$0xff]
      %vm1195 = vcmask 523264
      %v1197 = vsel %vm1195, %v1123, 0
      %v1200 = vsel %vm1195, %v1124, 0
      %v1203 = vsel %vm1195, %v1125, 0
      %v1206 = vsel %vm1195, %v1126, 0
      %v1209 = vsel %vm1195, %v1127, 0
      %v1212 = vsel %vm1195, %v1128, 0
      %v1215 = vsel %vm1195, %v1129, 0
      %v1218 = vsel %vm1195, %v1130, 0
      %v1221 = vsel %vm1195, %v1131, 0
      %v1224 = vsel %vm1195, %v1132, 0
      %v1227 = vsel %vm1195, %v1133, 0
      %v1230 = vsel %vm1195, %v1134, 0
      %v1233 = vsel %vm1195, %v1135, 0
      %v1236 = vsel %vm1195, %v1136, 0
      %v1239 = vsel %vm1195, %v1137, 0
      %v1242 = vsel %vm1195, %v1138, 0
      %v1245 = vsel %vm1195, %v1139, 0
      %v1248 = vsel %vm1195, %v1140, 0
      %v1251 = vsel %vm1195, %v1141, 0
      %v1254 = vsel %vm1195, %v1142, 0
      %v1257 = vsel %vm1195, %v1143, 0
      %v1260 = vsel %vm1195, %v1144, 0
      %v1263 = vsel %vm1195, %v1145, 0
      %v1266 = vsel %vm1195, %v1146, 0
      %v1269 = vsel %vm1195, %v1147, 0
      %v1272 = vsel %vm1195, %v1148, 0
      %v1275 = vsel %vm1195, %v1149, 0
      %v1278 = vsel %vm1195, %v1150, 0
      %v1281 = vsel %vm1195, %v1151, 0
      %v1284 = vsel %vm1195, %v1152, 0
      %v1287 = vsel %vm1195, %v1153, 0
      %v1290 = vsel %vm1195, %v1154, 0
      %v1293 = vsel %vm1195, %v1155, 0
      %v1296 = vsel %vm1195, %v1156, 0
      %v1299 = vsel %vm1195, %v1157, 0
      %v1302 = vsel %vm1195, %v1158, 0
      %v1305 = vsel %vm1195, %v1159, 0
      %v1308 = vsel %vm1195, %v1160, 0
      %v1311 = vsel %vm1195, %v1161, 0
      %v1314 = vsel %vm1195, %v1162, 0
      %v1317 = vsel %vm1195, %v1163, 0
      %v1320 = vsel %vm1195, %v1164, 0
      %v1323 = vsel %vm1195, %v1165, 0
      %v1326 = vsel %vm1195, %v1166, 0
      %v1329 = vsel %vm1195, %v1167, 0
      %v1332 = vsel %vm1195, %v1168, 0
      %v1335 = vsel %vm1195, %v1169, 0
      %v1338 = vsel %vm1195, %v1170, 0
      %v1341 = vsel %vm1195, %v1171, 0
      %v1344 = vsel %vm1195, %v1172, 0
      %v1347 = vsel %vm1195, %v1173, 0
      %v1350 = vsel %vm1195, %v1174, 0
      %v1353 = vsel %vm1195, %v1175, 0
      %v1356 = vsel %vm1195, %v1176, 0
      %v1359 = vsel %vm1195, %v1177, 0
      %v1362 = vsel %vm1195, %v1178, 0
      %v1365 = vsel %vm1195, %v1179, 0
      %v1368 = vsel %vm1195, %v1180, 0
      %v1371 = vsel %vm1195, %v1181, 0
      %v1374 = vsel %vm1195, %v1182, 0
      %v1377 = vsel %vm1195, %v1183, 0
      %v1380 = vsel %vm1195, %v1184, 0
      %v1383 = vsel %vm1195, %v1185, 0
      %v1386 = vsel %vm1195, %v1186, 0
      %1388 = vmatprep.subr.mxu0 0.0
      %1389 = vmatpush1.msra.mxu0 0.0
      %1390 = vmatprep.subr.mxu0 0.0
      %1391 = vmatpush1.msra.mxu0 0.0
      %1392 = vmatprep.subr.mxu0 0.0
      %1393 = vmatpush1.msra.mxu0 0.0
      %1394 = vmatprep.subr.mxu0 0.0
      %1395 = vmatpush1.msra.mxu0 0.0
      %1396 = vmatprep.subr.mxu0 0.0
      %1397 = vmatpush1.msra.mxu0 0.0
      %1398 = vmatprep.subr.mxu0 0.0
      %1399 = vmatpush1.msra.mxu0 0.0
      %1400 = vmatprep.subr.mxu0 0.0
      %1401 = vmatpush1.msra.mxu0 0.0
      %1402 = vmatprep.subr.mxu0 0.0
      %1403 = vmatpush1.msra.mxu0 0.0
      %1404 = vmatprep.subr.mxu0 0.0
      %1405 = vmatpush1.msra.mxu0 %v1194
      %1406 = vmatprep.subr.mxu0 0.0
      %1407 = vmatpush1.msra.mxu0 %v1193
      %1408 = vmatprep.subr.mxu0 0.0
      %1409 = vmatpush1.msra.mxu0 %v1192
      %1410 = vmatprep.subr.mxu0 0.0
      %1411 = vmatpush1.msra.mxu0 %v1191
      %1412 = vmatprep.subr.mxu0 0.0
      %1413 = vmatpush1.msra.mxu0 %v1190
      %1414 = vmatprep.subr.mxu0 0.0
      %1415 = vmatpush1.msra.mxu0 %v1189
      %1416 = vmatprep.subr.mxu0 0.0
      %1417 = vmatpush1.msra.mxu0 %v1188
      %1418 = vmatprep.subr.mxu0 0.0
      %1419 = vmatpush1.msra.mxu0 %v1187
      %1420 = vmatprep.subr.mxu0 0.0
      %1421 = vmatpush2.msra.mxu0 0.0
      %1422 = vmatprep.subr.mxu0 0.0
      %1423 = vmatpush2.msra.mxu0 0.0
      %1424 = vmatprep.subr.mxu0 0.0
      %1425 = vmatpush2.msra.mxu0 0.0
      %1426 = vmatprep.subr.mxu0 0.0
      %1427 = vmatpush2.msra.mxu0 0.0
      %1428 = vmatprep.subr.mxu0 0.0
      %1429 = vmatpush2.msra.mxu0 0.0
      %1430 = vmatprep.subr.mxu0 0.0
      %1431 = vmatpush2.msra.mxu0 0.0
      %1432 = vmatprep.subr.mxu0 0.0
      %1433 = vmatpush2.msra.mxu0 0.0
      %1434 = vmatprep.subr.mxu0 0.0
      %1435 = vmatpush2.msra.mxu0 0.0
      %1436 = vmatprep.subr.mxu0 0.0
      %1437 = vmatpush2.msra.mxu0 0.0
      %1438 = vmatprep.subr.mxu0 0.0
      %1439 = vmatpush2.msra.mxu0 0.0
      %1440 = vmatprep.subr.mxu0 0.0
      %1441 = vmatpush2.msra.mxu0 0.0
      %1442 = vmatprep.subr.mxu0 0.0
      %1443 = vmatpush2.msra.mxu0 0.0
      %1444 = vmatprep.subr.mxu0 0.0
      %1445 = vmatpush2.msra.mxu0 0.0
      %1446 = vmatprep.subr.mxu0 0.0
      %1447 = vmatpush2.msra.mxu0 0.0
      %1448 = vmatprep.subr.mxu0 0.0
      %1449 = vmatpush2.msra.mxu0 0.0
      %1450 = vmatprep.subr.mxu0 0.0
      %1451 = vmatpush2.msra.mxu0 0.0
      %1452 = vmatprep.mubr.f32.mxu0 0.0
      %1453 = vmatmul.mubr.f32.gmra.mxu0 %v1197
      %v1454 = vpop.f32.mrf.mxu0
      %v1455 = vadd.f32 0.0, %v1454
      %v1456 = vpop.f32.mrf.mxu0
      %1457 = vmatprep.mubr.f32.mxu0 0.0
      %1458 = vmatmul.mubr.f32.gmra.mxu0 %v1200
      %v1459 = vpop.f32.mrf.mxu0
      %v1460 = vadd.f32 0.0, %v1459
      %v1461 = vpop.f32.mrf.mxu0
      %1462 = vmatprep.mubr.f32.mxu0 0.0
      %1463 = vmatmul.mubr.f32.gmra.mxu0 %v1203
      %v1464 = vpop.f32.mrf.mxu0
      %v1465 = vadd.f32 0.0, %v1464
      %v1466 = vpop.f32.mrf.mxu0
      %1467 = vmatprep.mubr.f32.mxu0 0.0
      %1468 = vmatmul.mubr.f32.gmra.mxu0 %v1206
      %v1469 = vpop.f32.mrf.mxu0
      %v1470 = vadd.f32 0.0, %v1469
      %v1471 = vpop.f32.mrf.mxu0
      %1472 = vmatprep.mubr.f32.mxu0 0.0
      %1473 = vmatmul.mubr.f32.gmra.mxu0 %v1209
      %v1474 = vpop.f32.mrf.mxu0
      %v1475 = vadd.f32 0.0, %v1474
      %v1476 = vpop.f32.mrf.mxu0
      %1477 = vmatprep.mubr.f32.mxu0 0.0
      %1478 = vmatmul.mubr.f32.gmra.mxu0 %v1212
      %v1479 = vpop.f32.mrf.mxu0
      %v1480 = vadd.f32 0.0, %v1479
      %v1481 = vpop.f32.mrf.mxu0
      %1482 = vmatprep.mubr.f32.mxu0 0.0
      %1483 = vmatmul.mubr.f32.gmra.mxu0 %v1215
      %v1484 = vpop.f32.mrf.mxu0
      %v1485 = vadd.f32 0.0, %v1484
      %v1486 = vpop.f32.mrf.mxu0
      %1487 = vmatprep.mubr.f32.mxu0 0.0
      %1488 = vmatmul.mubr.f32.gmra.mxu0 %v1218
      %v1489 = vpop.f32.mrf.mxu0
      %v1490 = vadd.f32 0.0, %v1489
      %v1491 = vpop.f32.mrf.mxu0
      %1492 = vmatprep.mubr.f32.mxu0 0.0
      %1493 = vmatmul.mubr.f32.gmra.mxu0 %v1221
      %v1494 = vpop.f32.mrf.mxu0
      %v1495 = vadd.f32 0.0, %v1494
      %v1496 = vpop.f32.mrf.mxu0
      %1497 = vmatprep.mubr.f32.mxu0 0.0
      %1498 = vmatmul.mubr.f32.gmra.mxu0 %v1224
      %v1499 = vpop.f32.mrf.mxu0
      %v1500 = vadd.f32 0.0, %v1499
      %v1501 = vpop.f32.mrf.mxu0
      %1502 = vmatprep.mubr.f32.mxu0 0.0
      %1503 = vmatmul.mubr.f32.gmra.mxu0 %v1227
      %v1504 = vpop.f32.mrf.mxu0
      %v1505 = vadd.f32 0.0, %v1504
      %v1506 = vpop.f32.mrf.mxu0
      %1507 = vmatprep.mubr.f32.mxu0 0.0
      %1508 = vmatmul.mubr.f32.gmra.mxu0 %v1230
      %v1509 = vpop.f32.mrf.mxu0
      %v1510 = vadd.f32 0.0, %v1509
      %v1511 = vpop.f32.mrf.mxu0
      %1512 = vmatprep.mubr.f32.mxu0 0.0
      %1513 = vmatmul.mubr.f32.gmra.mxu0 %v1233
      %v1514 = vpop.f32.mrf.mxu0
      %v1515 = vadd.f32 0.0, %v1514
      %v1516 = vpop.f32.mrf.mxu0
      %1517 = vmatprep.mubr.f32.mxu0 0.0
      %1518 = vmatmul.mubr.f32.gmra.mxu0 %v1236
      %v1519 = vpop.f32.mrf.mxu0
      %v1520 = vadd.f32 0.0, %v1519
      %v1521 = vpop.f32.mrf.mxu0
      %1522 = vmatprep.mubr.f32.mxu0 0.0
      %1523 = vmatmul.mubr.f32.gmra.mxu0 %v1239
      %v1524 = vpop.f32.mrf.mxu0
      %v1525 = vadd.f32 0.0, %v1524
      %v1526 = vpop.f32.mrf.mxu0
      %1527 = vmatprep.mubr.f32.mxu0 0.0
      %1528 = vmatmul.mubr.f32.gmra.mxu0 %v1242
      %v1529 = vpop.f32.mrf.mxu0
      %v1530 = vadd.f32 0.0, %v1529
      %v1531 = vpop.f32.mrf.mxu0
      %1532 = vmatprep.mubr.f32.mxu0 0.0
      %1533 = vmatmul.mubr.f32.gmra.mxu0 %v1245
      %v1534 = vpop.f32.mrf.mxu0
      %v1535 = vadd.f32 0.0, %v1534
      %v1536 = vpop.f32.mrf.mxu0
      %1537 = vmatprep.mubr.f32.mxu0 0.0
      %1538 = vmatmul.mubr.f32.gmra.mxu0 %v1248
      %v1539 = vpop.f32.mrf.mxu0
      %v1540 = vadd.f32 0.0, %v1539
      %v1541 = vpop.f32.mrf.mxu0
      %1542 = vmatprep.mubr.f32.mxu0 0.0
      %1543 = vmatmul.mubr.f32.gmra.mxu0 %v1251
      %v1544 = vpop.f32.mrf.mxu0
      %v1545 = vadd.f32 0.0, %v1544
      %v1546 = vpop.f32.mrf.mxu0
      %1547 = vmatprep.mubr.f32.mxu0 0.0
      %1548 = vmatmul.mubr.f32.gmra.mxu0 %v1254
      %v1549 = vpop.f32.mrf.mxu0
      %v1550 = vadd.f32 0.0, %v1549
      %v1551 = vpop.f32.mrf.mxu0
      %1552 = vmatprep.mubr.f32.mxu0 0.0
      %1553 = vmatmul.mubr.f32.gmra.mxu0 %v1257
      %v1554 = vpop.f32.mrf.mxu0
      %v1555 = vadd.f32 0.0, %v1554
      %v1556 = vpop.f32.mrf.mxu0
      %1557 = vmatprep.mubr.f32.mxu0 0.0
      %1558 = vmatmul.mubr.f32.gmra.mxu0 %v1260
      %v1559 = vpop.f32.mrf.mxu0
      %v1560 = vadd.f32 0.0, %v1559
      %v1561 = vpop.f32.mrf.mxu0
      %1562 = vmatprep.mubr.f32.mxu0 0.0
      %1563 = vmatmul.mubr.f32.gmra.mxu0 %v1263
      %v1564 = vpop.f32.mrf.mxu0
      %v1565 = vadd.f32 0.0, %v1564
      %v1566 = vpop.f32.mrf.mxu0
      %1567 = vmatprep.mubr.f32.mxu0 0.0
      %1568 = vmatmul.mubr.f32.gmra.mxu0 %v1266
      %v1569 = vpop.f32.mrf.mxu0
      %v1570 = vadd.f32 0.0, %v1569
      %v1571 = vpop.f32.mrf.mxu0
      %1572 = vmatprep.mubr.f32.mxu0 0.0
      %1573 = vmatmul.mubr.f32.gmra.mxu0 %v1269
      %v1574 = vpop.f32.mrf.mxu0
      %v1575 = vadd.f32 0.0, %v1574
      %v1576 = vpop.f32.mrf.mxu0
      %1577 = vmatprep.mubr.f32.mxu0 0.0
      %1578 = vmatmul.mubr.f32.gmra.mxu0 %v1272
      %v1579 = vpop.f32.mrf.mxu0
      %v1580 = vadd.f32 0.0, %v1579
      %v1581 = vpop.f32.mrf.mxu0
      %1582 = vmatprep.mubr.f32.mxu0 0.0
      %1583 = vmatmul.mubr.f32.gmra.mxu0 %v1275
      %v1584 = vpop.f32.mrf.mxu0
      %v1585 = vadd.f32 0.0, %v1584
      %v1586 = vpop.f32.mrf.mxu0
      %1587 = vmatprep.mubr.f32.mxu0 0.0
      %1588 = vmatmul.mubr.f32.gmra.mxu0 %v1278
      %v1589 = vpop.f32.mrf.mxu0
      %v1590 = vadd.f32 0.0, %v1589
      %v1591 = vpop.f32.mrf.mxu0
      %1592 = vmatprep.mubr.f32.mxu0 0.0
      %1593 = vmatmul.mubr.f32.gmra.mxu0 %v1281
      %v1594 = vpop.f32.mrf.mxu0
      %v1595 = vadd.f32 0.0, %v1594
      %v1596 = vpop.f32.mrf.mxu0
      %1597 = vmatprep.mubr.f32.mxu0 0.0
      %1598 = vmatmul.mubr.f32.gmra.mxu0 %v1284
      %v1599 = vpop.f32.mrf.mxu0
      %v1600 = vadd.f32 0.0, %v1599
      %v1601 = vpop.f32.mrf.mxu0
      %1602 = vmatprep.mubr.f32.mxu0 0.0
      %1603 = vmatmul.mubr.f32.gmra.mxu0 %v1287
      %v1604 = vpop.f32.mrf.mxu0
      %v1605 = vadd.f32 0.0, %v1604
      %v1606 = vpop.f32.mrf.mxu0
      %1607 = vmatprep.mubr.f32.mxu0 0.0
      %1608 = vmatmul.mubr.f32.gmra.mxu0 %v1290
      %v1609 = vpop.f32.mrf.mxu0
      %v1610 = vadd.f32 0.0, %v1609
      %v1611 = vpop.f32.mrf.mxu0
      %1612 = vmatprep.mubr.f32.mxu0 0.0
      %1613 = vmatmul.mubr.f32.gmra.mxu0 %v1293
      %v1614 = vpop.f32.mrf.mxu0
      %v1615 = vadd.f32 0.0, %v1614
      %v1616 = vpop.f32.mrf.mxu0
      %1617 = vmatprep.mubr.f32.mxu0 0.0
      %1618 = vmatmul.mubr.f32.gmra.mxu0 %v1296
      %v1619 = vpop.f32.mrf.mxu0
      %v1620 = vadd.f32 0.0, %v1619
      %v1621 = vpop.f32.mrf.mxu0
      %1622 = vmatprep.mubr.f32.mxu0 0.0
      %1623 = vmatmul.mubr.f32.gmra.mxu0 %v1299
      %v1624 = vpop.f32.mrf.mxu0
      %v1625 = vadd.f32 0.0, %v1624
      %v1626 = vpop.f32.mrf.mxu0
      %1627 = vmatprep.mubr.f32.mxu0 0.0
      %1628 = vmatmul.mubr.f32.gmra.mxu0 %v1302
      %v1629 = vpop.f32.mrf.mxu0
      %v1630 = vadd.f32 0.0, %v1629
      %v1631 = vpop.f32.mrf.mxu0
      %1632 = vmatprep.mubr.f32.mxu0 0.0
      %1633 = vmatmul.mubr.f32.gmra.mxu0 %v1305
      %v1634 = vpop.f32.mrf.mxu0
      %v1635 = vadd.f32 0.0, %v1634
      %v1636 = vpop.f32.mrf.mxu0
      %1637 = vmatprep.mubr.f32.mxu0 0.0
      %1638 = vmatmul.mubr.f32.gmra.mxu0 %v1308
      %v1639 = vpop.f32.mrf.mxu0
      %v1640 = vadd.f32 0.0, %v1639
      %v1641 = vpop.f32.mrf.mxu0
      %1642 = vmatprep.mubr.f32.mxu0 0.0
      %1643 = vmatmul.mubr.f32.gmra.mxu0 %v1311
      %v1644 = vpop.f32.mrf.mxu0
      %v1645 = vadd.f32 0.0, %v1644
      %v1646 = vpop.f32.mrf.mxu0
      %1647 = vmatprep.mubr.f32.mxu0 0.0
      %1648 = vmatmul.mubr.f32.gmra.mxu0 %v1314
      %v1649 = vpop.f32.mrf.mxu0
      %v1650 = vadd.f32 0.0, %v1649
      %v1651 = vpop.f32.mrf.mxu0
      %1652 = vmatprep.mubr.f32.mxu0 0.0
      %1653 = vmatmul.mubr.f32.gmra.mxu0 %v1317
      %v1654 = vpop.f32.mrf.mxu0
      %v1655 = vadd.f32 0.0, %v1654
      %v1656 = vpop.f32.mrf.mxu0
      %1657 = vmatprep.mubr.f32.mxu0 0.0
      %1658 = vmatmul.mubr.f32.gmra.mxu0 %v1320
      %v1659 = vpop.f32.mrf.mxu0
      %v1660 = vadd.f32 0.0, %v1659
      %v1661 = vpop.f32.mrf.mxu0
      %1662 = vmatprep.mubr.f32.mxu0 0.0
      %1663 = vmatmul.mubr.f32.gmra.mxu0 %v1323
      %v1664 = vpop.f32.mrf.mxu0
      %v1665 = vadd.f32 0.0, %v1664
      %v1666 = vpop.f32.mrf.mxu0
      %1667 = vmatprep.mubr.f32.mxu0 0.0
      %1668 = vmatmul.mubr.f32.gmra.mxu0 %v1326
      %v1669 = vpop.f32.mrf.mxu0
      %v1670 = vadd.f32 0.0, %v1669
      %v1671 = vpop.f32.mrf.mxu0
      %1672 = vmatprep.mubr.f32.mxu0 0.0
      %1673 = vmatmul.mubr.f32.gmra.mxu0 %v1329
      %v1674 = vpop.f32.mrf.mxu0
      %v1675 = vadd.f32 0.0, %v1674
      %v1676 = vpop.f32.mrf.mxu0
      %1677 = vmatprep.mubr.f32.mxu0 0.0
      %1678 = vmatmul.mubr.f32.gmra.mxu0 %v1332
      %v1679 = vpop.f32.mrf.mxu0
      %v1680 = vadd.f32 0.0, %v1679
      %v1681 = vpop.f32.mrf.mxu0
      %1682 = vmatprep.mubr.f32.mxu0 0.0
      %1683 = vmatmul.mubr.f32.gmra.mxu0 %v1335
      %v1684 = vpop.f32.mrf.mxu0
      %v1685 = vadd.f32 0.0, %v1684
      %v1686 = vpop.f32.mrf.mxu0
      %1687 = vmatprep.mubr.f32.mxu0 0.0
      %1688 = vmatmul.mubr.f32.gmra.mxu0 %v1338
      %v1689 = vpop.f32.mrf.mxu0
      %v1690 = vadd.f32 0.0, %v1689
      %v1691 = vpop.f32.mrf.mxu0
      %1692 = vmatprep.mubr.f32.mxu0 0.0
      %1693 = vmatmul.mubr.f32.gmra.mxu0 %v1341
      %v1694 = vpop.f32.mrf.mxu0
      %v1695 = vadd.f32 0.0, %v1694
      %v1696 = vpop.f32.mrf.mxu0
      %1697 = vmatprep.mubr.f32.mxu0 0.0
      %1698 = vmatmul.mubr.f32.gmra.mxu0 %v1344
      %v1699 = vpop.f32.mrf.mxu0
      %v1700 = vadd.f32 0.0, %v1699
      %v1701 = vpop.f32.mrf.mxu0
      %1702 = vmatprep.mubr.f32.mxu0 0.0
      %1703 = vmatmul.mubr.f32.gmra.mxu0 %v1347
      %v1704 = vpop.f32.mrf.mxu0
      %v1705 = vadd.f32 0.0, %v1704
      %v1706 = vpop.f32.mrf.mxu0
      %1707 = vmatprep.mubr.f32.mxu0 0.0
      %1708 = vmatmul.mubr.f32.gmra.mxu0 %v1350
      %v1709 = vpop.f32.mrf.mxu0
      %v1710 = vadd.f32 0.0, %v1709
      %v1711 = vpop.f32.mrf.mxu0
      %1712 = vmatprep.mubr.f32.mxu0 0.0
      %1713 = vmatmul.mubr.f32.gmra.mxu0 %v1353
      %v1714 = vpop.f32.mrf.mxu0
      %v1715 = vadd.f32 0.0, %v1714
      %v1716 = vpop.f32.mrf.mxu0
      %1717 = vmatprep.mubr.f32.mxu0 0.0
      %1718 = vmatmul.mubr.f32.gmra.mxu0 %v1356
      %v1719 = vpop.f32.mrf.mxu0
      %v1720 = vadd.f32 0.0, %v1719
      %v1721 = vpop.f32.mrf.mxu0
      %1722 = vmatprep.mubr.f32.mxu0 0.0
      %1723 = vmatmul.mubr.f32.gmra.mxu0 %v1359
      %v1724 = vpop.f32.mrf.mxu0
      %v1725 = vadd.f32 0.0, %v1724
      %v1726 = vpop.f32.mrf.mxu0
      %1727 = vmatprep.mubr.f32.mxu0 0.0
      %1728 = vmatmul.mubr.f32.gmra.mxu0 %v1362
      %v1729 = vpop.f32.mrf.mxu0
      %v1730 = vadd.f32 0.0, %v1729
      %v1731 = vpop.f32.mrf.mxu0
      %1732 = vmatprep.mubr.f32.mxu0 0.0
      %1733 = vmatmul.mubr.f32.gmra.mxu0 %v1365
      %v1734 = vpop.f32.mrf.mxu0
      %v1735 = vadd.f32 0.0, %v1734
      %v1736 = vpop.f32.mrf.mxu0
      %1737 = vmatprep.mubr.f32.mxu0 0.0
      %1738 = vmatmul.mubr.f32.gmra.mxu0 %v1368
      %v1739 = vpop.f32.mrf.mxu0
      %v1740 = vadd.f32 0.0, %v1739
      %v1741 = vpop.f32.mrf.mxu0
      %1742 = vmatprep.mubr.f32.mxu0 0.0
      %1743 = vmatmul.mubr.f32.gmra.mxu0 %v1371
      %v1744 = vpop.f32.mrf.mxu0
      %v1745 = vadd.f32 0.0, %v1744
      %v1746 = vpop.f32.mrf.mxu0
      %1747 = vmatprep.mubr.f32.mxu0 0.0
      %1748 = vmatmul.mubr.f32.gmra.mxu0 %v1374
      %v1749 = vpop.f32.mrf.mxu0
      %v1750 = vadd.f32 0.0, %v1749
      %v1751 = vpop.f32.mrf.mxu0
      %1752 = vmatprep.mubr.f32.mxu0 0.0
      %1753 = vmatmul.mubr.f32.gmra.mxu0 %v1377
      %v1754 = vpop.f32.mrf.mxu0
      %v1755 = vadd.f32 0.0, %v1754
      %v1756 = vpop.f32.mrf.mxu0
      %1757 = vmatprep.mubr.f32.mxu0 0.0
      %1758 = vmatmul.mubr.f32.gmra.mxu0 %v1380
      %v1759 = vpop.f32.mrf.mxu0
      %v1760 = vadd.f32 0.0, %v1759
      %v1761 = vpop.f32.mrf.mxu0
      %1762 = vmatprep.mubr.f32.mxu0 0.0
      %1763 = vmatmul.mubr.f32.gmra.mxu0 %v1383
      %v1764 = vpop.f32.mrf.mxu0
      %v1765 = vadd.f32 0.0, %v1764
      %v1766 = vpop.f32.mrf.mxu0
      %1767 = vmatprep.mubr.f32.mxu0 0.0
      %1768 = vmatmul.mubr.f32.gmra.mxu0 %v1386
      %v1769 = vpop.f32.mrf.mxu0
      %v1770 = vadd.f32 0.0, %v1769
      %v1771 = vpop.f32.mrf.mxu0
      %1772 = vdwg.mxu0
      %vm1773 = vcmask 31744
      %v1774 = vsel %vm1773, %v1455, 0.0
      %v1775 = vsel %vm1773, %v1460, 0.0
      %v1776 = vadd.f32 %v1774, %v1775
      %v1777 = vsel %vm1773, %v1465, 0.0
      %v1778 = vadd.f32 %v1776, %v1777
      %v1779 = vsel %vm1773, %v1470, 0.0
      %v1780 = vadd.f32 %v1778, %v1779
      %v1781 = vsel %vm1773, %v1475, 0.0
      %v1782 = vadd.f32 %v1780, %v1781
      %v1783 = vsel %vm1773, %v1480, 0.0
      %v1784 = vadd.f32 %v1782, %v1783
      %v1785 = vsel %vm1773, %v1485, 0.0
      %v1786 = vadd.f32 %v1784, %v1785
      %v1787 = vsel %vm1773, %v1490, 0.0
      %v1788 = vadd.f32 %v1786, %v1787
      %v1789 = vsel %vm1773, %v1495, 0.0
      %v1790 = vadd.f32 %v1788, %v1789
      %v1791 = vsel %vm1773, %v1500, 0.0
      %v1792 = vadd.f32 %v1790, %v1791
      %v1793 = vsel %vm1773, %v1505, 0.0
      %v1794 = vadd.f32 %v1792, %v1793
      %v1795 = vsel %vm1773, %v1510, 0.0
      %v1796 = vadd.f32 %v1794, %v1795
      %v1797 = vsel %vm1773, %v1515, 0.0
      %v1798 = vadd.f32 %v1796, %v1797
      %v1799 = vsel %vm1773, %v1520, 0.0
      %v1800 = vadd.f32 %v1798, %v1799
      %v1801 = vsel %vm1773, %v1525, 0.0
      %v1802 = vadd.f32 %v1800, %v1801
      %v1803 = vsel %vm1773, %v1530, 0.0
      %v1804 = vadd.f32 %v1802, %v1803
      %v1805 = vsel %vm1773, %v1535, 0.0
      %v1806 = vadd.f32 %v1804, %v1805
      %v1807 = vsel %vm1773, %v1540, 0.0
      %v1808 = vadd.f32 %v1806, %v1807
      %v1809 = vsel %vm1773, %v1545, 0.0
      %v1810 = vadd.f32 %v1808, %v1809
      %v1811 = vsel %vm1773, %v1550, 0.0
      %v1812 = vadd.f32 %v1810, %v1811
      %v1813 = vsel %vm1773, %v1555, 0.0
      %v1814 = vadd.f32 %v1812, %v1813
      %v1815 = vsel %vm1773, %v1560, 0.0
      %v1816 = vadd.f32 %v1814, %v1815
      %v1817 = vsel %vm1773, %v1565, 0.0
      %v1818 = vadd.f32 %v1816, %v1817
      %v1819 = vsel %vm1773, %v1570, 0.0
      %v1820 = vadd.f32 %v1818, %v1819
      %v1821 = vsel %vm1773, %v1575, 0.0
      %v1822 = vadd.f32 %v1820, %v1821
      %v1823 = vsel %vm1773, %v1580, 0.0
      %v1824 = vadd.f32 %v1822, %v1823
      %v1825 = vsel %vm1773, %v1585, 0.0
      %v1826 = vadd.f32 %v1824, %v1825
      %v1827 = vsel %vm1773, %v1590, 0.0
      %v1828 = vadd.f32 %v1826, %v1827
      %v1829 = vsel %vm1773, %v1595, 0.0
      %v1830 = vadd.f32 %v1828, %v1829
      %v1831 = vsel %vm1773, %v1600, 0.0
      %v1832 = vadd.f32 %v1830, %v1831
      %v1833 = vsel %vm1773, %v1605, 0.0
      %v1834 = vadd.f32 %v1832, %v1833
      %v1835 = vsel %vm1773, %v1610, 0.0
      %v1836 = vadd.f32 %v1834, %v1835
      %v1837 = vsel %vm1773, %v1615, 0.0
      %v1838 = vadd.f32 %v1836, %v1837
      %v1839 = vsel %vm1773, %v1620, 0.0
      %v1840 = vadd.f32 %v1838, %v1839
      %v1841 = vsel %vm1773, %v1625, 0.0
      %v1842 = vadd.f32 %v1840, %v1841
      %v1843 = vsel %vm1773, %v1630, 0.0
      %v1844 = vadd.f32 %v1842, %v1843
      %v1845 = vsel %vm1773, %v1635, 0.0
      %v1846 = vadd.f32 %v1844, %v1845
      %v1847 = vsel %vm1773, %v1640, 0.0
      %v1848 = vadd.f32 %v1846, %v1847
      %v1849 = vsel %vm1773, %v1645, 0.0
      %v1850 = vadd.f32 %v1848, %v1849
      %v1851 = vsel %vm1773, %v1650, 0.0
      %v1852 = vadd.f32 %v1850, %v1851
      %v1853 = vsel %vm1773, %v1655, 0.0
      %v1854 = vadd.f32 %v1852, %v1853
      %v1855 = vsel %vm1773, %v1660, 0.0
      %v1856 = vadd.f32 %v1854, %v1855
      %v1857 = vsel %vm1773, %v1665, 0.0
      %v1858 = vadd.f32 %v1856, %v1857
      %v1859 = vsel %vm1773, %v1670, 0.0
      %v1860 = vadd.f32 %v1858, %v1859
      %v1861 = vsel %vm1773, %v1675, 0.0
      %v1862 = vadd.f32 %v1860, %v1861
      %v1863 = vsel %vm1773, %v1680, 0.0
      %v1864 = vadd.f32 %v1862, %v1863
      %v1865 = vsel %vm1773, %v1685, 0.0
      %v1866 = vadd.f32 %v1864, %v1865
      %v1867 = vsel %vm1773, %v1690, 0.0
      %v1868 = vadd.f32 %v1866, %v1867
      %v1869 = vsel %vm1773, %v1695, 0.0
      %v1870 = vadd.f32 %v1868, %v1869
      %v1871 = vsel %vm1773, %v1700, 0.0
      %v1872 = vadd.f32 %v1870, %v1871
      %v1873 = vsel %vm1773, %v1705, 0.0
      %v1874 = vadd.f32 %v1872, %v1873
      %v1875 = vsel %vm1773, %v1710, 0.0
      %v1876 = vadd.f32 %v1874, %v1875
      %v1877 = vsel %vm1773, %v1715, 0.0
      %v1878 = vadd.f32 %v1876, %v1877
      %v1879 = vsel %vm1773, %v1720, 0.0
      %v1880 = vadd.f32 %v1878, %v1879
      %v1881 = vsel %vm1773, %v1725, 0.0
      %v1882 = vadd.f32 %v1880, %v1881
      %v1883 = vsel %vm1773, %v1730, 0.0
      %v1884 = vadd.f32 %v1882, %v1883
      %v1885 = vsel %vm1773, %v1735, 0.0
      %v1886 = vadd.f32 %v1884, %v1885
      %v1887 = vsel %vm1773, %v1740, 0.0
      %v1888 = vadd.f32 %v1886, %v1887
      %v1889 = vsel %vm1773, %v1745, 0.0
      %v1890 = vadd.f32 %v1888, %v1889
      %v1891 = vsel %vm1773, %v1750, 0.0
      %v1892 = vadd.f32 %v1890, %v1891
      %v1893 = vsel %vm1773, %v1755, 0.0
      %v1894 = vadd.f32 %v1892, %v1893
      %v1895 = vsel %vm1773, %v1760, 0.0
      %v1896 = vadd.f32 %v1894, %v1895
      %v1897 = vsel %vm1773, %v1765, 0.0
      %v1898 = vadd.f32 %v1896, %v1897
      %v1899 = vsel %vm1773, %v1770, 0.0
      %v1900 = vadd.f32 %v1898, %v1899
      %v1901 = vrot.slane %v1900, 4
      %v1902 = vadd.f32 %v1900, %v1901
      %v1903 = vrot.slane %v1902, 2
      %v1904 = vadd.f32 %v1902, %v1903
      %v1905 = vrot.slane %v1904, 1
      %v1906 = vadd.f32 %v1904, %v1905
      %v1907 = vstv %s994
      %v1908 = vrcp.pop %v1907
      %v1909 = vmul.f32 %v1906, %v1908
      %v1910 = vld [vmem:[%s4] sm:$0xf]
      %v1912 = vsel %vm1773, %v1909, 0
      %vm1914 = vcmask 1043456
      %v1916 = vsel %vm1914, %v1910, 0
      %1918 = vmatprep.subr.mxu0 0.0
      %1919 = vmatpush1.msra.mxu0 0.0
      %1920 = vmatprep.subr.mxu0 0.0
      %1921 = vmatpush1.msra.mxu0 0.0
      %1922 = vmatprep.subr.mxu0 0.0
      %1923 = vmatpush1.msra.mxu0 0.0
      %1924 = vmatprep.subr.mxu0 0.0
      %1925 = vmatpush1.msra.mxu0 0.0
      %1926 = vmatprep.subr.mxu0 0.0
      %1927 = vmatpush1.msra.mxu0 0.0
      %1928 = vmatprep.subr.mxu0 0.0
      %1929 = vmatpush1.msra.mxu0 0.0
      %1930 = vmatprep.subr.mxu0 0.0
      %1931 = vmatpush1.msra.mxu0 0.0
      %1932 = vmatprep.subr.mxu0 0.0
      %1933 = vmatpush1.msra.mxu0 0.0
      %1934 = vmatprep.subr.mxu0 0.0
      %1935 = vmatpush1.msra.mxu0 0.0
      %1936 = vmatprep.subr.mxu0 0.0
      %1937 = vmatpush1.msra.mxu0 0.0
      %1938 = vmatprep.subr.mxu0 0.0
      %1939 = vmatpush1.msra.mxu0 0.0
      %1940 = vmatprep.subr.mxu0 0.0
      %1941 = vmatpush1.msra.mxu0 0.0
      %1942 = vmatprep.subr.mxu0 0.0
      %1943 = vmatpush1.msra.mxu0 0.0
      %1944 = vmatprep.subr.mxu0 0.0
      %1945 = vmatpush1.msra.mxu0 0.0
      %1946 = vmatprep.subr.mxu0 0.0
      %1947 = vmatpush1.msra.mxu0 0.0
      %1948 = vmatprep.subr.mxu0 0.0
      %1949 = vmatpush1.msra.mxu0 %v1916
      %1950 = vmatprep.subr.mxu0 0.0
      %1951 = vmatpush2.msra.mxu0 0.0
      %1952 = vmatprep.subr.mxu0 0.0
      %1953 = vmatpush2.msra.mxu0 0.0
      %1954 = vmatprep.subr.mxu0 0.0
      %1955 = vmatpush2.msra.mxu0 0.0
      %1956 = vmatprep.subr.mxu0 0.0
      %1957 = vmatpush2.msra.mxu0 0.0
      %1958 = vmatprep.subr.mxu0 0.0
      %1959 = vmatpush2.msra.mxu0 0.0
      %1960 = vmatprep.subr.mxu0 0.0
      %1961 = vmatpush2.msra.mxu0 0.0
      %1962 = vmatprep.subr.mxu0 0.0
      %1963 = vmatpush2.msra.mxu0 0.0
      %1964 = vmatprep.subr.mxu0 0.0
      %1965 = vmatpush2.msra.mxu0 0.0
      %1966 = vmatprep.subr.mxu0 0.0
      %1967 = vmatpush2.msra.mxu0 0.0
      %1968 = vmatprep.subr.mxu0 0.0
      %1969 = vmatpush2.msra.mxu0 0.0
      %1970 = vmatprep.subr.mxu0 0.0
      %1971 = vmatpush2.msra.mxu0 0.0
      %1972 = vmatprep.subr.mxu0 0.0
      %1973 = vmatpush2.msra.mxu0 0.0
      %1974 = vmatprep.subr.mxu0 0.0
      %1975 = vmatpush2.msra.mxu0 0.0
      %1976 = vmatprep.subr.mxu0 0.0
      %1977 = vmatpush2.msra.mxu0 0.0
      %1978 = vmatprep.subr.mxu0 0.0
      %1979 = vmatpush2.msra.mxu0 0.0
      %1980 = vmatprep.subr.mxu0 0.0
      %1981 = vmatpush2.msra.mxu0 0.0
      %1982 = vmatprep.mubr.f32.mxu0 0.0
      %1983 = vmatmul.mubr.f32.gmra.mxu0 %v1912
      %v1984 = vpop.f32.mrf.mxu0
      %v1985 = vadd.f32 0.0, %v1984
      %v1986 = vpop.f32.mrf.mxu0
      %1987 = vdwg.mxu0
      %v1988 = vlaneseq
      %v1989 = vshrl.u32 %v1988, 7
      %v1990 = vsub.s32 0, %v1989
      %v1991 = vrot.slane %v1985, %v1990
      %v1992 = vsub.f32 %v731, %v1991
      %v1993 = vsub.f32 %v732, %v1991
      %v1994 = vsub.f32 %v733, %v1991
      %v1995 = vsub.f32 %v734, %v1991
      %v1996 = vsub.f32 %v735, %v1991
      %v1997 = vsub.f32 %v736, %v1991
      %v1998 = vsub.f32 %v737, %v1991
      %v1999 = vsub.f32 %v738, %v1991
      %v2000 = vsub.f32 %v739, %v1991
      %v2001 = vsub.f32 %v740, %v1991
      %v2002 = vsub.f32 %v741, %v1991
      %v2003 = vsub.f32 %v742, %v1991
      %v2004 = vsub.f32 %v743, %v1991
      %v2005 = vsub.f32 %v744, %v1991
      %v2006 = vsub.f32 %v745, %v1991
      %v2007 = vsub.f32 %v746, %v1991
      %v2008 = vsub.f32 %v747, %v1991
      %v2009 = vsub.f32 %v748, %v1991
      %v2010 = vsub.f32 %v749, %v1991
      %v2011 = vsub.f32 %v750, %v1991
      %v2012 = vsub.f32 %v751, %v1991
      %v2013 = vsub.f32 %v752, %v1991
      %v2014 = vsub.f32 %v753, %v1991
      %v2015 = vsub.f32 %v754, %v1991
      %v2016 = vsub.f32 %v755, %v1991
      %v2017 = vsub.f32 %v756, %v1991
      %v2018 = vsub.f32 %v757, %v1991
      %v2019 = vsub.f32 %v758, %v1991
      %v2020 = vsub.f32 %v759, %v1991
      %v2021 = vsub.f32 %v760, %v1991
      %v2022 = vsub.f32 %v761, %v1991
      %v2023 = vsub.f32 %v762, %v1991
      %v2024 = vsub.f32 %v763, %v1991
      %v2025 = vsub.f32 %v764, %v1991
      %v2026 = vsub.f32 %v765, %v1991
      %v2027 = vsub.f32 %v766, %v1991
      %v2028 = vsub.f32 %v767, %v1991
      %v2029 = vsub.f32 %v768, %v1991
      %v2030 = vsub.f32 %v769, %v1991
      %v2031 = vsub.f32 %v770, %v1991
      %v2032 = vsub.f32 %v771, %v1991
      %v2033 = vsub.f32 %v772, %v1991
      %v2034 = vsub.f32 %v773, %v1991
      %v2035 = vsub.f32 %v774, %v1991
      %v2036 = vsub.f32 %v775, %v1991
      %v2037 = vsub.f32 %v776, %v1991
      %v2038 = vsub.f32 %v777, %v1991
      %v2039 = vsub.f32 %v778, %v1991
      %v2040 = vsub.f32 %v779, %v1991
      %v2041 = vsub.f32 %v780, %v1991
      %v2042 = vsub.f32 %v781, %v1991
      %v2043 = vsub.f32 %v782, %v1991
      %v2044 = vsub.f32 %v783, %v1991
      %v2045 = vsub.f32 %v784, %v1991
      %v2046 = vsub.f32 %v785, %v1991
      %v2047 = vsub.f32 %v786, %v1991
      %v2048 = vsub.f32 %v787, %v1991
      %v2049 = vsub.f32 %v788, %v1991
      %v2050 = vsub.f32 %v789, %v1991
      %v2051 = vsub.f32 %v790, %v1991
      %v2052 = vsub.f32 %v791, %v1991
      %v2053 = vsub.f32 %v792, %v1991
      %v2054 = vsub.f32 %v793, %v1991
      %v2055 = vsub.f32 %v794, %v1991
      %v2056 = vsel %vm1059, %v1992, 0.0
      %v2057 = vsel %vm1060, %v1993, 0.0
      %v2058 = vsel %vm1061, %v1994, 0.0
      %v2059 = vsel %vm1062, %v1995, 0.0
      %v2060 = vsel %vm1063, %v1996, 0.0
      %v2061 = vsel %vm1064, %v1997, 0.0
      %v2062 = vsel %vm1065, %v1998, 0.0
      %v2063 = vsel %vm1066, %v1999, 0.0
      %v2064 = vsel %vm1067, %v2000, 0.0
      %v2065 = vsel %vm1068, %v2001, 0.0
      %v2066 = vsel %vm1069, %v2002, 0.0
      %v2067 = vsel %vm1070, %v2003, 0.0
      %v2068 = vsel %vm1071, %v2004, 0.0
      %v2069 = vsel %vm1072, %v2005, 0.0
      %v2070 = vsel %vm1073, %v2006, 0.0
      %v2071 = vsel %vm1074, %v2007, 0.0
      %v2072 = vsel %vm1075, %v2008, 0.0
      %v2073 = vsel %vm1076, %v2009, 0.0
      %v2074 = vsel %vm1077, %v2010, 0.0
      %v2075 = vsel %vm1078, %v2011, 0.0
      %v2076 = vsel %vm1079, %v2012, 0.0
      %v2077 = vsel %vm1080, %v2013, 0.0
      %v2078 = vsel %vm1081, %v2014, 0.0
      %v2079 = vsel %vm1082, %v2015, 0.0
      %v2080 = vsel %vm1083, %v2016, 0.0
      %v2081 = vsel %vm1084, %v2017, 0.0
      %v2082 = vsel %vm1085, %v2018, 0.0
      %v2083 = vsel %vm1086, %v2019, 0.0
      %v2084 = vsel %vm1087, %v2020, 0.0
      %v2085 = vsel %vm1088, %v2021, 0.0
      %v2086 = vsel %vm1089, %v2022, 0.0
      %v2087 = vsel %vm1090, %v2023, 0.0
      %v2088 = vsel %vm1091, %v2024, 0.0
      %v2089 = vsel %vm1092, %v2025, 0.0
      %v2090 = vsel %vm1093, %v2026, 0.0
      %v2091 = vsel %vm1094, %v2027, 0.0
      %v2092 = vsel %vm1095, %v2028, 0.0
      %v2093 = vsel %vm1096, %v2029, 0.0
      %v2094 = vsel %vm1097, %v2030, 0.0
      %v2095 = vsel %vm1098, %v2031, 0.0
      %v2096 = vsel %vm1099, %v2032, 0.0
      %v2097 = vsel %vm1100, %v2033, 0.0
      %v2098 = vsel %vm1101, %v2034, 0.0
      %v2099 = vsel %vm1102, %v2035, 0.0
      %v2100 = vsel %vm1103, %v2036, 0.0
      %v2101 = vsel %vm1104, %v2037, 0.0
      %v2102 = vsel %vm1105, %v2038, 0.0
      %v2103 = vsel %vm1106, %v2039, 0.0
      %v2104 = vsel %vm1107, %v2040, 0.0
      %v2105 = vsel %vm1108, %v2041, 0.0
      %v2106 = vsel %vm1109, %v2042, 0.0
      %v2107 = vsel %vm1110, %v2043, 0.0
      %v2108 = vsel %vm1111, %v2044, 0.0
      %v2109 = vsel %vm1112, %v2045, 0.0
      %v2110 = vsel %vm1113, %v2046, 0.0
      %v2111 = vsel %vm1114, %v2047, 0.0
      %v2112 = vsel %vm1115, %v2048, 0.0
      %v2113 = vsel %vm1116, %v2049, 0.0
      %v2114 = vsel %vm1117, %v2050, 0.0
      %v2115 = vsel %vm1118, %v2051, 0.0
      %v2116 = vsel %vm1119, %v2052, 0.0
      %v2117 = vsel %vm1120, %v2053, 0.0
      %v2118 = vsel %vm1121, %v2054, 0.0
      %v2119 = vsel %vm1122, %v2055, 0.0
      %v2120 = vmul.f32 %v2056, %v2056
      %v2121 = vmul.f32 %v2057, %v2057
      %v2122 = vmul.f32 %v2058, %v2058
      %v2123 = vmul.f32 %v2059, %v2059
      %v2124 = vmul.f32 %v2060, %v2060
      %v2125 = vmul.f32 %v2061, %v2061
      %v2126 = vmul.f32 %v2062, %v2062
      %v2127 = vmul.f32 %v2063, %v2063
      %v2128 = vmul.f32 %v2064, %v2064
      %v2129 = vmul.f32 %v2065, %v2065
      %v2130 = vmul.f32 %v2066, %v2066
      %v2131 = vmul.f32 %v2067, %v2067
      %v2132 = vmul.f32 %v2068, %v2068
      %v2133 = vmul.f32 %v2069, %v2069
      %v2134 = vmul.f32 %v2070, %v2070
      %v2135 = vmul.f32 %v2071, %v2071
      %v2136 = vmul.f32 %v2072, %v2072
      %v2137 = vmul.f32 %v2073, %v2073
      %v2138 = vmul.f32 %v2074, %v2074
      %v2139 = vmul.f32 %v2075, %v2075
      %v2140 = vmul.f32 %v2076, %v2076
      %v2141 = vmul.f32 %v2077, %v2077
      %v2142 = vmul.f32 %v2078, %v2078
      %v2143 = vmul.f32 %v2079, %v2079
      %v2144 = vmul.f32 %v2080, %v2080
      %v2145 = vmul.f32 %v2081, %v2081
      %v2146 = vmul.f32 %v2082, %v2082
      %v2147 = vmul.f32 %v2083, %v2083
      %v2148 = vmul.f32 %v2084, %v2084
      %v2149 = vmul.f32 %v2085, %v2085
      %v2150 = vmul.f32 %v2086, %v2086
      %v2151 = vmul.f32 %v2087, %v2087
      %v2152 = vmul.f32 %v2088, %v2088
      %v2153 = vmul.f32 %v2089, %v2089
      %v2154 = vmul.f32 %v2090, %v2090
      %v2155 = vmul.f32 %v2091, %v2091
      %v2156 = vmul.f32 %v2092, %v2092
      %v2157 = vmul.f32 %v2093, %v2093
      %v2158 = vmul.f32 %v2094, %v2094
      %v2159 = vmul.f32 %v2095, %v2095
      %v2160 = vmul.f32 %v2096, %v2096
      %v2161 = vmul.f32 %v2097, %v2097
      %v2162 = vmul.f32 %v2098, %v2098
      %v2163 = vmul.f32 %v2099, %v2099
      %v2164 = vmul.f32 %v2100, %v2100
      %v2165 = vmul.f32 %v2101, %v2101
      %v2166 = vmul.f32 %v2102, %v2102
      %v2167 = vmul.f32 %v2103, %v2103
      %v2168 = vmul.f32 %v2104, %v2104
      %v2169 = vmul.f32 %v2105, %v2105
      %v2170 = vmul.f32 %v2106, %v2106
      %v2171 = vmul.f32 %v2107, %v2107
      %v2172 = vmul.f32 %v2108, %v2108
      %v2173 = vmul.f32 %v2109, %v2109
      %v2174 = vmul.f32 %v2110, %v2110
      %v2175 = vmul.f32 %v2111, %v2111
      %v2176 = vmul.f32 %v2112, %v2112
      %v2177 = vmul.f32 %v2113, %v2113
      %v2178 = vmul.f32 %v2114, %v2114
      %v2179 = vmul.f32 %v2115, %v2115
      %v2180 = vmul.f32 %v2116, %v2116
      %v2181 = vmul.f32 %v2117, %v2117
      %v2182 = vmul.f32 %v2118, %v2118
      %v2183 = vmul.f32 %v2119, %v2119
      %v2185 = vsel %vm1195, %v2120, 0
      %v2188 = vsel %vm1195, %v2121, 0
      %v2191 = vsel %vm1195, %v2122, 0
      %v2194 = vsel %vm1195, %v2123, 0
      %v2197 = vsel %vm1195, %v2124, 0
      %v2200 = vsel %vm1195, %v2125, 0
      %v2203 = vsel %vm1195, %v2126, 0
      %v2206 = vsel %vm1195, %v2127, 0
      %v2209 = vsel %vm1195, %v2128, 0
      %v2212 = vsel %vm1195, %v2129, 0
      %v2215 = vsel %vm1195, %v2130, 0
      %v2218 = vsel %vm1195, %v2131, 0
      %v2221 = vsel %vm1195, %v2132, 0
      %v2224 = vsel %vm1195, %v2133, 0
      %v2227 = vsel %vm1195, %v2134, 0
      %v2230 = vsel %vm1195, %v2135, 0
      %v2233 = vsel %vm1195, %v2136, 0
      %v2236 = vsel %vm1195, %v2137, 0
      %v2239 = vsel %vm1195, %v2138, 0
      %v2242 = vsel %vm1195, %v2139, 0
      %v2245 = vsel %vm1195, %v2140, 0
      %v2248 = vsel %vm1195, %v2141, 0
      %v2251 = vsel %vm1195, %v2142, 0
      %v2254 = vsel %vm1195, %v2143, 0
      %v2257 = vsel %vm1195, %v2144, 0
      %v2260 = vsel %vm1195, %v2145, 0
      %v2263 = vsel %vm1195, %v2146, 0
      %v2266 = vsel %vm1195, %v2147, 0
      %v2269 = vsel %vm1195, %v2148, 0
      %v2272 = vsel %vm1195, %v2149, 0
      %v2275 = vsel %vm1195, %v2150, 0
      %v2278 = vsel %vm1195, %v2151, 0
      %v2281 = vsel %vm1195, %v2152, 0
      %v2284 = vsel %vm1195, %v2153, 0
      %v2287 = vsel %vm1195, %v2154, 0
      %v2290 = vsel %vm1195, %v2155, 0
      %v2293 = vsel %vm1195, %v2156, 0
      %v2296 = vsel %vm1195, %v2157, 0
      %v2299 = vsel %vm1195, %v2158, 0
      %v2302 = vsel %vm1195, %v2159, 0
      %v2305 = vsel %vm1195, %v2160, 0
      %v2308 = vsel %vm1195, %v2161, 0
      %v2311 = vsel %vm1195, %v2162, 0
      %v2314 = vsel %vm1195, %v2163, 0
      %v2317 = vsel %vm1195, %v2164, 0
      %v2320 = vsel %vm1195, %v2165, 0
      %v2323 = vsel %vm1195, %v2166, 0
      %v2326 = vsel %vm1195, %v2167, 0
      %v2329 = vsel %vm1195, %v2168, 0
      %v2332 = vsel %vm1195, %v2169, 0
      %v2335 = vsel %vm1195, %v2170, 0
      %v2338 = vsel %vm1195, %v2171, 0
      %v2341 = vsel %vm1195, %v2172, 0
      %v2344 = vsel %vm1195, %v2173, 0
      %v2347 = vsel %vm1195, %v2174, 0
      %v2350 = vsel %vm1195, %v2175, 0
      %v2353 = vsel %vm1195, %v2176, 0
      %v2356 = vsel %vm1195, %v2177, 0
      %v2359 = vsel %vm1195, %v2178, 0
      %v2362 = vsel %vm1195, %v2179, 0
      %v2365 = vsel %vm1195, %v2180, 0
      %v2368 = vsel %vm1195, %v2181, 0
      %v2371 = vsel %vm1195, %v2182, 0
      %v2374 = vsel %vm1195, %v2183, 0
      %2376 = vmatprep.subr.mxu0 0.0
      %2377 = vmatpush1.msra.mxu0 0.0
      %2378 = vmatprep.subr.mxu0 0.0
      %2379 = vmatpush1.msra.mxu0 0.0
      %2380 = vmatprep.subr.mxu0 0.0
      %2381 = vmatpush1.msra.mxu0 0.0
      %2382 = vmatprep.subr.mxu0 0.0
      %2383 = vmatpush1.msra.mxu0 0.0
      %2384 = vmatprep.subr.mxu0 0.0
      %2385 = vmatpush1.msra.mxu0 0.0
      %2386 = vmatprep.subr.mxu0 0.0
      %2387 = vmatpush1.msra.mxu0 0.0
      %2388 = vmatprep.subr.mxu0 0.0
      %2389 = vmatpush1.msra.mxu0 0.0
      %2390 = vmatprep.subr.mxu0 0.0
      %2391 = vmatpush1.msra.mxu0 0.0
      %2392 = vmatprep.subr.mxu0 0.0
      %2393 = vmatpush1.msra.mxu0 %v1194
      %2394 = vmatprep.subr.mxu0 0.0
      %2395 = vmatpush1.msra.mxu0 %v1193
      %2396 = vmatprep.subr.mxu0 0.0
      %2397 = vmatpush1.msra.mxu0 %v1192
      %2398 = vmatprep.subr.mxu0 0.0
      %2399 = vmatpush1.msra.mxu0 %v1191
      %2400 = vmatprep.subr.mxu0 0.0
      %2401 = vmatpush1.msra.mxu0 %v1190
      %2402 = vmatprep.subr.mxu0 0.0
      %2403 = vmatpush1.msra.mxu0 %v1189
      %2404 = vmatprep.subr.mxu0 0.0
      %2405 = vmatpush1.msra.mxu0 %v1188
      %2406 = vmatprep.subr.mxu0 0.0
      %2407 = vmatpush1.msra.mxu0 %v1187
      %2408 = vmatprep.subr.mxu0 0.0
      %2409 = vmatpush2.msra.mxu0 0.0
      %2410 = vmatprep.subr.mxu0 0.0
      %2411 = vmatpush2.msra.mxu0 0.0
      %2412 = vmatprep.subr.mxu0 0.0
      %2413 = vmatpush2.msra.mxu0 0.0
      %2414 = vmatprep.subr.mxu0 0.0
      %2415 = vmatpush2.msra.mxu0 0.0
      %2416 = vmatprep.subr.mxu0 0.0
      %2417 = vmatpush2.msra.mxu0 0.0
      %2418 = vmatprep.subr.mxu0 0.0
      %2419 = vmatpush2.msra.mxu0 0.0
      %2420 = vmatprep.subr.mxu0 0.0
      %2421 = vmatpush2.msra.mxu0 0.0
      %2422 = vmatprep.subr.mxu0 0.0
      %2423 = vmatpush2.msra.mxu0 0.0
      %2424 = vmatprep.subr.mxu0 0.0
      %2425 = vmatpush2.msra.mxu0 0.0
      %2426 = vmatprep.subr.mxu0 0.0
      %2427 = vmatpush2.msra.mxu0 0.0
      %2428 = vmatprep.subr.mxu0 0.0
      %2429 = vmatpush2.msra.mxu0 0.0
      %2430 = vmatprep.subr.mxu0 0.0
      %2431 = vmatpush2.msra.mxu0 0.0
      %2432 = vmatprep.subr.mxu0 0.0
      %2433 = vmatpush2.msra.mxu0 0.0
      %2434 = vmatprep.subr.mxu0 0.0
      %2435 = vmatpush2.msra.mxu0 0.0
      %2436 = vmatprep.subr.mxu0 0.0
      %2437 = vmatpush2.msra.mxu0 0.0
      %2438 = vmatprep.subr.mxu0 0.0
      %2439 = vmatpush2.msra.mxu0 0.0
      %2440 = vmatprep.mubr.f32.mxu0 0.0
      %2441 = vmatmul.mubr.f32.gmra.mxu0 %v2185
      %v2442 = vpop.f32.mrf.mxu0
      %v2443 = vadd.f32 0.0, %v2442
      %v2444 = vpop.f32.mrf.mxu0
      %2445 = vmatprep.mubr.f32.mxu0 0.0
      %2446 = vmatmul.mubr.f32.gmra.mxu0 %v2188
      %v2447 = vpop.f32.mrf.mxu0
      %v2448 = vadd.f32 0.0, %v2447
      %v2449 = vpop.f32.mrf.mxu0
      %2450 = vmatprep.mubr.f32.mxu0 0.0
      %2451 = vmatmul.mubr.f32.gmra.mxu0 %v2191
      %v2452 = vpop.f32.mrf.mxu0
      %v2453 = vadd.f32 0.0, %v2452
      %v2454 = vpop.f32.mrf.mxu0
      %2455 = vmatprep.mubr.f32.mxu0 0.0
      %2456 = vmatmul.mubr.f32.gmra.mxu0 %v2194
      %v2457 = vpop.f32.mrf.mxu0
      %v2458 = vadd.f32 0.0, %v2457
      %v2459 = vpop.f32.mrf.mxu0
      %2460 = vmatprep.mubr.f32.mxu0 0.0
      %2461 = vmatmul.mubr.f32.gmra.mxu0 %v2197
      %v2462 = vpop.f32.mrf.mxu0
      %v2463 = vadd.f32 0.0, %v2462
      %v2464 = vpop.f32.mrf.mxu0
      %2465 = vmatprep.mubr.f32.mxu0 0.0
      %2466 = vmatmul.mubr.f32.gmra.mxu0 %v2200
      %v2467 = vpop.f32.mrf.mxu0
      %v2468 = vadd.f32 0.0, %v2467
      %v2469 = vpop.f32.mrf.mxu0
      %2470 = vmatprep.mubr.f32.mxu0 0.0
      %2471 = vmatmul.mubr.f32.gmra.mxu0 %v2203
      %v2472 = vpop.f32.mrf.mxu0
      %v2473 = vadd.f32 0.0, %v2472
      %v2474 = vpop.f32.mrf.mxu0
      %2475 = vmatprep.mubr.f32.mxu0 0.0
      %2476 = vmatmul.mubr.f32.gmra.mxu0 %v2206
      %v2477 = vpop.f32.mrf.mxu0
      %v2478 = vadd.f32 0.0, %v2477
      %v2479 = vpop.f32.mrf.mxu0
      %2480 = vmatprep.mubr.f32.mxu0 0.0
      %2481 = vmatmul.mubr.f32.gmra.mxu0 %v2209
      %v2482 = vpop.f32.mrf.mxu0
      %v2483 = vadd.f32 0.0, %v2482
      %v2484 = vpop.f32.mrf.mxu0
      %2485 = vmatprep.mubr.f32.mxu0 0.0
      %2486 = vmatmul.mubr.f32.gmra.mxu0 %v2212
      %v2487 = vpop.f32.mrf.mxu0
      %v2488 = vadd.f32 0.0, %v2487
      %v2489 = vpop.f32.mrf.mxu0
      %2490 = vmatprep.mubr.f32.mxu0 0.0
      %2491 = vmatmul.mubr.f32.gmra.mxu0 %v2215
      %v2492 = vpop.f32.mrf.mxu0
      %v2493 = vadd.f32 0.0, %v2492
      %v2494 = vpop.f32.mrf.mxu0
      %2495 = vmatprep.mubr.f32.mxu0 0.0
      %2496 = vmatmul.mubr.f32.gmra.mxu0 %v2218
      %v2497 = vpop.f32.mrf.mxu0
      %v2498 = vadd.f32 0.0, %v2497
      %v2499 = vpop.f32.mrf.mxu0
      %2500 = vmatprep.mubr.f32.mxu0 0.0
      %2501 = vmatmul.mubr.f32.gmra.mxu0 %v2221
      %v2502 = vpop.f32.mrf.mxu0
      %v2503 = vadd.f32 0.0, %v2502
      %v2504 = vpop.f32.mrf.mxu0
      %2505 = vmatprep.mubr.f32.mxu0 0.0
      %2506 = vmatmul.mubr.f32.gmra.mxu0 %v2224
      %v2507 = vpop.f32.mrf.mxu0
      %v2508 = vadd.f32 0.0, %v2507
      %v2509 = vpop.f32.mrf.mxu0
      %2510 = vmatprep.mubr.f32.mxu0 0.0
      %2511 = vmatmul.mubr.f32.gmra.mxu0 %v2227
      %v2512 = vpop.f32.mrf.mxu0
      %v2513 = vadd.f32 0.0, %v2512
      %v2514 = vpop.f32.mrf.mxu0
      %2515 = vmatprep.mubr.f32.mxu0 0.0
      %2516 = vmatmul.mubr.f32.gmra.mxu0 %v2230
      %v2517 = vpop.f32.mrf.mxu0
      %v2518 = vadd.f32 0.0, %v2517
      %v2519 = vpop.f32.mrf.mxu0
      %2520 = vmatprep.mubr.f32.mxu0 0.0
      %2521 = vmatmul.mubr.f32.gmra.mxu0 %v2233
      %v2522 = vpop.f32.mrf.mxu0
      %v2523 = vadd.f32 0.0, %v2522
      %v2524 = vpop.f32.mrf.mxu0
      %2525 = vmatprep.mubr.f32.mxu0 0.0
      %2526 = vmatmul.mubr.f32.gmra.mxu0 %v2236
      %v2527 = vpop.f32.mrf.mxu0
      %v2528 = vadd.f32 0.0, %v2527
      %v2529 = vpop.f32.mrf.mxu0
      %2530 = vmatprep.mubr.f32.mxu0 0.0
      %2531 = vmatmul.mubr.f32.gmra.mxu0 %v2239
      %v2532 = vpop.f32.mrf.mxu0
      %v2533 = vadd.f32 0.0, %v2532
      %v2534 = vpop.f32.mrf.mxu0
      %2535 = vmatprep.mubr.f32.mxu0 0.0
      %2536 = vmatmul.mubr.f32.gmra.mxu0 %v2242
      %v2537 = vpop.f32.mrf.mxu0
      %v2538 = vadd.f32 0.0, %v2537
      %v2539 = vpop.f32.mrf.mxu0
      %2540 = vmatprep.mubr.f32.mxu0 0.0
      %2541 = vmatmul.mubr.f32.gmra.mxu0 %v2245
      %v2542 = vpop.f32.mrf.mxu0
      %v2543 = vadd.f32 0.0, %v2542
      %v2544 = vpop.f32.mrf.mxu0
      %2545 = vmatprep.mubr.f32.mxu0 0.0
      %2546 = vmatmul.mubr.f32.gmra.mxu0 %v2248
      %v2547 = vpop.f32.mrf.mxu0
      %v2548 = vadd.f32 0.0, %v2547
      %v2549 = vpop.f32.mrf.mxu0
      %2550 = vmatprep.mubr.f32.mxu0 0.0
      %2551 = vmatmul.mubr.f32.gmra.mxu0 %v2251
      %v2552 = vpop.f32.mrf.mxu0
      %v2553 = vadd.f32 0.0, %v2552
      %v2554 = vpop.f32.mrf.mxu0
      %2555 = vmatprep.mubr.f32.mxu0 0.0
      %2556 = vmatmul.mubr.f32.gmra.mxu0 %v2254
      %v2557 = vpop.f32.mrf.mxu0
      %v2558 = vadd.f32 0.0, %v2557
      %v2559 = vpop.f32.mrf.mxu0
      %2560 = vmatprep.mubr.f32.mxu0 0.0
      %2561 = vmatmul.mubr.f32.gmra.mxu0 %v2257
      %v2562 = vpop.f32.mrf.mxu0
      %v2563 = vadd.f32 0.0, %v2562
      %v2564 = vpop.f32.mrf.mxu0
      %2565 = vmatprep.mubr.f32.mxu0 0.0
      %2566 = vmatmul.mubr.f32.gmra.mxu0 %v2260
      %v2567 = vpop.f32.mrf.mxu0
      %v2568 = vadd.f32 0.0, %v2567
      %v2569 = vpop.f32.mrf.mxu0
      %2570 = vmatprep.mubr.f32.mxu0 0.0
      %2571 = vmatmul.mubr.f32.gmra.mxu0 %v2263
      %v2572 = vpop.f32.mrf.mxu0
      %v2573 = vadd.f32 0.0, %v2572
      %v2574 = vpop.f32.mrf.mxu0
      %2575 = vmatprep.mubr.f32.mxu0 0.0
      %2576 = vmatmul.mubr.f32.gmra.mxu0 %v2266
      %v2577 = vpop.f32.mrf.mxu0
      %v2578 = vadd.f32 0.0, %v2577
      %v2579 = vpop.f32.mrf.mxu0
      %2580 = vmatprep.mubr.f32.mxu0 0.0
      %2581 = vmatmul.mubr.f32.gmra.mxu0 %v2269
      %v2582 = vpop.f32.mrf.mxu0
      %v2583 = vadd.f32 0.0, %v2582
      %v2584 = vpop.f32.mrf.mxu0
      %2585 = vmatprep.mubr.f32.mxu0 0.0
      %2586 = vmatmul.mubr.f32.gmra.mxu0 %v2272
      %v2587 = vpop.f32.mrf.mxu0
      %v2588 = vadd.f32 0.0, %v2587
      %v2589 = vpop.f32.mrf.mxu0
      %2590 = vmatprep.mubr.f32.mxu0 0.0
      %2591 = vmatmul.mubr.f32.gmra.mxu0 %v2275
      %v2592 = vpop.f32.mrf.mxu0
      %v2593 = vadd.f32 0.0, %v2592
      %v2594 = vpop.f32.mrf.mxu0
      %2595 = vmatprep.mubr.f32.mxu0 0.0
      %2596 = vmatmul.mubr.f32.gmra.mxu0 %v2278
      %v2597 = vpop.f32.mrf.mxu0
      %v2598 = vadd.f32 0.0, %v2597
      %v2599 = vpop.f32.mrf.mxu0
      %2600 = vmatprep.mubr.f32.mxu0 0.0
      %2601 = vmatmul.mubr.f32.gmra.mxu0 %v2281
      %v2602 = vpop.f32.mrf.mxu0
      %v2603 = vadd.f32 0.0, %v2602
      %v2604 = vpop.f32.mrf.mxu0
      %2605 = vmatprep.mubr.f32.mxu0 0.0
      %2606 = vmatmul.mubr.f32.gmra.mxu0 %v2284
      %v2607 = vpop.f32.mrf.mxu0
      %v2608 = vadd.f32 0.0, %v2607
      %v2609 = vpop.f32.mrf.mxu0
      %2610 = vmatprep.mubr.f32.mxu0 0.0
      %2611 = vmatmul.mubr.f32.gmra.mxu0 %v2287
      %v2612 = vpop.f32.mrf.mxu0
      %v2613 = vadd.f32 0.0, %v2612
      %v2614 = vpop.f32.mrf.mxu0
      %2615 = vmatprep.mubr.f32.mxu0 0.0
      %2616 = vmatmul.mubr.f32.gmra.mxu0 %v2290
      %v2617 = vpop.f32.mrf.mxu0
      %v2618 = vadd.f32 0.0, %v2617
      %v2619 = vpop.f32.mrf.mxu0
      %2620 = vmatprep.mubr.f32.mxu0 0.0
      %2621 = vmatmul.mubr.f32.gmra.mxu0 %v2293
      %v2622 = vpop.f32.mrf.mxu0
      %v2623 = vadd.f32 0.0, %v2622
      %v2624 = vpop.f32.mrf.mxu0
      %2625 = vmatprep.mubr.f32.mxu0 0.0
      %2626 = vmatmul.mubr.f32.gmra.mxu0 %v2296
      %v2627 = vpop.f32.mrf.mxu0
      %v2628 = vadd.f32 0.0, %v2627
      %v2629 = vpop.f32.mrf.mxu0
      %2630 = vmatprep.mubr.f32.mxu0 0.0
      %2631 = vmatmul.mubr.f32.gmra.mxu0 %v2299
      %v2632 = vpop.f32.mrf.mxu0
      %v2633 = vadd.f32 0.0, %v2632
      %v2634 = vpop.f32.mrf.mxu0
      %2635 = vmatprep.mubr.f32.mxu0 0.0
      %2636 = vmatmul.mubr.f32.gmra.mxu0 %v2302
      %v2637 = vpop.f32.mrf.mxu0
      %v2638 = vadd.f32 0.0, %v2637
      %v2639 = vpop.f32.mrf.mxu0
      %2640 = vmatprep.mubr.f32.mxu0 0.0
      %2641 = vmatmul.mubr.f32.gmra.mxu0 %v2305
      %v2642 = vpop.f32.mrf.mxu0
      %v2643 = vadd.f32 0.0, %v2642
      %v2644 = vpop.f32.mrf.mxu0
      %2645 = vmatprep.mubr.f32.mxu0 0.0
      %2646 = vmatmul.mubr.f32.gmra.mxu0 %v2308
      %v2647 = vpop.f32.mrf.mxu0
      %v2648 = vadd.f32 0.0, %v2647
      %v2649 = vpop.f32.mrf.mxu0
      %2650 = vmatprep.mubr.f32.mxu0 0.0
      %2651 = vmatmul.mubr.f32.gmra.mxu0 %v2311
      %v2652 = vpop.f32.mrf.mxu0
      %v2653 = vadd.f32 0.0, %v2652
      %v2654 = vpop.f32.mrf.mxu0
      %2655 = vmatprep.mubr.f32.mxu0 0.0
      %2656 = vmatmul.mubr.f32.gmra.mxu0 %v2314
      %v2657 = vpop.f32.mrf.mxu0
      %v2658 = vadd.f32 0.0, %v2657
      %v2659 = vpop.f32.mrf.mxu0
      %2660 = vmatprep.mubr.f32.mxu0 0.0
      %2661 = vmatmul.mubr.f32.gmra.mxu0 %v2317
      %v2662 = vpop.f32.mrf.mxu0
      %v2663 = vadd.f32 0.0, %v2662
      %v2664 = vpop.f32.mrf.mxu0
      %2665 = vmatprep.mubr.f32.mxu0 0.0
      %2666 = vmatmul.mubr.f32.gmra.mxu0 %v2320
      %v2667 = vpop.f32.mrf.mxu0
      %v2668 = vadd.f32 0.0, %v2667
      %v2669 = vpop.f32.mrf.mxu0
      %2670 = vmatprep.mubr.f32.mxu0 0.0
      %2671 = vmatmul.mubr.f32.gmra.mxu0 %v2323
      %v2672 = vpop.f32.mrf.mxu0
      %v2673 = vadd.f32 0.0, %v2672
      %v2674 = vpop.f32.mrf.mxu0
      %2675 = vmatprep.mubr.f32.mxu0 0.0
      %2676 = vmatmul.mubr.f32.gmra.mxu0 %v2326
      %v2677 = vpop.f32.mrf.mxu0
      %v2678 = vadd.f32 0.0, %v2677
      %v2679 = vpop.f32.mrf.mxu0
      %2680 = vmatprep.mubr.f32.mxu0 0.0
      %2681 = vmatmul.mubr.f32.gmra.mxu0 %v2329
      %v2682 = vpop.f32.mrf.mxu0
      %v2683 = vadd.f32 0.0, %v2682
      %v2684 = vpop.f32.mrf.mxu0
      %2685 = vmatprep.mubr.f32.mxu0 0.0
      %2686 = vmatmul.mubr.f32.gmra.mxu0 %v2332
      %v2687 = vpop.f32.mrf.mxu0
      %v2688 = vadd.f32 0.0, %v2687
      %v2689 = vpop.f32.mrf.mxu0
      %2690 = vmatprep.mubr.f32.mxu0 0.0
      %2691 = vmatmul.mubr.f32.gmra.mxu0 %v2335
      %v2692 = vpop.f32.mrf.mxu0
      %v2693 = vadd.f32 0.0, %v2692
      %v2694 = vpop.f32.mrf.mxu0
      %2695 = vmatprep.mubr.f32.mxu0 0.0
      %2696 = vmatmul.mubr.f32.gmra.mxu0 %v2338
      %v2697 = vpop.f32.mrf.mxu0
      %v2698 = vadd.f32 0.0, %v2697
      %v2699 = vpop.f32.mrf.mxu0
      %2700 = vmatprep.mubr.f32.mxu0 0.0
      %2701 = vmatmul.mubr.f32.gmra.mxu0 %v2341
      %v2702 = vpop.f32.mrf.mxu0
      %v2703 = vadd.f32 0.0, %v2702
      %v2704 = vpop.f32.mrf.mxu0
      %2705 = vmatprep.mubr.f32.mxu0 0.0
      %2706 = vmatmul.mubr.f32.gmra.mxu0 %v2344
      %v2707 = vpop.f32.mrf.mxu0
      %v2708 = vadd.f32 0.0, %v2707
      %v2709 = vpop.f32.mrf.mxu0
      %2710 = vmatprep.mubr.f32.mxu0 0.0
      %2711 = vmatmul.mubr.f32.gmra.mxu0 %v2347
      %v2712 = vpop.f32.mrf.mxu0
      %v2713 = vadd.f32 0.0, %v2712
      %v2714 = vpop.f32.mrf.mxu0
      %2715 = vmatprep.mubr.f32.mxu0 0.0
      %2716 = vmatmul.mubr.f32.gmra.mxu0 %v2350
      %v2717 = vpop.f32.mrf.mxu0
      %v2718 = vadd.f32 0.0, %v2717
      %v2719 = vpop.f32.mrf.mxu0
      %2720 = vmatprep.mubr.f32.mxu0 0.0
      %2721 = vmatmul.mubr.f32.gmra.mxu0 %v2353
      %v2722 = vpop.f32.mrf.mxu0
      %v2723 = vadd.f32 0.0, %v2722
      %v2724 = vpop.f32.mrf.mxu0
      %2725 = vmatprep.mubr.f32.mxu0 0.0
      %2726 = vmatmul.mubr.f32.gmra.mxu0 %v2356
      %v2727 = vpop.f32.mrf.mxu0
      %v2728 = vadd.f32 0.0, %v2727
      %v2729 = vpop.f32.mrf.mxu0
      %2730 = vmatprep.mubr.f32.mxu0 0.0
      %2731 = vmatmul.mubr.f32.gmra.mxu0 %v2359
      %v2732 = vpop.f32.mrf.mxu0
      %v2733 = vadd.f32 0.0, %v2732
      %v2734 = vpop.f32.mrf.mxu0
      %2735 = vmatprep.mubr.f32.mxu0 0.0
      %2736 = vmatmul.mubr.f32.gmra.mxu0 %v2362
      %v2737 = vpop.f32.mrf.mxu0
      %v2738 = vadd.f32 0.0, %v2737
      %v2739 = vpop.f32.mrf.mxu0
      %2740 = vmatprep.mubr.f32.mxu0 0.0
      %2741 = vmatmul.mubr.f32.gmra.mxu0 %v2365
      %v2742 = vpop.f32.mrf.mxu0
      %v2743 = vadd.f32 0.0, %v2742
      %v2744 = vpop.f32.mrf.mxu0
      %2745 = vmatprep.mubr.f32.mxu0 0.0
      %2746 = vmatmul.mubr.f32.gmra.mxu0 %v2368
      %v2747 = vpop.f32.mrf.mxu0
      %v2748 = vadd.f32 0.0, %v2747
      %v2749 = vpop.f32.mrf.mxu0
      %2750 = vmatprep.mubr.f32.mxu0 0.0
      %2751 = vmatmul.mubr.f32.gmra.mxu0 %v2371
      %v2752 = vpop.f32.mrf.mxu0
      %v2753 = vadd.f32 0.0, %v2752
      %v2754 = vpop.f32.mrf.mxu0
      %2755 = vmatprep.mubr.f32.mxu0 0.0
      %2756 = vmatmul.mubr.f32.gmra.mxu0 %v2374
      %v2757 = vpop.f32.mrf.mxu0
      %v2758 = vadd.f32 0.0, %v2757
      %v2759 = vpop.f32.mrf.mxu0
      %2760 = vdwg.mxu0
      %v2761 = vsel %vm1773, %v2443, 0.0
      %v2762 = vsel %vm1773, %v2448, 0.0
      %v2763 = vadd.f32 %v2761, %v2762
      %v2764 = vsel %vm1773, %v2453, 0.0
      %v2765 = vadd.f32 %v2763, %v2764
      %v2766 = vsel %vm1773, %v2458, 0.0
      %v2767 = vadd.f32 %v2765, %v2766
      %v2768 = vsel %vm1773, %v2463, 0.0
      %v2769 = vadd.f32 %v2767, %v2768
      %v2770 = vsel %vm1773, %v2468, 0.0
      %v2771 = vadd.f32 %v2769, %v2770
      %v2772 = vsel %vm1773, %v2473, 0.0
      %v2773 = vadd.f32 %v2771, %v2772
      %v2774 = vsel %vm1773, %v2478, 0.0
      %v2775 = vadd.f32 %v2773, %v2774
      %v2776 = vsel %vm1773, %v2483, 0.0
      %v2777 = vadd.f32 %v2775, %v2776
      %v2778 = vsel %vm1773, %v2488, 0.0
      %v2779 = vadd.f32 %v2777, %v2778
      %v2780 = vsel %vm1773, %v2493, 0.0
      %v2781 = vadd.f32 %v2779, %v2780
      %v2782 = vsel %vm1773, %v2498, 0.0
      %v2783 = vadd.f32 %v2781, %v2782
      %v2784 = vsel %vm1773, %v2503, 0.0
      %v2785 = vadd.f32 %v2783, %v2784
      %v2786 = vsel %vm1773, %v2508, 0.0
      %v2787 = vadd.f32 %v2785, %v2786
      %v2788 = vsel %vm1773, %v2513, 0.0
      %v2789 = vadd.f32 %v2787, %v2788
      %v2790 = vsel %vm1773, %v2518, 0.0
      %v2791 = vadd.f32 %v2789, %v2790
      %v2792 = vsel %vm1773, %v2523, 0.0
      %v2793 = vadd.f32 %v2791, %v2792
      %v2794 = vsel %vm1773, %v2528, 0.0
      %v2795 = vadd.f32 %v2793, %v2794
      %v2796 = vsel %vm1773, %v2533, 0.0
      %v2797 = vadd.f32 %v2795, %v2796
      %v2798 = vsel %vm1773, %v2538, 0.0
      %v2799 = vadd.f32 %v2797, %v2798
      %v2800 = vsel %vm1773, %v2543, 0.0
      %v2801 = vadd.f32 %v2799, %v2800
      %v2802 = vsel %vm1773, %v2548, 0.0
      %v2803 = vadd.f32 %v2801, %v2802
      %v2804 = vsel %vm1773, %v2553, 0.0
      %v2805 = vadd.f32 %v2803, %v2804
      %v2806 = vsel %vm1773, %v2558, 0.0
      %v2807 = vadd.f32 %v2805, %v2806
      %v2808 = vsel %vm1773, %v2563, 0.0
      %v2809 = vadd.f32 %v2807, %v2808
      %v2810 = vsel %vm1773, %v2568, 0.0
      %v2811 = vadd.f32 %v2809, %v2810
      %v2812 = vsel %vm1773, %v2573, 0.0
      %v2813 = vadd.f32 %v2811, %v2812
      %v2814 = vsel %vm1773, %v2578, 0.0
      %v2815 = vadd.f32 %v2813, %v2814
      %v2816 = vsel %vm1773, %v2583, 0.0
      %v2817 = vadd.f32 %v2815, %v2816
      %v2818 = vsel %vm1773, %v2588, 0.0
      %v2819 = vadd.f32 %v2817, %v2818
      %v2820 = vsel %vm1773, %v2593, 0.0
      %v2821 = vadd.f32 %v2819, %v2820
      %v2822 = vsel %vm1773, %v2598, 0.0
      %v2823 = vadd.f32 %v2821, %v2822
      %v2824 = vsel %vm1773, %v2603, 0.0
      %v2825 = vadd.f32 %v2823, %v2824
      %v2826 = vsel %vm1773, %v2608, 0.0
      %v2827 = vadd.f32 %v2825, %v2826
      %v2828 = vsel %vm1773, %v2613, 0.0
      %v2829 = vadd.f32 %v2827, %v2828
      %v2830 = vsel %vm1773, %v2618, 0.0
      %v2831 = vadd.f32 %v2829, %v2830
      %v2832 = vsel %vm1773, %v2623, 0.0
      %v2833 = vadd.f32 %v2831, %v2832
      %v2834 = vsel %vm1773, %v2628, 0.0
      %v2835 = vadd.f32 %v2833, %v2834
      %v2836 = vsel %vm1773, %v2633, 0.0
      %v2837 = vadd.f32 %v2835, %v2836
      %v2838 = vsel %vm1773, %v2638, 0.0
      %v2839 = vadd.f32 %v2837, %v2838
      %v2840 = vsel %vm1773, %v2643, 0.0
      %v2841 = vadd.f32 %v2839, %v2840
      %v2842 = vsel %vm1773, %v2648, 0.0
      %v2843 = vadd.f32 %v2841, %v2842
      %v2844 = vsel %vm1773, %v2653, 0.0
      %v2845 = vadd.f32 %v2843, %v2844
      %v2846 = vsel %vm1773, %v2658, 0.0
      %v2847 = vadd.f32 %v2845, %v2846
      %v2848 = vsel %vm1773, %v2663, 0.0
      %v2849 = vadd.f32 %v2847, %v2848
      %v2850 = vsel %vm1773, %v2668, 0.0
      %v2851 = vadd.f32 %v2849, %v2850
      %v2852 = vsel %vm1773, %v2673, 0.0
      %v2853 = vadd.f32 %v2851, %v2852
      %v2854 = vsel %vm1773, %v2678, 0.0
      %v2855 = vadd.f32 %v2853, %v2854
      %v2856 = vsel %vm1773, %v2683, 0.0
      %v2857 = vadd.f32 %v2855, %v2856
      %v2858 = vsel %vm1773, %v2688, 0.0
      %v2859 = vadd.f32 %v2857, %v2858
      %v2860 = vsel %vm1773, %v2693, 0.0
      %v2861 = vadd.f32 %v2859, %v2860
      %v2862 = vsel %vm1773, %v2698, 0.0
      %v2863 = vadd.f32 %v2861, %v2862
      %v2864 = vsel %vm1773, %v2703, 0.0
      %v2865 = vadd.f32 %v2863, %v2864
      %v2866 = vsel %vm1773, %v2708, 0.0
      %v2867 = vadd.f32 %v2865, %v2866
      %v2868 = vsel %vm1773, %v2713, 0.0
      %v2869 = vadd.f32 %v2867, %v2868
      %v2870 = vsel %vm1773, %v2718, 0.0
      %v2871 = vadd.f32 %v2869, %v2870
      %v2872 = vsel %vm1773, %v2723, 0.0
      %v2873 = vadd.f32 %v2871, %v2872
      %v2874 = vsel %vm1773, %v2728, 0.0
      %v2875 = vadd.f32 %v2873, %v2874
      %v2876 = vsel %vm1773, %v2733, 0.0
      %v2877 = vadd.f32 %v2875, %v2876
      %v2878 = vsel %vm1773, %v2738, 0.0
      %v2879 = vadd.f32 %v2877, %v2878
      %v2880 = vsel %vm1773, %v2743, 0.0
      %v2881 = vadd.f32 %v2879, %v2880
      %v2882 = vsel %vm1773, %v2748, 0.0
      %v2883 = vadd.f32 %v2881, %v2882
      %v2884 = vsel %vm1773, %v2753, 0.0
      %v2885 = vadd.f32 %v2883, %v2884
      %v2886 = vsel %vm1773, %v2758, 0.0
      %v2887 = vadd.f32 %v2885, %v2886
      %v2888 = vrot.slane %v2887, 4
      %v2889 = vadd.f32 %v2887, %v2888
      %v2890 = vrot.slane %v2889, 2
      %v2891 = vadd.f32 %v2889, %v2890
      %v2892 = vrot.slane %v2891, 1
      %v2893 = vadd.f32 %v2891, %v2892
      %vm2894 = vcmask 24576
      %2895 = vst.msk [vmem:[%s255] sm:$0x1] %vm2894, %v1906
      %2896 = vst.msk [vmem:[%s258] sm:$0x1] %vm2894, %v2893
      %p2897 = scmp.lt.s32.totalorder %s18, 1
      %s2898 = scalar_select %p2897, %s18, 1
      %s2899 = scalar_lea.vmem %s5, %s2898
      %p2900 = scmp.lt.s32.totalorder %s18, 1
      %s2901 = scalar_select %p2900, %s18, 1
      %s2902 = scalar_lea.vmem %s6, %s2901
      // Predicated region
      $region41: #{attention_mlp_forward.2} parent=39 // pred_check
        %p2903 = pneg %p146
      $region42: #{attention_mlp_forward.2} parent=39 // pred_check_branch
        %2905 = sbr.rel (%p2903) target = $region44
      $region43: #{attention_mlp_forward.2} parent=39 // pred_region
        _
      $region44: #{attention_mlp_forward.2} parent=39 // pred_fallthru
        _
      // Predicated region
      $region45: #{attention_mlp_forward.2} parent=39 // pred_check
        %p2906 = pneg %p172
      $region46: #{attention_mlp_forward.2} parent=39 // pred_check_branch
        %2908 = sbr.rel (%p2906) target = $region48
      $region47: #{attention_mlp_forward.2} parent=39 // pred_region
        _
      $region48: #{attention_mlp_forward.2} parent=39 // pred_fallthru
        _
    $region40: #{attention_mlp_forward.2} parent=5 // pred_fallthru
      _
    %p2909 = scmp.le.s32.totalorder 2, %s13
    // Predicated region
    $region49: #{attention_mlp_forward.2} parent=5 // pred_check
      %p2910 = pneg %p2909
    $region50: #{attention_mlp_forward.2} parent=5 // pred_check_branch
      %2912 = sbr.rel (%p2910) target = $region52
    $region51: #{attention_mlp_forward.2} parent=5 // pred_region
      %s2913 = ssub.s32 %s13, 2
      // Predicated region
      $region53: #{attention_mlp_forward.2} parent=51 // pred_check
        %p2914 = pneg %p152
      $region54: #{attention_mlp_forward.2} parent=51 // pred_check_branch
        %2916 = sbr.rel (%p2914) target = $region56
      $region55: #{attention_mlp_forward.2} parent=51 // pred_region
        %p2917 = scmp.lt.s32.totalorder %s19, 1
        %s2918 = scalar_select %p2917, %s19, 1
        %s2919 = scalar_lea.vmem %s5, %s2918
      $region56: #{attention_mlp_forward.2} parent=51 // pred_fallthru
        _
      // Predicated region
      $region57: #{attention_mlp_forward.2} parent=51 // pred_check
        %p2920 = pneg %p178
      $region58: #{attention_mlp_forward.2} parent=51 // pred_check_branch
        %2922 = sbr.rel (%p2920) target = $region60
      $region59: #{attention_mlp_forward.2} parent=51 // pred_region
        %p2923 = scmp.lt.s32.totalorder %s19, 1
        %s2924 = scalar_select %p2923, %s19, 1
        %s2925 = scalar_lea.vmem %s6, %s2924
      $region60: #{attention_mlp_forward.2} parent=51 // pred_fallthru
        _
    $region52: #{attention_mlp_forward.2} parent=5 // pred_fallthru
      _
  $region6: #{attention_mlp_forward.2} parent=0 // loop_footer
    %s17 = sadd.s32 1, %s13
  $region7: #{attention_mlp_forward.2} parent=0 // loop_footer_branch
    %12 = sbr.rel target = $region3
  $region8: #{attention_mlp_forward.2} parent=0 // loop_exit
    _

</llo_original>
